<compile_context>
chip_gen: v6e
topology: v6e:2x2x1
jax: 0.10.0
libtpu: 0.0.40
codegen_flags: <defaults>
</compile_context>

<pallas_src>
import math
import functools

import jax
import jax.numpy as jnp
from jax.experimental import pallas as pl
from jax.experimental.pallas import tpu as pltpu

INF_NUMBER = 1000000000000.0
ZERO_TOLERANCE = 1e-09


def _round_up(v, m):
    return ((v + m - 1) // m) * m


def _gat_head_kernel(x_ref, xt_ref, mask_ref, w_ref, h_ref, b_ref, out_ref,
                     z_ref, *, K, E, G_pad, neg_slope, mm_dtype, approx_recip):
    """One (batch, head) grid step.

    x_ref:    (1, G_pad, N_pad)        f32   features of this batch element
    xt_ref:   (1, N_pad, G_pad)        f32   host-prepared transpose of x
    mask_ref: (1, N_pad, N_pad)        int8  0/1 edge mask (sum_e |S| > tol)
    w_ref:    (1, E, G_pad, G_pad)     mm    attention weights of this head
    h_ref:    (1, F_pad, E*K*G_pad)    mm    filter taps of this head
    b_ref:    (F_pad, 1)               f32   bias
    out_ref:  (1, 1, F_pad, N_pad)     f32   per-head output, lane-dense
    z_ref:    (E*K*G_pad, N_pad)       mm    VMEM scratch for the tap stack
    """
    x = x_ref[0]                                            # (G_pad, N_pad) f32
    xt = xt_ref[0]                                          # (N_pad, G_pad) f32
    maskb = mask_ref[0].astype(jnp.float32) > 0.5           # bool (N_pad, N_pad)

    x_mm = x.astype(mm_dtype)
    xt_mm = xt.astype(mm_dtype)

    for e in range(E):                                      # static unroll (E=1 typ.)
        # multiplicative key-query attention:  eij = x^T (W x)
        Wx = jnp.dot(w_ref[0, e], x_mm, preferred_element_type=jnp.float32)
        xWx = jnp.dot(xt_mm, Wx.astype(mm_dtype),
                      preferred_element_type=jnp.float32)   # (N, N) f32
        # leaky relu fused into the edge-mask select
        logits = jnp.where(maskb,
                           jnp.where(xWx >= 0, xWx, neg_slope * xWx),
                           -INF_NUMBER)
        m = jnp.max(logits, axis=-1, keepdims=True)
        pexp = jnp.exp(logits - m)
        denom = jnp.sum(pexp, axis=-1, keepdims=True)
        if approx_recip:
            prob = pexp * pl.reciprocal(denom, approx=True)  # EUP slot (perf mode)
        else:
            prob = pexp / denom                              # exact module parity
        # trailing mask keeps fully-masked (padded / isolated) rows exactly zero
        aij = jnp.where(maskb, prob, 0.0)                    # (N_pad, N_pad)
        aij_mm = aij.astype(mm_dtype)

        # graph diffusion taps, written straight into the z scratch
        z_ref[e * K * G_pad:(e * K + 1) * G_pad, :] = x_mm
        xk = x                                               # f32 tap carry
        for k in range(1, K):                                # static unroll
            xk = jnp.dot(xk.astype(mm_dtype), aij_mm,
                         preferred_element_type=jnp.float32)  # (G_pad, N_pad)
            r0 = (e * K + k) * G_pad
            z_ref[r0:r0 + G_pad, :] = xk.astype(mm_dtype)

    # one fat filter matmul for this head:
    #   (F_pad, E*K*G_pad) @ (E*K*G_pad, N_pad) -> (F_pad, N_pad)
    y = jnp.dot(h_ref[0], z_ref[...], preferred_element_type=jnp.float32)
    y = jnp.maximum(y + b_ref[...], 0.0)                     # bias + relu
    out_ref[0, 0] = y                                        # lane-dense store


def gat_attentional_layer(x, S, weight, filter_weight, bias, K,
                          negative_slope=0.2, matmul_dtype=jnp.float32,
                          approx_reciprocal=False):
    """One GraphFilterBatchAttentional layer (concatenate=True, relu, bias)."""
    B, G, N = x.shape
    P, E = weight.shape[0], weight.shape[1]
    F_out = filter_weight.shape[1]

    mm_dtype = jnp.dtype(matmul_dtype)
    # f32 native sublane tile is 8; bf16 native tile is (16, 128)
    sub = 8 if mm_dtype == jnp.dtype(jnp.float32) else 16
    G_pad = _round_up(G, sub)
    F_pad = _round_up(F_out, sub)
    N_pad = _round_up(N, 128)                 # lane-dense last dimension

    f32 = jnp.float32
    xp = jnp.zeros((B, G_pad, N_pad), f32).at[:, :G, :N].set(x.astype(f32))
    xtp = jnp.transpose(xp, (0, 2, 1))                                  # (B, N_pad, G_pad)

    # S only ever enters the math through its edge mask -> precompute as int8.
    mask = jnp.sum(jnp.abs(S.astype(f32)), axis=1) > ZERO_TOLERANCE      # (B, N, N)
    mask_i8 = jnp.zeros((B, N_pad, N_pad), jnp.int8).at[:, :N, :N].set(
        mask.astype(jnp.int8))

    # weight (P, E, G, G) -> (P, E, G_pad, G_pad) in the matmul dtype
    wp = jnp.zeros((P, E, G_pad, G_pad), f32).at[:, :, :G, :G].set(
        weight.astype(f32)).astype(mm_dtype)
    # filter_weight (P, F, E, K, G) -> (P, F_pad, E*K*G_pad), (e,k,g) flattened
    hp = jnp.zeros((P, F_pad, E, K, G_pad), f32).at[:, :F_out, :, :, :G].set(
        filter_weight.astype(f32))
    h_flat = hp.reshape(P, F_pad, E * K * G_pad).astype(mm_dtype)
    bp = jnp.zeros((F_pad, 1), f32).at[:F_out, :].set(
        bias.astype(f32).reshape(F_out, 1))

    kernel = functools.partial(
        _gat_head_kernel, K=K, E=E, G_pad=G_pad, neg_slope=negative_slope,
        mm_dtype=mm_dtype, approx_recip=approx_reciprocal)

    # generation-aware VMEM budget (<= ~85% of physical per-core VMEM)
    try:
        vmem_cap = int(getattr(pltpu.get_tpu_info(), "vmem_capacity_bytes",
                               64 * 1024 * 1024))
    except Exception:
        vmem_cap = 64 * 1024 * 1024
    mm_sz = mm_dtype.itemsize
    nn = N_pad * N_pad
    vmem_est = (2 * nn                                  # int8 mask, double-buffered
                + 8 * nn * 4 + nn * mm_sz               # per-(e) f32 temporaries + aij
                + 4 * 4 * G_pad * N_pad                 # x, xt double buffers (f32)
                + 2 * 2 * F_pad * N_pad * 4             # output double buffer
                + E * K * G_pad * N_pad * mm_sz         # z scratch
                + 2 * (E * G_pad * G_pad + F_pad * E * K * G_pad) * mm_sz)
    vmem_limit = int(min(int(0.85 * vmem_cap),
                         max(32 * 1024 * 1024, 2 * vmem_est)))

    out = pl.pallas_call(
        kernel,
        out_shape=jax.ShapeDtypeStruct((B, P, F_pad, N_pad), jnp.float32),
        grid_spec=pltpu.PrefetchScalarGridSpec(
            num_scalar_prefetch=0,
            grid=(B, P),
            in_specs=[
                # x / xt / mask: constant block across the inner p axis -> one DMA per b
                pl.BlockSpec((1, G_pad, N_pad), lambda b, p: (b, 0, 0)),
                pl.BlockSpec((1, N_pad, G_pad), lambda b, p: (b, 0, 0)),
                pl.BlockSpec((1, N_pad, N_pad), lambda b, p: (b, 0, 0)),
                # per-head parameters (tiny)
                pl.BlockSpec((1, E, G_pad, G_pad), lambda b, p: (p, 0, 0, 0)),
                pl.BlockSpec((1, F_pad, E * K * G_pad), lambda b, p: (p, 0, 0)),
                pl.BlockSpec((F_pad, 1), lambda b, p: (0, 0)),
            ],
            out_specs=pl.BlockSpec((1, 1, F_pad, N_pad),
                                   lambda b, p: (b, p, 0, 0)),
            scratch_shapes=[pltpu.VMEM((E * K * G_pad, N_pad), mm_dtype)],
        ),
        compiler_params=pltpu.CompilerParams(
            dimension_semantics=("parallel", "parallel"),
            vmem_limit_bytes=vmem_limit),
    )(xp, xtp, mask_i8, wp, h_flat, bp)

    # heads concatenated along the feature axis, padding stripped:
    # (B, P, F_pad, N_pad) -> (B, P*F, N)
    return out[:, :, :F_out, :N].reshape(B, P * F_out, N)


class GatGSOPallas:
    """JAX/Pallas port of GatGSO (attention_concat=True path)."""
    # TODO(synk): attention_concat=False (head averaging) and the runtime
    # N-padding branch of GraphFilterBatchAttentional.forward (N < self.N) are
    # not implemented (the module defaults never take them).

    def __init__(self, in_features, out_features, hidden_features=(),
                 graph_filter_taps=(3,), attention_heads=(1,),
                 attention_concat=True, key=None,
                 matmul_dtype=jnp.float32, approx_reciprocal=False):
        assert attention_concat, "only concatenate=True implemented"
        self.F = [in_features] + list(hidden_features) + [out_features]
        self.K = tuple(graph_filter_taps)
        self.P = tuple(attention_heads)
        self.L = len(self.K)
        self.E = 1
        assert len(self.P) == self.L and len(self.F) - 1 == self.L
        self.S = None
        self.matmul_dtype = matmul_dtype
        self.approx_reciprocal = approx_reciprocal

        if key is None:
            key = jax.random.PRNGKey(0)
        self.params = []
        for i in range(self.L):
            G, Fo, K, P, E = self.F[i], self.F[i + 1], self.K[i], self.P[i], self.E
            std_v = 1.0 / math.sqrt(G * P)
            key, k1, k2, k3, k4 = jax.random.split(key, 5)
            weight = jax.random.uniform(k1, (P, E, G, G), jnp.float32, -std_v, std_v)
            # mixer exists for parameter fidelity; the key-query code path never
            # uses it in forward (same as the PyTorch module).
            mixer = jax.random.uniform(k2, (P, E, 2 * Fo), jnp.float32, -std_v, std_v)
            filter_weight = jax.random.uniform(k3, (P, Fo, E, K, G), jnp.float32,
                                               -std_v, std_v)
            bias = jax.random.uniform(k4, (Fo, 1), jnp.float32, -std_v, std_v)
            self.params.append(dict(weight=weight, mixer=mixer,
                                    filter_weight=filter_weight, bias=bias, K=K))

    def set_gso(self, S):
        assert S.ndim == 3  # (B, N, N), E == 1
        self.S = S[:, None, :, :]

    def __call__(self, x):
        y = x
        for i in range(self.L):
            p = self.params[i]
            y = gat_attentional_layer(y, self.S, p["weight"], p["filter_weight"],
                                      p["bias"], p["K"],
                                      matmul_dtype=self.matmul_dtype,
                                      approx_reciprocal=self.approx_reciprocal)
        return y


# ----------------------------- pure-JAX reference ----------------------------------
def _ref_layer(x, S, weight, filter_weight, bias, K, neg_slope=0.2):
    B, G, N = x.shape
    P, E = weight.shape[0], weight.shape[1]
    Fo = filter_weight.shape[1]
    x_key = jnp.transpose(x, (0, 2, 1)).reshape(B, 1, 1, N, G)
    x_query = jnp.transpose(x_key, (0, 1, 2, 4, 3))
    Wr = weight.reshape(1, P, E, G, G)
    xWx = jnp.matmul(x_key, jnp.matmul(Wr, x_query))
    eij = jnp.where(xWx >= 0, xWx, neg_slope * xWx)
    mask = (jnp.sum(jnp.abs(S), axis=1).reshape(B, 1, 1, N, N) > ZERO_TOLERANCE
            ).astype(x.dtype)
    aij = jax.nn.softmax(eij * mask - (1 - mask) * INF_NUMBER, axis=4) * mask
    xr = x.reshape(B, 1, 1, G, N)
    z = [jnp.broadcast_to(xr.reshape(B, 1, 1, 1, G, N), (B, P, E, 1, G, N))]
    xk = xr
    for _ in range(1, K):
        xk = jnp.matmul(xk, aij)
        z.append(xk.reshape(B, P, E, 1, G, N))
    z = jnp.concatenate(z, axis=3)                               # (B,P,E,K,G,N)
    h = filter_weight.reshape(1, P, Fo, E * K * G).transpose(0, 1, 3, 2)
    zf = jnp.transpose(z, (0, 1, 5, 2, 3, 4)).reshape(B, P, N, E * K * G)
    y = jnp.matmul(zf, h)
    y = jnp.transpose(y, (0, 1, 3, 2)) + bias                    # (B,P,Fo,N)
    y = jnp.maximum(y, 0.0)
    y = jnp.transpose(y, (0, 3, 1, 2)).reshape(B, N, P * Fo).transpose(0, 2, 1)
    return y


if __name__ == "__main__":
    # matched full-f32 MXU precision for both the kernel dots and the reference
    jax.config.update("jax_default_matmul_precision", "highest")

    B, N = 2, 16            # batch, number of nodes (agents)
    G_in, F_out = 5, 8      # in_features, out_features
    heads, taps = 2, 3

    key = jax.random.PRNGKey(0)
    kx, ks, kp = jax.random.split(key, 3)

    x = jax.random.normal(kx, (B, G_in, N), dtype=jnp.float32)

    # deterministic synthetic adjacency-style GSO: symmetric 0/1 + self loops
    adj = (jax.random.uniform(ks, (B, N, N)) > 0.5).astype(jnp.float32)
    adj = jnp.maximum(adj, jnp.transpose(adj, (0, 2, 1)))
    S = jnp.minimum(adj + jnp.eye(N, dtype=jnp.float32)[None], 1.0)

    # f32 path with exact softmax division (exact module semantics)
    model = GatGSOPallas(in_features=G_in, out_features=F_out,
                         hidden_features=(), graph_filter_taps=(taps,),
                         attention_heads=(heads,), attention_concat=True,
                         key=kp, matmul_dtype=jnp.float32,
                         approx_reciprocal=False)
    model.set_gso(S)
    y = jax.block_until_ready(model(x))
    assert y.shape == (B, heads * F_out, N), y.shape

    p = model.params[0]
    y_ref = _ref_layer(x, model.S, p["weight"], p["filter_weight"], p["bias"], p["K"])
    max_err = float(jnp.max(jnp.abs(y - y_ref)))
    assert jnp.allclose(y, y_ref, atol=2e-3, rtol=2e-3), max_err

    # bf16 MXU path (perf mode): matmul operands in bf16, f32 accumulation,
    # softmax / mask math in f32.  Checked with a relative-Frobenius bound.
    model_bf16 = GatGSOPallas(in_features=G_in, out_features=F_out,
                              hidden_features=(), graph_filter_taps=(taps,),
                              attention_heads=(heads,), attention_concat=True,
                              key=kp, matmul_dtype=jnp.bfloat16,
                              approx_reciprocal=False)
    model_bf16.set_gso(S)
    y16 = jax.block_until_ready(model_bf16(x))
    assert y16.shape == (B, heads * F_out, N), y16.shape
    rel_err = float(jnp.linalg.norm(y16 - y_ref) / jnp.linalg.norm(y_ref))
    assert rel_err < 5e-2, rel_err

    print("KERNEL_OK")
</pallas_src>

<mosaic_0001>
module attributes {stable_mosaic.version = 11 : i64} {
  func.func @_gat_head_kernel(%arg0: i32, %arg1: i32, %arg2: memref<1x8x128xf32, #tpu.memory_space<vmem>>, %arg3: memref<1x128x8xf32, #tpu.memory_space<vmem>>, %arg4: memref<1x128x128xi8, #tpu.memory_space<vmem>>, %arg5: memref<1x1x8x8xf32, #tpu.memory_space<vmem>>, %arg6: memref<1x8x24xf32, #tpu.memory_space<vmem>>, %arg7: memref<8x1xf32, #tpu.memory_space<vmem>>, %arg8: memref<1x1x8x128xf32, #tpu.memory_space<vmem>>, %arg9: memref<24x128xf32, #tpu.memory_space<vmem>>) attributes {dimension_semantics = [#tpu.dimension_semantics<parallel>, #tpu.dimension_semantics<parallel>], iteration_bounds = array<i64: 2, 2>, scalar_prefetch = 0 : i64, scratch_operands = 1 : i64, tpu.core_type = #tpu.core_type<tc>, window_params = [{transform_indices = @transform_0, window_bounds = array<i64: 1, 8, 128>}, {transform_indices = @transform_1, window_bounds = array<i64: 1, 128, 8>}, {transform_indices = @transform_2, window_bounds = array<i64: 1, 128, 128>}, {transform_indices = @transform_3, window_bounds = array<i64: 1, 1, 8, 8>}, {transform_indices = @transform_4, window_bounds = array<i64: 1, 8, 24>}, {pipeline_mode = #tpu.pipeline_mode<synchronous>, transform_indices = @transform_5, window_bounds = array<i64: 8, 1>}, {transform_indices = @transform_6, window_bounds = array<i64: 1, 1, 8, 128>}]} {
    %c0 = arith.constant 0 : index
    %c0_0 = arith.constant 0 : index
    %c0_1 = arith.constant 0 : index
    %0 = vector.load %arg2[%c0, %c0_0, %c0_1] : memref<1x8x128xf32, #tpu.memory_space<vmem>>, vector<1x8x128xf32>
    %1 = vector.shape_cast %0 : vector<1x8x128xf32> to vector<8x128xf32>
    %c0_2 = arith.constant 0 : index
    %c0_3 = arith.constant 0 : index
    %c0_4 = arith.constant 0 : index
    %2 = vector.load %arg3[%c0_2, %c0_3, %c0_4] : memref<1x128x8xf32, #tpu.memory_space<vmem>>, vector<1x128x8xf32>
    %3 = vector.shape_cast %2 : vector<1x128x8xf32> to vector<128x8xf32>
    %c0_5 = arith.constant 0 : index
    %c0_6 = arith.constant 0 : index
    %c0_7 = arith.constant 0 : index
    %4 = vector.load %arg4[%c0_5, %c0_6, %c0_7] : memref<1x128x128xi8, #tpu.memory_space<vmem>>, vector<1x128x128xi8>
    %5 = vector.shape_cast %4 : vector<1x128x128xi8> to vector<128x128xi8>
    %6 = arith.sitofp %5 : vector<128x128xi8> to vector<128x128xf32>
    %cst = arith.constant 5.000000e-01 : f32
    %7 = vector.broadcast %cst : f32 to vector<128x128xf32>
    %8 = arith.cmpf ogt, %6, %7 : vector<128x128xf32>
    %c0_8 = arith.constant 0 : index
    %c0_9 = arith.constant 0 : index
    %c0_10 = arith.constant 0 : index
    %c0_11 = arith.constant 0 : index
    %9 = vector.load %arg5[%c0_8, %c0_9, %c0_10, %c0_11] : memref<1x1x8x8xf32, #tpu.memory_space<vmem>>, vector<1x1x8x8xf32>
    %10 = vector.shape_cast %9 : vector<1x1x8x8xf32> to vector<8x8xf32>
    %cst_12 = arith.constant dense<0.000000e+00> : vector<8x128xf32>
    %11 = tpu.matmul %10, %1, %cst_12 {dimension_numbers = #tpu.dot_dimension_numbers<[1], [0], [0], [1], [0, 0, 1, 1], [], []>, precision = #tpu.contract_precision<fp32>} : vector<8x8xf32>, vector<8x128xf32>, vector<8x128xf32> -> vector<8x128xf32>
    %cst_13 = arith.constant dense<0.000000e+00> : vector<128x128xf32>
    %12 = tpu.matmul %3, %11, %cst_13 {dimension_numbers = #tpu.dot_dimension_numbers<[1], [0], [0], [1], [0, 0, 1, 1], [], []>, precision = #tpu.contract_precision<fp32>} : vector<128x8xf32>, vector<8x128xf32>, vector<128x128xf32> -> vector<128x128xf32>
    %cst_14 = arith.constant 0.000000e+00 : f32
    %13 = vector.broadcast %cst_14 : f32 to vector<128x128xf32>
    %14 = arith.cmpf oge, %12, %13 : vector<128x128xf32>
    %cst_15 = arith.constant 2.000000e-01 : f32
    %15 = vector.broadcast %cst_15 : f32 to vector<128x128xf32>
    %16 = arith.mulf %15, %12 : vector<128x128xf32>
    %17 = arith.select %14, %12, %16 : vector<128x128xi1>, vector<128x128xf32>
    %cst_16 = arith.constant -9.99999995E+11 : f32
    %18 = vector.broadcast %cst_16 : f32 to vector<128x128xf32>
    %19 = arith.select %8, %17, %18 : vector<128x128xi1>, vector<128x128xf32>
    %cst_17 = arith.constant dense<0xFF800000> : vector<128xf32>
    %20 = vector.multi_reduction <maximumf>, %19, %cst_17 [1] : vector<128x128xf32> to vector<128xf32>
    %21 = vector.shape_cast %20 : vector<128xf32> to vector<128x1xf32>
    %22 = vector.broadcast %21 : vector<128x1xf32> to vector<128x128xf32>
    %23 = arith.subf %19, %22 : vector<128x128xf32>
    %24 = math.exp %23 : vector<128x128xf32>
    %cst_18 = arith.constant dense<0.000000e+00> : vector<128xf32>
    %25 = vector.multi_reduction <add>, %24, %cst_18 [1] : vector<128x128xf32> to vector<128xf32>
    %26 = vector.shape_cast %25 : vector<128xf32> to vector<128x1xf32>
    %27 = vector.broadcast %26 : vector<128x1xf32> to vector<128x128xf32>
    %28 = arith.divf %24, %27 : vector<128x128xf32>
    %cst_19 = arith.constant 0.000000e+00 : f32
    %29 = vector.broadcast %cst_19 : f32 to vector<128x128xf32>
    %30 = arith.select %8, %28, %29 : vector<128x128xi1>, vector<128x128xf32>
    %c0_20 = arith.constant 0 : index
    %c0_21 = arith.constant 0 : index
    %31 = vector.load %arg9[%c0_20, %c0_21] : memref<24x128xf32, #tpu.memory_space<vmem>>, vector<8x128xf32>
    tpu.vector_store %arg9[%c0_20, %c0_21], %1 {strides = array<i32>} : memref<24x128xf32, #tpu.memory_space<vmem>>, vector<8x128xf32>,
    %cst_22 = arith.constant dense<0.000000e+00> : vector<8x128xf32>
    %32 = tpu.matmul %1, %30, %cst_22 {dimension_numbers = #tpu.dot_dimension_numbers<[1], [0], [0], [1], [0, 0, 1, 1], [], []>, precision = #tpu.contract_precision<fp32>} : vector<8x128xf32>, vector<128x128xf32>, vector<8x128xf32> -> vector<8x128xf32>
    %c8 = arith.constant 8 : index
    %c0_23 = arith.constant 0 : index
    %33 = vector.load %arg9[%c8, %c0_23] : memref<24x128xf32, #tpu.memory_space<vmem>>, vector<8x128xf32>
    tpu.vector_store %arg9[%c8, %c0_23], %32 {strides = array<i32>} : memref<24x128xf32, #tpu.memory_space<vmem>>, vector<8x128xf32>,
    %cst_24 = arith.constant dense<0.000000e+00> : vector<8x128xf32>
    %34 = tpu.matmul %32, %30, %cst_24 {dimension_numbers = #tpu.dot_dimension_numbers<[1], [0], [0], [1], [0, 0, 1, 1], [], []>, precision = #tpu.contract_precision<fp32>} : vector<8x128xf32>, vector<128x128xf32>, vector<8x128xf32> -> vector<8x128xf32>
    %c16 = arith.constant 16 : index
    %c0_25 = arith.constant 0 : index
    %35 = vector.load %arg9[%c16, %c0_25] : memref<24x128xf32, #tpu.memory_space<vmem>>, vector<8x128xf32>
    tpu.vector_store %arg9[%c16, %c0_25], %34 {strides = array<i32>} : memref<24x128xf32, #tpu.memory_space<vmem>>, vector<8x128xf32>,
    %c0_26 = arith.constant 0 : index
    %c0_27 = arith.constant 0 : index
    %c0_28 = arith.constant 0 : index
    %36 = vector.load %arg6[%c0_26, %c0_27, %c0_28] : memref<1x8x24xf32, #tpu.memory_space<vmem>>, vector<1x8x24xf32>
    %37 = vector.shape_cast %36 : vector<1x8x24xf32> to vector<8x24xf32>
    %c0_29 = arith.constant 0 : index
    %c0_30 = arith.constant 0 : index
    %38 = vector.load %arg9[%c0_29, %c0_30] : memref<24x128xf32, #tpu.memory_space<vmem>>, vector<24x128xf32>
    %cst_31 = arith.constant dense<0.000000e+00> : vector<8x128xf32>
    %39 = tpu.matmul %37, %38, %cst_31 {dimension_numbers = #tpu.dot_dimension_numbers<[1], [0], [0], [1], [0, 0, 1, 1], [], []>, precision = #tpu.contract_precision<fp32>} : vector<8x24xf32>, vector<24x128xf32>, vector<8x128xf32> -> vector<8x128xf32>
    %c0_32 = arith.constant 0 : index
    %c0_33 = arith.constant 0 : index
    %40 = vector.load %arg7[%c0_32, %c0_33] : memref<8x1xf32, #tpu.memory_space<vmem>>, vector<8x1xf32>
    %41 = vector.broadcast %40 : vector<8x1xf32> to vector<8x128xf32>
    %42 = arith.addf %39, %41 : vector<8x128xf32>
    %cst_34 = arith.constant 0.000000e+00 : f32
    %43 = vector.broadcast %cst_34 : f32 to vector<8x128xf32>
    %44 = arith.maximumf %42, %43 : vector<8x128xf32>
    %c0_35 = arith.constant 0 : index
    %c0_36 = arith.constant 0 : index
    %c0_37 = arith.constant 0 : index
    %c0_38 = arith.constant 0 : index
    %45 = vector.load %arg8[%c0_35, %c0_36, %c0_37, %c0_38] : memref<1x1x8x128xf32, #tpu.memory_space<vmem>>, vector<1x1x8x128xf32>
    %46 = vector.shape_cast %45 : vector<1x1x8x128xf32> to vector<8x128xf32>
    %47 = vector.shape_cast %44 : vector<8x128xf32> to vector<1x1x8x128xf32>
    tpu.vector_store %arg8[%c0_35, %c0_36, %c0_37, %c0_38], %47 {strides = array<i32>} : memref<1x1x8x128xf32, #tpu.memory_space<vmem>>, vector<1x1x8x128xf32>,
    return
  }
  func.func @transform_0(%arg0: i32, %arg1: i32) -> (i32, i32, i32) {
    %c0_i32 = arith.constant 0 : i32
    %c0_i32_0 = arith.constant 0 : i32
    %c0_i32_1 = arith.constant 0 : i32
    return %arg0, %c0_i32, %c0_i32_0 : i32, i32, i32
  }
  func.func @transform_1(%arg0: i32, %arg1: i32) -> (i32, i32, i32) {
    %c0_i32 = arith.constant 0 : i32
    %c0_i32_0 = arith.constant 0 : i32
    %c0_i32_1 = arith.constant 0 : i32
    return %arg0, %c0_i32, %c0_i32_0 : i32, i32, i32
  }
  func.func @transform_2(%arg0: i32, %arg1: i32) -> (i32, i32, i32) {
    %c0_i32 = arith.constant 0 : i32
    %c0_i32_0 = arith.constant 0 : i32
    %c0_i32_1 = arith.constant 0 : i32
    return %arg0, %c0_i32, %c0_i32_0 : i32, i32, i32
  }
  func.func @transform_3(%arg0: i32, %arg1: i32) -> (i32, i32, i32, i32) {
    %c0_i32 = arith.constant 0 : i32
    %c0_i32_0 = arith.constant 0 : i32
    %c0_i32_1 = arith.constant 0 : i32
    %c0_i32_2 = arith.constant 0 : i32
    return %arg1, %c0_i32, %c0_i32_0, %c0_i32_1 : i32, i32, i32, i32
  }
  func.func @transform_4(%arg0: i32, %arg1: i32) -> (i32, i32, i32) {
    %c0_i32 = arith.constant 0 : i32
    %c0_i32_0 = arith.constant 0 : i32
    %c0_i32_1 = arith.constant 0 : i32
    return %arg1, %c0_i32, %c0_i32_0 : i32, i32, i32
  }
  func.func @transform_5(%arg0: i32, %arg1: i32) -> (i32, i32) {
    %c0_i32 = arith.constant 0 : i32
    %c0_i32_0 = arith.constant 0 : i32
    %c0_i32_1 = arith.constant 0 : i32
    return %c0_i32, %c0_i32_0 : i32, i32
  }
  func.func @transform_6(%arg0: i32, %arg1: i32) -> (i32, i32, i32, i32) {
    %c0_i32 = arith.constant 0 : i32
    %c0_i32_0 = arith.constant 0 : i32
    %c0_i32_1 = arith.constant 0 : i32
    return %arg0, %arg1, %c0_i32, %c0_i32_0 : i32, i32, i32, i32
  }
}

</mosaic_0001>

<llo_original>
// kernel: tpu_custom_call.1
$region0: #{tpu_custom_call.1}
  #allocation0 [shape = 'u32[]', space=smem, size = 0x4, offset = 0x4, fixed_abs, tag = 'smem constant byte address 0x4 - core index']
  #allocation1 [shape = 'u32[144,128]{1,0:T(1,128)}', space=vmem, size = 0x12000, scoped, tag = 'internal scratch']
  #allocation2 [shape = 'f32[24,128]{1,0:T(8,128)}', space=vmem, size = 0x3000, scoped, tag = 'scratch operand']
  %s0 = inlined_call_operand.vmem [shape: f32[2,8,128], index: 0, kind: input, shape index: {}]
  %s1 = inlined_call_operand.vmem [shape: f32[2,128,8], index: 1, kind: input, shape index: {}]
  %s2 = inlined_call_operand.vmem [shape: s8[2,128,128], index: 2, kind: input, shape index: {}]
  %s3 = inlined_call_operand.vmem [shape: f32[2,1,8,8], index: 3, kind: input, shape index: {}]
  %s4 = inlined_call_operand.vmem [shape: f32[2,8,24], index: 4, kind: input, shape index: {}]
  %s5 = inlined_call_operand.vmem [shape: f32[8,1], index: 5, kind: input, shape index: {}]
  %s6 = inlined_call_operand.hbm [shape: f32[2,2,8,128], index: 6, kind: output, shape index: {}]
  %s7 = sld [smem:[#allocation0]]
  $region57: #{tpu_custom_call.1} parent=0
    _
  %s9 = ssub.s32 1, %s7
  %s10 = scalar_select 0, %s9, %s7
  $region1: #{tpu_custom_call.1} parent=0
    #allocation3 [shape = 'u8[8192]{0}', space=vmem, size = 0x2000, scoped, tag = 'output window, operand 0']
    #allocation4 [shape = 's32[2]{0}', space=sflag, size = 0x8, scoped, tag = 'scoped memory for tpu_custom_call.1']
    %11 = vsyncpa [#allocation4], 0
    %s12 = scalar_lea.sflag [#allocation4], 1
    %13 = vsyncpa %s12, 0
    loop: start=0, step=1, limit=6
    $region2: #{tpu_custom_call.1} parent=1 // loop_pre_header
      _
    $region3: #{tpu_custom_call.1} parent=1 // loop_header
      %s15 = sphi 0, %s19
      %p16 = scmp.ge.s32.totalorder %s15, 6
      %s22 = sphi 0, %s34
      %s23 = sphi 0, %s30
      %s24 = sphi 0, %s22
      %s25 = sphi 0, %s23
      %s26 = sphi 0, %s24
      %s27 = sphi 0, %s25
      %s37 = sphi 0, %s39
      %s40 = sphi 0, %s37
      %s41 = sphi 0, %s40
      %s57 = sphi 0, %s41
      %s63 = sphi 0, %s65
      %s66 = sphi 0, %s63
      %s67 = sphi 0, %s66
      %s83 = sphi 0, %s67
      %s89 = sphi 0, %s91
      %s92 = sphi 0, %s89
      %s93 = sphi 0, %s92
      %s109 = sphi 0, %s93
      %s115 = sphi 0, %s117
      %s118 = sphi 0, %s115
      %s119 = sphi 0, %s118
      %s135 = sphi 0, %s119
      %s141 = sphi 0, %s143
      %s144 = sphi 0, %s141
      %s145 = sphi 0, %s144
      %s161 = sphi 0, %s145
      %s165 = sphi 0, %s165
      %s167 = sphi 0, %s165
      %s168 = sphi 0, %s167
      %s182 = sphi 0, %s168
      %s190 = sphi 0, %s192
      %s193 = sphi 0, %s190
      %s194 = sphi 0, %s193
      %s210 = sphi 0, %s194
    $region4: #{tpu_custom_call.1} parent=1 // loop_header_branch
      %18 = sbr.rel (%p16) target = $region8
    $region5: #{tpu_custom_call.1} parent=1 // loop_body
      %s20 = ssub.s32 %s15, 1
      %s21 = ssub.s32 %s15, 2
      %s28 = sadd.s32 1, %s23
      %p29 = scmp.ge.s32.totalorder %s28, 2
      %s30 = scalar_select %p29, 0, %s28
      %s31 = sadd.s32 1, %s22
      %s32 = scalar_select %p29, %s31, %s22
      %p33 = scmp.ge.s32.totalorder %s32, 2
      %s34 = scalar_select %p33, 0, %s32
      %s35 = ssub.s32 %s22, %s34
      %p36 = scmp.eq.s32.totalorder %s35, 0
      %s38 = sadd.s32 %s37, 1
      %s39 = scalar_select %p36, %s37, %s38
      %p42 = pneg %p36
      %p43 = scmp.eq.s32.totalorder %s15, 3
      %p44 = por %p42, %p43
      %p45 = scmp.ne.s32.totalorder %s37, %s40
      %p46 = scmp.eq.s32.totalorder %s15, 0
      %p47 = por %p45, %p46
      %p48 = scmp.ne.s32.totalorder %s37, %s40
      %p49 = scmp.eq.s32.totalorder %s20, 3
      %p50 = por %p48, %p49
      %p51 = scmp.ne.s32.totalorder %s40, %s41
      %p52 = scmp.eq.s32.totalorder %s20, 0
      %p53 = por %p51, %p52
      %p54 = scmp.ne.s32.totalorder %s40, %s41
      %p55 = scmp.eq.s32.totalorder %s21, 3
      %p56 = por %p54, %p55
      %p58 = scmp.ne.s32.totalorder %s41, %s57
      %p59 = scmp.eq.s32.totalorder %s21, 0
      %p60 = por %p58, %p59
      %s61 = ssub.s32 %s22, %s34
      %p62 = scmp.eq.s32.totalorder %s61, 0
      %s64 = sadd.s32 %s63, 1
      %s65 = scalar_select %p62, %s63, %s64
      %p68 = pneg %p62
      %p69 = scmp.eq.s32.totalorder %s15, 3
      %p70 = por %p68, %p69
      %p71 = scmp.ne.s32.totalorder %s63, %s66
      %p72 = scmp.eq.s32.totalorder %s15, 0
      %p73 = por %p71, %p72
      %p74 = scmp.ne.s32.totalorder %s63, %s66
      %p75 = scmp.eq.s32.totalorder %s20, 3
      %p76 = por %p74, %p75
      %p77 = scmp.ne.s32.totalorder %s66, %s67
      %p78 = scmp.eq.s32.totalorder %s20, 0
      %p79 = por %p77, %p78
      %p80 = scmp.ne.s32.totalorder %s66, %s67
      %p81 = scmp.eq.s32.totalorder %s21, 3
      %p82 = por %p80, %p81
      %p84 = scmp.ne.s32.totalorder %s67, %s83
      %p85 = scmp.eq.s32.totalorder %s21, 0
      %p86 = por %p84, %p85
      %s87 = ssub.s32 %s22, %s34
      %p88 = scmp.eq.s32.totalorder %s87, 0
      %s90 = sadd.s32 %s89, 1
      %s91 = scalar_select %p88, %s89, %s90
      %p94 = pneg %p88
      %p95 = scmp.eq.s32.totalorder %s15, 3
      %p96 = por %p94, %p95
      %p97 = scmp.ne.s32.totalorder %s89, %s92
      %p98 = scmp.eq.s32.totalorder %s15, 0
      %p99 = por %p97, %p98
      %p100 = scmp.ne.s32.totalorder %s89, %s92
      %p101 = scmp.eq.s32.totalorder %s20, 3
      %p102 = por %p100, %p101
      %p103 = scmp.ne.s32.totalorder %s92, %s93
      %p104 = scmp.eq.s32.totalorder %s20, 0
      %p105 = por %p103, %p104
      %p106 = scmp.ne.s32.totalorder %s92, %s93
      %p107 = scmp.eq.s32.totalorder %s21, 3
      %p108 = por %p106, %p107
      %p110 = scmp.ne.s32.totalorder %s93, %s109
      %p111 = scmp.eq.s32.totalorder %s21, 0
      %p112 = por %p110, %p111
      %s113 = ssub.s32 %s23, %s30
      %p114 = scmp.eq.s32.totalorder %s113, 0
      %s116 = sadd.s32 %s115, 1
      %s117 = scalar_select %p114, %s115, %s116
      %p120 = pneg %p114
      %p121 = scmp.eq.s32.totalorder %s15, 3
      %p122 = por %p120, %p121
      %p123 = scmp.ne.s32.totalorder %s115, %s118
      %p124 = scmp.eq.s32.totalorder %s15, 0
      %p125 = por %p123, %p124
      %p126 = scmp.ne.s32.totalorder %s115, %s118
      %p127 = scmp.eq.s32.totalorder %s20, 3
      %p128 = por %p126, %p127
      %p129 = scmp.ne.s32.totalorder %s118, %s119
      %p130 = scmp.eq.s32.totalorder %s20, 0
      %p131 = por %p129, %p130
      %p132 = scmp.ne.s32.totalorder %s118, %s119
      %p133 = scmp.eq.s32.totalorder %s21, 3
      %p134 = por %p132, %p133
      %p136 = scmp.ne.s32.totalorder %s119, %s135
      %p137 = scmp.eq.s32.totalorder %s21, 0
      %p138 = por %p136, %p137
      %s139 = ssub.s32 %s23, %s30
      %p140 = scmp.eq.s32.totalorder %s139, 0
      %s142 = sadd.s32 %s141, 1
      %s143 = scalar_select %p140, %s141, %s142
      %p146 = pneg %p140
      %p147 = scmp.eq.s32.totalorder %s15, 3
      %p148 = por %p146, %p147
      %p149 = scmp.ne.s32.totalorder %s141, %s144
      %p150 = scmp.eq.s32.totalorder %s15, 0
      %p151 = por %p149, %p150
      %p152 = scmp.ne.s32.totalorder %s141, %s144
      %p153 = scmp.eq.s32.totalorder %s20, 3
      %p154 = por %p152, %p153
      %p155 = scmp.ne.s32.totalorder %s144, %s145
      %p156 = scmp.eq.s32.totalorder %s20, 0
      %p157 = por %p155, %p156
      %p158 = scmp.ne.s32.totalorder %s144, %s145
      %p159 = scmp.eq.s32.totalorder %s21, 3
      %p160 = por %p158, %p159
      %p162 = scmp.ne.s32.totalorder %s145, %s161
      %p163 = scmp.eq.s32.totalorder %s21, 0
      %p164 = por %p162, %p163
      %s166 = sadd.s32 %s165, 1
      %p169 = scmp.eq.s32.totalorder %s15, 3
      %p170 = scmp.ne.s32.totalorder %s165, %s167
      %p171 = scmp.eq.s32.totalorder %s15, 0
      %p172 = por %p170, %p171
      %p173 = scmp.ne.s32.totalorder %s165, %s167
      %p174 = scmp.eq.s32.totalorder %s20, 3
      %p175 = por %p173, %p174
      %p176 = scmp.ne.s32.totalorder %s167, %s168
      %p177 = scmp.eq.s32.totalorder %s20, 0
      %p178 = por %p176, %p177
      %p179 = scmp.ne.s32.totalorder %s167, %s168
      %p180 = scmp.eq.s32.totalorder %s21, 3
      %p181 = por %p179, %p180
      %p183 = scmp.ne.s32.totalorder %s168, %s182
      %p184 = scmp.eq.s32.totalorder %s21, 0
      %p185 = por %p183, %p184
      %s186 = ssub.s32 %s22, %s34
      %s187 = ssub.s32 %s23, %s30
      %s188 = sor.u32 %s186, %s187
      %p189 = scmp.eq.s32.totalorder %s188, 0
      %s191 = sadd.s32 %s190, 1
      %s192 = scalar_select %p189, %s190, %s191
      %p195 = pneg %p189
      %p196 = scmp.eq.s32.totalorder %s15, 3
      %p197 = por %p195, %p196
      %p198 = scmp.ne.s32.totalorder %s190, %s193
      %p199 = scmp.eq.s32.totalorder %s15, 0
      %p200 = por %p198, %p199
      %p201 = scmp.ne.s32.totalorder %s190, %s193
      %p202 = scmp.eq.s32.totalorder %s20, 3
      %p203 = por %p201, %p202
      %p204 = scmp.ne.s32.totalorder %s193, %s194
      %p205 = scmp.eq.s32.totalorder %s20, 0
      %p206 = por %p204, %p205
      %p207 = scmp.ne.s32.totalorder %s193, %s194
      %p208 = scmp.eq.s32.totalorder %s21, 3
      %p209 = por %p207, %p208
      %p211 = scmp.ne.s32.totalorder %s194, %s210
      %p212 = scmp.eq.s32.totalorder %s21, 0
      %p213 = por %p211, %p212
      %p214 = scmp.le.s32.totalorder 1, %s15
      %p215 = scmp.lt.s32.totalorder %s15, 5
      %p216 = pnand %p214, %p215
      %p217 = pneg %p216
      // Predicated region
      $region9: #{tpu_custom_call.1} parent=5 // pred_check
        _
      $region10: #{tpu_custom_call.1} parent=5 // pred_check_branch
        %219 = sbr.rel (%p216) target = $region12
      $region11: #{tpu_custom_call.1} parent=5 // pred_region
        %s220 = ssub.s32 %s15, 1
        // Predicated region
        $region13: #{tpu_custom_call.1} parent=11 // pred_check
          %p221 = pneg %p178
        $region14: #{tpu_custom_call.1} parent=11 // pred_check_branch
          %223 = sbr.rel (%p221) target = $region16
        $region15: #{tpu_custom_call.1} parent=11 // pred_region
          _
        $region16: #{tpu_custom_call.1} parent=11 // pred_fallthru
          _
      $region12: #{tpu_custom_call.1} parent=5 // pred_fallthru
        _
      %p224 = scmp.lt.s32.totalorder %s15, 4
      // Predicated region
      $region17: #{tpu_custom_call.1} parent=5 // pred_check
        %p225 = pneg %p224
      $region18: #{tpu_custom_call.1} parent=5 // pred_check_branch
        %227 = sbr.rel (%p225) target = $region20
      $region19: #{tpu_custom_call.1} parent=5 // pred_region
        // Predicated region
        $region21: #{tpu_custom_call.1} parent=19 // pred_check
          %p228 = pneg %p47
        $region22: #{tpu_custom_call.1} parent=19 // pred_check_branch
          %230 = sbr.rel (%p228) target = $region24
        $region23: #{tpu_custom_call.1} parent=19 // pred_region
          %p231 = scmp.lt.s32.totalorder %s22, 1
          %s232 = scalar_select %p231, %s22, 1
          %s233 = smul.addr %s232, 8
          %s234 = scalar_lea.vmem %s0, %s233
        $region24: #{tpu_custom_call.1} parent=19 // pred_fallthru
          _
        // Predicated region
        $region25: #{tpu_custom_call.1} parent=19 // pred_check
          %p235 = pneg %p73
        $region26: #{tpu_custom_call.1} parent=19 // pred_check_branch
          %237 = sbr.rel (%p235) target = $region28
        $region27: #{tpu_custom_call.1} parent=19 // pred_region
          %p238 = scmp.lt.s32.totalorder %s22, 1
          %s239 = scalar_select %p238, %s22, 1
          %s240 = smul.addr %s239, 16
          %s241 = smul.addr %s240, 8
          %s242 = scalar_lea.vmem %s1, %s241
        $region28: #{tpu_custom_call.1} parent=19 // pred_fallthru
          _
        // Predicated region
        $region29: #{tpu_custom_call.1} parent=19 // pred_check
          %p243 = pneg %p99
        $region30: #{tpu_custom_call.1} parent=19 // pred_check_branch
          %245 = sbr.rel (%p243) target = $region32
        $region31: #{tpu_custom_call.1} parent=19 // pred_region
          %p246 = scmp.lt.s32.totalorder %s22, 1
          %s247 = scalar_select %p246, %s22, 1
          %s248 = smul.addr %s247, 4
          %s249 = smul.addr %s248, 8
          %s250 = scalar_lea.vmem %s2, %s249
        $region32: #{tpu_custom_call.1} parent=19 // pred_fallthru
          _
        // Predicated region
        $region33: #{tpu_custom_call.1} parent=19 // pred_check
          %p251 = pneg %p125
        $region34: #{tpu_custom_call.1} parent=19 // pred_check_branch
          %253 = sbr.rel (%p251) target = $region36
        $region35: #{tpu_custom_call.1} parent=19 // pred_region
          %p254 = scmp.lt.s32.totalorder %s23, 1
          %s255 = scalar_select %p254, %s23, 1
          %s256 = smul.addr %s255, 8
          %s257 = scalar_lea.vmem %s3, %s256
        $region36: #{tpu_custom_call.1} parent=19 // pred_fallthru
          _
        // Predicated region
        $region37: #{tpu_custom_call.1} parent=19 // pred_check
          %p258 = pneg %p151
        $region38: #{tpu_custom_call.1} parent=19 // pred_check_branch
          %260 = sbr.rel (%p258) target = $region40
        $region39: #{tpu_custom_call.1} parent=19 // pred_region
          %p261 = scmp.lt.s32.totalorder %s23, 1
          %s262 = scalar_select %p261, %s23, 1
          %s263 = smul.addr %s262, 8
          %s264 = scalar_lea.vmem %s4, %s263
        $region40: #{tpu_custom_call.1} parent=19 // pred_fallthru
          _
      $region20: #{tpu_custom_call.1} parent=5 // pred_fallthru
        _
      %p265 = scmp.le.s32.totalorder 1, %s15
      %p266 = scmp.lt.s32.totalorder %s15, 5
      %p267 = pnand %p265, %p266
      %p268 = pneg %p267
      // Predicated region
      $region41: #{tpu_custom_call.1} parent=5 // pred_check
        _
      $region42: #{tpu_custom_call.1} parent=5 // pred_check_branch
        %270 = sbr.rel (%p267) target = $region44
      $region43: #{tpu_custom_call.1} parent=5 // pred_region
        %s271 = ssub.s32 %s15, 1
        %p272 = scmp.lt.s32.totalorder %s24, 1
        %s273 = scalar_select %p272, %s24, 1
        %s274 = smul.addr %s273, 8
        %s275 = scalar_lea.vmem %s0, %s274
        %p276 = pneg %p53
        %p277 = pneg %p50
        %p278 = scmp.lt.s32.totalorder %s24, 1
        %s279 = scalar_select %p278, %s24, 1
        %s280 = smul.addr %s279, 16
        %s281 = smul.addr %s280, 8
        %s282 = scalar_lea.vmem %s1, %s281
        %p283 = pneg %p79
        %p284 = pneg %p76
        %p285 = scmp.lt.s32.totalorder %s24, 1
        %s286 = scalar_select %p285, %s24, 1
        %s287 = smul.addr %s286, 4
        %s288 = smul.addr %s287, 8
        %s289 = scalar_lea.vmem %s2, %s288
        %p290 = pneg %p105
        %p291 = pneg %p102
        %p292 = scmp.lt.s32.totalorder %s25, 1
        %s293 = scalar_select %p292, %s25, 1
        %s294 = smul.addr %s293, 8
        %s295 = scalar_lea.vmem %s3, %s294
        %p296 = pneg %p131
        %p297 = pneg %p128
        %p298 = scmp.lt.s32.totalorder %s25, 1
        %s299 = scalar_select %p298, %s25, 1
        %s300 = smul.addr %s299, 8
        %s301 = scalar_lea.vmem %s4, %s300
        %p302 = pneg %p157
        %p303 = pneg %p154
        %p304 = pneg %p178
        %p305 = pneg %p175
        %p306 = pneg %p206
        %p307 = pneg %p203
        %s308 = sand.u32 %s193, 1
        %s309 = scalar_lea.sflag [#allocation4], %s308
        %s310 = sand.u32 %s193, 1
        %s311 = smul.addr %s310, 8
        %s312 = scalar_lea.vmem [#allocation3], %s311
        %p313 = scmp.lt.s32.totalorder %s24, 1
        %s314 = scalar_select %p313, %s24, 1
        %s315 = smul.addr %s314, 8
        %s316 = scalar_lea.vmem %s0, %s315
        %p317 = scmp.lt.s32.totalorder %s24, 1
        %s318 = scalar_select %p317, %s24, 1
        %s319 = smul.addr %s318, 16
        %s320 = smul.addr %s319, 8
        %s321 = scalar_lea.vmem %s1, %s320
        %p322 = scmp.lt.s32.totalorder %s24, 1
        %s323 = scalar_select %p322, %s24, 1
        %s324 = smul.addr %s323, 4
        %s325 = smul.addr %s324, 8
        %s326 = scalar_lea.vmem %s2, %s325
        %p327 = scmp.lt.s32.totalorder %s25, 1
        %s328 = scalar_select %p327, %s25, 1
        %s329 = smul.addr %s328, 8
        %s330 = scalar_lea.vmem %s3, %s329
        %p331 = scmp.lt.s32.totalorder %s25, 1
        %s332 = scalar_select %p331, %s25, 1
        %s333 = smul.addr %s332, 8
        %s334 = scalar_lea.vmem %s4, %s333
        %v335 = vld [vmem:[%s316] sm:$0xff]
        %v336 = vld [vmem:[%s321] sm:$0xff]
        %v337 = vld [vmem:[%s321 + $0x8] sm:$0xff]
        %v338 = vld [vmem:[%s321 + $0x10] sm:$0xff]
        %v339 = vld [vmem:[%s321 + $0x18] sm:$0xff]
        %v340 = vld [vmem:[%s321 + $0x20] sm:$0xff]
        %v341 = vld [vmem:[%s321 + $0x28] sm:$0xff]
        %v342 = vld [vmem:[%s321 + $0x30] sm:$0xff]
        %v343 = vld [vmem:[%s321 + $0x38] sm:$0xff]
        %v344 = vld [vmem:[%s321 + $0x40] sm:$0xff]
        %v345 = vld [vmem:[%s321 + $0x48] sm:$0xff]
        %v346 = vld [vmem:[%s321 + $0x50] sm:$0xff]
        %v347 = vld [vmem:[%s321 + $0x58] sm:$0xff]
        %v348 = vld [vmem:[%s321 + $0x60] sm:$0xff]
        %v349 = vld [vmem:[%s321 + $0x68] sm:$0xff]
        %v350 = vld [vmem:[%s321 + $0x70] sm:$0xff]
        %v351 = vld [vmem:[%s321 + $0x78] sm:$0xff]
        %v352 = vld [vmem:[%s326] sm:$0xff]
        %v353 = vld [vmem:[%s326 + $0x8] sm:$0xff]
        %v354 = vld [vmem:[%s326 + $0x10] sm:$0xff]
        %v355 = vld [vmem:[%s326 + $0x18] sm:$0xff]
        %v356 = vunpack.c.0.s8 %v352
        %v357 = vunpack.c.1.s8 %v352
        %v358 = vunpack.c.2.s8 %v352
        %v359 = vunpack.c.3.s8 %v352
        %v360 = vunpack.c.0.s8 %v353
        %v361 = vunpack.c.1.s8 %v353
        %v362 = vunpack.c.2.s8 %v353
        %v363 = vunpack.c.3.s8 %v353
        %v364 = vunpack.c.0.s8 %v354
        %v365 = vunpack.c.1.s8 %v354
        %v366 = vunpack.c.2.s8 %v354
        %v367 = vunpack.c.3.s8 %v354
        %v368 = vunpack.c.0.s8 %v355
        %v369 = vunpack.c.1.s8 %v355
        %v370 = vunpack.c.2.s8 %v355
        %v371 = vunpack.c.3.s8 %v355
        %v372 = vcvt.s32.f32 %v356
        %v373 = vcvt.s32.f32 %v357
        %v374 = vcvt.s32.f32 %v358
        %v375 = vcvt.s32.f32 %v359
        %v376 = vcvt.s32.f32 %v360
        %v377 = vcvt.s32.f32 %v361
        %v378 = vcvt.s32.f32 %v362
        %v379 = vcvt.s32.f32 %v363
        %v380 = vcvt.s32.f32 %v364
        %v381 = vcvt.s32.f32 %v365
        %v382 = vcvt.s32.f32 %v366
        %v383 = vcvt.s32.f32 %v367
        %v384 = vcvt.s32.f32 %v368
        %v385 = vcvt.s32.f32 %v369
        %v386 = vcvt.s32.f32 %v370
        %v387 = vcvt.s32.f32 %v371
        %vm388 = vcmp.gt.f32.partialorder %v372, 0.5
        %vm389 = vcmp.gt.f32.partialorder %v373, 0.5
        %vm390 = vcmp.gt.f32.partialorder %v374, 0.5
        %vm391 = vcmp.gt.f32.partialorder %v375, 0.5
        %vm392 = vcmp.gt.f32.partialorder %v376, 0.5
        %vm393 = vcmp.gt.f32.partialorder %v377, 0.5
        %vm394 = vcmp.gt.f32.partialorder %v378, 0.5
        %vm395 = vcmp.gt.f32.partialorder %v379, 0.5
        %vm396 = vcmp.gt.f32.partialorder %v380, 0.5
        %vm397 = vcmp.gt.f32.partialorder %v381, 0.5
        %vm398 = vcmp.gt.f32.partialorder %v382, 0.5
        %vm399 = vcmp.gt.f32.partialorder %v383, 0.5
        %vm400 = vcmp.gt.f32.partialorder %v384, 0.5
        %vm401 = vcmp.gt.f32.partialorder %v385, 0.5
        %vm402 = vcmp.gt.f32.partialorder %v386, 0.5
        %vm403 = vcmp.gt.f32.partialorder %v387, 0.5
        %v404 = vld [vmem:[%s330] sm:$0xff]
        %vm405 = vcmask 64512
        %v407 = vsel %vm405, %v404, 0
        %409 = vmatprep.subr.mxu0 0.0
        %410 = vmatpush1.msra.mxu0 0.0
        %411 = vmatprep.subr.mxu0 0.0
        %412 = vmatpush1.msra.mxu0 0.0
        %413 = vmatprep.subr.mxu0 0.0
        %414 = vmatpush1.msra.mxu0 0.0
        %415 = vmatprep.subr.mxu0 0.0
        %416 = vmatpush1.msra.mxu0 0.0
        %417 = vmatprep.subr.mxu0 0.0
        %418 = vmatpush1.msra.mxu0 0.0
        %419 = vmatprep.subr.mxu0 0.0
        %420 = vmatpush1.msra.mxu0 0.0
        %421 = vmatprep.subr.mxu0 0.0
        %422 = vmatpush1.msra.mxu0 0.0
        %423 = vmatprep.subr.mxu0 0.0
        %424 = vmatpush1.msra.mxu0 0.0
        %425 = vmatprep.subr.mxu0 0.0
        %426 = vmatpush1.msra.mxu0 0.0
        %427 = vmatprep.subr.mxu0 0.0
        %428 = vmatpush1.msra.mxu0 0.0
        %429 = vmatprep.subr.mxu0 0.0
        %430 = vmatpush1.msra.mxu0 0.0
        %431 = vmatprep.subr.mxu0 0.0
        %432 = vmatpush1.msra.mxu0 0.0
        %433 = vmatprep.subr.mxu0 0.0
        %434 = vmatpush1.msra.mxu0 0.0
        %435 = vmatprep.subr.mxu0 0.0
        %436 = vmatpush1.msra.mxu0 0.0
        %437 = vmatprep.subr.mxu0 0.0
        %438 = vmatpush1.msra.mxu0 0.0
        %439 = vmatprep.subr.mxu0 0.0
        %v440 = vand.u32 %v335, 4294901760
        %441 = vmatpush1.msra.mxu0 %v440
        %442 = vmatprep.subr.mxu0 0.0
        %443 = vmatpush2.msra.mxu0 0.0
        %444 = vmatprep.subr.mxu0 0.0
        %445 = vmatpush2.msra.mxu0 0.0
        %446 = vmatprep.subr.mxu0 0.0
        %447 = vmatpush2.msra.mxu0 0.0
        %448 = vmatprep.subr.mxu0 0.0
        %449 = vmatpush2.msra.mxu0 0.0
        %450 = vmatprep.subr.mxu0 0.0
        %451 = vmatpush2.msra.mxu0 0.0
        %452 = vmatprep.subr.mxu0 0.0
        %453 = vmatpush2.msra.mxu0 0.0
        %454 = vmatprep.subr.mxu0 0.0
        %455 = vmatpush2.msra.mxu0 0.0
        %456 = vmatprep.subr.mxu0 0.0
        %457 = vmatpush2.msra.mxu0 0.0
        %458 = vmatprep.subr.mxu0 0.0
        %459 = vmatpush2.msra.mxu0 0.0
        %460 = vmatprep.subr.mxu0 0.0
        %461 = vmatpush2.msra.mxu0 0.0
        %462 = vmatprep.subr.mxu0 0.0
        %463 = vmatpush2.msra.mxu0 0.0
        %464 = vmatprep.subr.mxu0 0.0
        %465 = vmatpush2.msra.mxu0 0.0
        %466 = vmatprep.subr.mxu0 0.0
        %467 = vmatpush2.msra.mxu0 0.0
        %468 = vmatprep.subr.mxu0 0.0
        %469 = vmatpush2.msra.mxu0 0.0
        %470 = vmatprep.subr.mxu0 0.0
        %471 = vmatpush2.msra.mxu0 0.0
        %472 = vmatprep.subr.mxu0 0.0
        %473 = vmatpush2.msra.mxu0 0.0
        %474 = vmatprep.mubr.f32.mxu0 0.0
        %v475 = vand.u32 %v407, 4294901760
        %v476 = vsub.f32 %v407, %v475
        %v477 = vand.u32 %v476, 4294901760
        %v478 = vsub.f32 %v476, %v477
        %v479 = vand.u32 %v478, 4294901760
        %480 = vmatmul.mubr.f32.gmra.mxu0 %v479
        %v481 = vpop.f32.mrf.mxu0
        %v482 = vadd.f32 0.0, %v481
        %v483 = vpop.f32.mrf.mxu0
        %484 = vdwg.mxu0
        %485 = vmatprep.subr.mxu0 0.0
        %486 = vmatpush1.msra.mxu0 0.0
        %487 = vmatprep.subr.mxu0 0.0
        %488 = vmatpush1.msra.mxu0 0.0
        %489 = vmatprep.subr.mxu0 0.0
        %490 = vmatpush1.msra.mxu0 0.0
        %491 = vmatprep.subr.mxu0 0.0
        %492 = vmatpush1.msra.mxu0 0.0
        %493 = vmatprep.subr.mxu0 0.0
        %494 = vmatpush1.msra.mxu0 0.0
        %495 = vmatprep.subr.mxu0 0.0
        %496 = vmatpush1.msra.mxu0 0.0
        %497 = vmatprep.subr.mxu0 0.0
        %498 = vmatpush1.msra.mxu0 0.0
        %499 = vmatprep.subr.mxu0 0.0
        %500 = vmatpush1.msra.mxu0 0.0
        %501 = vmatprep.subr.mxu0 0.0
        %502 = vmatpush1.msra.mxu0 0.0
        %503 = vmatprep.subr.mxu0 0.0
        %504 = vmatpush1.msra.mxu0 0.0
        %505 = vmatprep.subr.mxu0 0.0
        %506 = vmatpush1.msra.mxu0 0.0
        %507 = vmatprep.subr.mxu0 0.0
        %508 = vmatpush1.msra.mxu0 0.0
        %509 = vmatprep.subr.mxu0 0.0
        %510 = vmatpush1.msra.mxu0 0.0
        %511 = vmatprep.subr.mxu0 0.0
        %512 = vmatpush1.msra.mxu0 0.0
        %513 = vmatprep.subr.mxu0 0.0
        %514 = vmatpush1.msra.mxu0 0.0
        %515 = vmatprep.subr.mxu0 0.0
        %v516 = vand.u32 %v335, 4294901760
        %v517 = vsub.f32 %v335, %v516
        %v518 = vand.u32 %v517, 4294901760
        %v519 = vsub.f32 %v517, %v518
        %v520 = vand.u32 %v519, 4294901760
        %521 = vmatpush1.msra.mxu0 %v520
        %522 = vmatprep.subr.mxu0 0.0
        %523 = vmatpush2.msra.mxu0 0.0
        %524 = vmatprep.subr.mxu0 0.0
        %525 = vmatpush2.msra.mxu0 0.0
        %526 = vmatprep.subr.mxu0 0.0
        %527 = vmatpush2.msra.mxu0 0.0
        %528 = vmatprep.subr.mxu0 0.0
        %529 = vmatpush2.msra.mxu0 0.0
        %530 = vmatprep.subr.mxu0 0.0
        %531 = vmatpush2.msra.mxu0 0.0
        %532 = vmatprep.subr.mxu0 0.0
        %533 = vmatpush2.msra.mxu0 0.0
        %534 = vmatprep.subr.mxu0 0.0
        %535 = vmatpush2.msra.mxu0 0.0
        %536 = vmatprep.subr.mxu0 0.0
        %537 = vmatpush2.msra.mxu0 0.0
        %538 = vmatprep.subr.mxu0 0.0
        %539 = vmatpush2.msra.mxu0 0.0
        %540 = vmatprep.subr.mxu0 0.0
        %541 = vmatpush2.msra.mxu0 0.0
        %542 = vmatprep.subr.mxu0 0.0
        %543 = vmatpush2.msra.mxu0 0.0
        %544 = vmatprep.subr.mxu0 0.0
        %545 = vmatpush2.msra.mxu0 0.0
        %546 = vmatprep.subr.mxu0 0.0
        %547 = vmatpush2.msra.mxu0 0.0
        %548 = vmatprep.subr.mxu0 0.0
        %549 = vmatpush2.msra.mxu0 0.0
        %550 = vmatprep.subr.mxu0 0.0
        %551 = vmatpush2.msra.mxu0 0.0
        %552 = vmatprep.subr.mxu0 0.0
        %553 = vmatpush2.msra.mxu0 0.0
        %554 = vmatprep.mubr.f32.mxu0 0.0
        %v555 = vand.u32 %v407, 4294901760
        %556 = vmatmul.mubr.f32.gmra.mxu0 %v555
        %v557 = vpop.f32.mrf.mxu0
        %v558 = vadd.f32 %v482, %v557
        %v559 = vpop.f32.mrf.mxu0
        %560 = vdwg.mxu0
        %561 = vmatprep.subr.mxu0 0.0
        %562 = vmatpush1.msra.mxu0 0.0
        %563 = vmatprep.subr.mxu0 0.0
        %564 = vmatpush1.msra.mxu0 0.0
        %565 = vmatprep.subr.mxu0 0.0
        %566 = vmatpush1.msra.mxu0 0.0
        %567 = vmatprep.subr.mxu0 0.0
        %568 = vmatpush1.msra.mxu0 0.0
        %569 = vmatprep.subr.mxu0 0.0
        %570 = vmatpush1.msra.mxu0 0.0
        %571 = vmatprep.subr.mxu0 0.0
        %572 = vmatpush1.msra.mxu0 0.0
        %573 = vmatprep.subr.mxu0 0.0
        %574 = vmatpush1.msra.mxu0 0.0
        %575 = vmatprep.subr.mxu0 0.0
        %576 = vmatpush1.msra.mxu0 0.0
        %577 = vmatprep.subr.mxu0 0.0
        %578 = vmatpush1.msra.mxu0 0.0
        %579 = vmatprep.subr.mxu0 0.0
        %580 = vmatpush1.msra.mxu0 0.0
        %581 = vmatprep.subr.mxu0 0.0
        %582 = vmatpush1.msra.mxu0 0.0
        %583 = vmatprep.subr.mxu0 0.0
        %584 = vmatpush1.msra.mxu0 0.0
        %585 = vmatprep.subr.mxu0 0.0
        %586 = vmatpush1.msra.mxu0 0.0
        %587 = vmatprep.subr.mxu0 0.0
        %588 = vmatpush1.msra.mxu0 0.0
        %589 = vmatprep.subr.mxu0 0.0
        %590 = vmatpush1.msra.mxu0 0.0
        %591 = vmatprep.subr.mxu0 0.0
        %v592 = vand.u32 %v335, 4294901760
        %v593 = vsub.f32 %v335, %v592
        %594 = vmatpush1.msra.mxu0 %v593
        %595 = vmatprep.subr.mxu0 0.0
        %596 = vmatpush2.msra.mxu0 0.0
        %597 = vmatprep.subr.mxu0 0.0
        %598 = vmatpush2.msra.mxu0 0.0
        %599 = vmatprep.subr.mxu0 0.0
        %600 = vmatpush2.msra.mxu0 0.0
        %601 = vmatprep.subr.mxu0 0.0
        %602 = vmatpush2.msra.mxu0 0.0
        %603 = vmatprep.subr.mxu0 0.0
        %604 = vmatpush2.msra.mxu0 0.0
        %605 = vmatprep.subr.mxu0 0.0
        %606 = vmatpush2.msra.mxu0 0.0
        %607 = vmatprep.subr.mxu0 0.0
        %608 = vmatpush2.msra.mxu0 0.0
        %609 = vmatprep.subr.mxu0 0.0
        %610 = vmatpush2.msra.mxu0 0.0
        %611 = vmatprep.subr.mxu0 0.0
        %612 = vmatpush2.msra.mxu0 0.0
        %613 = vmatprep.subr.mxu0 0.0
        %614 = vmatpush2.msra.mxu0 0.0
        %615 = vmatprep.subr.mxu0 0.0
        %616 = vmatpush2.msra.mxu0 0.0
        %617 = vmatprep.subr.mxu0 0.0
        %618 = vmatpush2.msra.mxu0 0.0
        %619 = vmatprep.subr.mxu0 0.0
        %620 = vmatpush2.msra.mxu0 0.0
        %621 = vmatprep.subr.mxu0 0.0
        %622 = vmatpush2.msra.mxu0 0.0
        %623 = vmatprep.subr.mxu0 0.0
        %624 = vmatpush2.msra.mxu0 0.0
        %625 = vmatprep.subr.mxu0 0.0
        %626 = vmatpush2.msra.mxu0 0.0
        %627 = vmatprep.mubr.f32.mxu0 0.0
        %v628 = vand.u32 %v407, 4294901760
        %v629 = vsub.f32 %v407, %v628
        %630 = vmatmul.mubr.f32.gmra.mxu0 %v629
        %v631 = vpop.f32.mrf.mxu0
        %v632 = vadd.f32 %v558, %v631
        %v633 = vpop.f32.mrf.mxu0
        %634 = vdwg.mxu0
        %635 = vmatprep.subr.mxu0 0.0
        %636 = vmatpush1.msra.mxu0 0.0
        %637 = vmatprep.subr.mxu0 0.0
        %638 = vmatpush1.msra.mxu0 0.0
        %639 = vmatprep.subr.mxu0 0.0
        %640 = vmatpush1.msra.mxu0 0.0
        %641 = vmatprep.subr.mxu0 0.0
        %642 = vmatpush1.msra.mxu0 0.0
        %643 = vmatprep.subr.mxu0 0.0
        %644 = vmatpush1.msra.mxu0 0.0
        %645 = vmatprep.subr.mxu0 0.0
        %646 = vmatpush1.msra.mxu0 0.0
        %647 = vmatprep.subr.mxu0 0.0
        %648 = vmatpush1.msra.mxu0 0.0
        %649 = vmatprep.subr.mxu0 0.0
        %650 = vmatpush1.msra.mxu0 0.0
        %651 = vmatprep.subr.mxu0 0.0
        %652 = vmatpush1.msra.mxu0 0.0
        %653 = vmatprep.subr.mxu0 0.0
        %654 = vmatpush1.msra.mxu0 0.0
        %655 = vmatprep.subr.mxu0 0.0
        %656 = vmatpush1.msra.mxu0 0.0
        %657 = vmatprep.subr.mxu0 0.0
        %658 = vmatpush1.msra.mxu0 0.0
        %659 = vmatprep.subr.mxu0 0.0
        %660 = vmatpush1.msra.mxu0 0.0
        %661 = vmatprep.subr.mxu0 0.0
        %662 = vmatpush1.msra.mxu0 0.0
        %663 = vmatprep.subr.mxu0 0.0
        %664 = vmatpush1.msra.mxu0 0.0
        %665 = vmatprep.subr.mxu0 0.0
        %v666 = vand.u32 %v335, 4294901760
        %667 = vmatpush1.msra.mxu0 %v666
        %668 = vmatprep.subr.mxu0 0.0
        %669 = vmatpush2.msra.mxu0 0.0
        %670 = vmatprep.subr.mxu0 0.0
        %671 = vmatpush2.msra.mxu0 0.0
        %672 = vmatprep.subr.mxu0 0.0
        %673 = vmatpush2.msra.mxu0 0.0
        %674 = vmatprep.subr.mxu0 0.0
        %675 = vmatpush2.msra.mxu0 0.0
        %676 = vmatprep.subr.mxu0 0.0
        %677 = vmatpush2.msra.mxu0 0.0
        %678 = vmatprep.subr.mxu0 0.0
        %679 = vmatpush2.msra.mxu0 0.0
        %680 = vmatprep.subr.mxu0 0.0
        %681 = vmatpush2.msra.mxu0 0.0
        %682 = vmatprep.subr.mxu0 0.0
        %683 = vmatpush2.msra.mxu0 0.0
        %684 = vmatprep.subr.mxu0 0.0
        %685 = vmatpush2.msra.mxu0 0.0
        %686 = vmatprep.subr.mxu0 0.0
        %687 = vmatpush2.msra.mxu0 0.0
        %688 = vmatprep.subr.mxu0 0.0
        %689 = vmatpush2.msra.mxu0 0.0
        %690 = vmatprep.subr.mxu0 0.0
        %691 = vmatpush2.msra.mxu0 0.0
        %692 = vmatprep.subr.mxu0 0.0
        %693 = vmatpush2.msra.mxu0 0.0
        %694 = vmatprep.subr.mxu0 0.0
        %695 = vmatpush2.msra.mxu0 0.0
        %696 = vmatprep.subr.mxu0 0.0
        %697 = vmatpush2.msra.mxu0 0.0
        %698 = vmatprep.subr.mxu0 0.0
        %699 = vmatpush2.msra.mxu0 0.0
        %700 = vmatprep.mubr.f32.mxu0 0.0
        %v701 = vand.u32 %v407, 4294901760
        %v702 = vsub.f32 %v407, %v701
        %v703 = vand.u32 %v702, 4294901760
        %704 = vmatmul.mubr.f32.gmra.mxu0 %v703
        %v705 = vpop.f32.mrf.mxu0
        %v706 = vadd.f32 %v632, %v705
        %v707 = vpop.f32.mrf.mxu0
        %708 = vdwg.mxu0
        %709 = vmatprep.subr.mxu0 0.0
        %710 = vmatpush1.msra.mxu0 0.0
        %711 = vmatprep.subr.mxu0 0.0
        %712 = vmatpush1.msra.mxu0 0.0
        %713 = vmatprep.subr.mxu0 0.0
        %714 = vmatpush1.msra.mxu0 0.0
        %715 = vmatprep.subr.mxu0 0.0
        %716 = vmatpush1.msra.mxu0 0.0
        %717 = vmatprep.subr.mxu0 0.0
        %718 = vmatpush1.msra.mxu0 0.0
        %719 = vmatprep.subr.mxu0 0.0
        %720 = vmatpush1.msra.mxu0 0.0
        %721 = vmatprep.subr.mxu0 0.0
        %722 = vmatpush1.msra.mxu0 0.0
        %723 = vmatprep.subr.mxu0 0.0
        %724 = vmatpush1.msra.mxu0 0.0
        %725 = vmatprep.subr.mxu0 0.0
        %726 = vmatpush1.msra.mxu0 0.0
        %727 = vmatprep.subr.mxu0 0.0
        %728 = vmatpush1.msra.mxu0 0.0
        %729 = vmatprep.subr.mxu0 0.0
        %730 = vmatpush1.msra.mxu0 0.0
        %731 = vmatprep.subr.mxu0 0.0
        %732 = vmatpush1.msra.mxu0 0.0
        %733 = vmatprep.subr.mxu0 0.0
        %734 = vmatpush1.msra.mxu0 0.0
        %735 = vmatprep.subr.mxu0 0.0
        %736 = vmatpush1.msra.mxu0 0.0
        %737 = vmatprep.subr.mxu0 0.0
        %738 = vmatpush1.msra.mxu0 0.0
        %739 = vmatprep.subr.mxu0 0.0
        %v740 = vand.u32 %v335, 4294901760
        %v741 = vsub.f32 %v335, %v740
        %v742 = vand.u32 %v741, 4294901760
        %743 = vmatpush1.msra.mxu0 %v742
        %744 = vmatprep.subr.mxu0 0.0
        %745 = vmatpush2.msra.mxu0 0.0
        %746 = vmatprep.subr.mxu0 0.0
        %747 = vmatpush2.msra.mxu0 0.0
        %748 = vmatprep.subr.mxu0 0.0
        %749 = vmatpush2.msra.mxu0 0.0
        %750 = vmatprep.subr.mxu0 0.0
        %751 = vmatpush2.msra.mxu0 0.0
        %752 = vmatprep.subr.mxu0 0.0
        %753 = vmatpush2.msra.mxu0 0.0
        %754 = vmatprep.subr.mxu0 0.0
        %755 = vmatpush2.msra.mxu0 0.0
        %756 = vmatprep.subr.mxu0 0.0
        %757 = vmatpush2.msra.mxu0 0.0
        %758 = vmatprep.subr.mxu0 0.0
        %759 = vmatpush2.msra.mxu0 0.0
        %760 = vmatprep.subr.mxu0 0.0
        %761 = vmatpush2.msra.mxu0 0.0
        %762 = vmatprep.subr.mxu0 0.0
        %763 = vmatpush2.msra.mxu0 0.0
        %764 = vmatprep.subr.mxu0 0.0
        %765 = vmatpush2.msra.mxu0 0.0
        %766 = vmatprep.subr.mxu0 0.0
        %767 = vmatpush2.msra.mxu0 0.0
        %768 = vmatprep.subr.mxu0 0.0
        %769 = vmatpush2.msra.mxu0 0.0
        %770 = vmatprep.subr.mxu0 0.0
        %771 = vmatpush2.msra.mxu0 0.0
        %772 = vmatprep.subr.mxu0 0.0
        %773 = vmatpush2.msra.mxu0 0.0
        %774 = vmatprep.subr.mxu0 0.0
        %775 = vmatpush2.msra.mxu0 0.0
        %776 = vmatprep.mubr.f32.mxu0 0.0
        %v777 = vand.u32 %v407, 4294901760
        %778 = vmatmul.mubr.f32.gmra.mxu0 %v777
        %v779 = vpop.f32.mrf.mxu0
        %v780 = vadd.f32 %v706, %v779
        %v781 = vpop.f32.mrf.mxu0
        %782 = vdwg.mxu0
        %783 = vmatprep.subr.mxu0 0.0
        %784 = vmatpush1.msra.mxu0 0.0
        %785 = vmatprep.subr.mxu0 0.0
        %786 = vmatpush1.msra.mxu0 0.0
        %787 = vmatprep.subr.mxu0 0.0
        %788 = vmatpush1.msra.mxu0 0.0
        %789 = vmatprep.subr.mxu0 0.0
        %790 = vmatpush1.msra.mxu0 0.0
        %791 = vmatprep.subr.mxu0 0.0
        %792 = vmatpush1.msra.mxu0 0.0
        %793 = vmatprep.subr.mxu0 0.0
        %794 = vmatpush1.msra.mxu0 0.0
        %795 = vmatprep.subr.mxu0 0.0
        %796 = vmatpush1.msra.mxu0 0.0
        %797 = vmatprep.subr.mxu0 0.0
        %798 = vmatpush1.msra.mxu0 0.0
        %799 = vmatprep.subr.mxu0 0.0
        %800 = vmatpush1.msra.mxu0 0.0
        %801 = vmatprep.subr.mxu0 0.0
        %802 = vmatpush1.msra.mxu0 0.0
        %803 = vmatprep.subr.mxu0 0.0
        %804 = vmatpush1.msra.mxu0 0.0
        %805 = vmatprep.subr.mxu0 0.0
        %806 = vmatpush1.msra.mxu0 0.0
        %807 = vmatprep.subr.mxu0 0.0
        %808 = vmatpush1.msra.mxu0 0.0
        %809 = vmatprep.subr.mxu0 0.0
        %810 = vmatpush1.msra.mxu0 0.0
        %811 = vmatprep.subr.mxu0 0.0
        %812 = vmatpush1.msra.mxu0 0.0
        %813 = vmatprep.subr.mxu0 0.0
        %v814 = vand.u32 %v335, 4294901760
        %815 = vmatpush1.msra.mxu0 %v814
        %816 = vmatprep.subr.mxu0 0.0
        %817 = vmatpush2.msra.mxu0 0.0
        %818 = vmatprep.subr.mxu0 0.0
        %819 = vmatpush2.msra.mxu0 0.0
        %820 = vmatprep.subr.mxu0 0.0
        %821 = vmatpush2.msra.mxu0 0.0
        %822 = vmatprep.subr.mxu0 0.0
        %823 = vmatpush2.msra.mxu0 0.0
        %824 = vmatprep.subr.mxu0 0.0
        %825 = vmatpush2.msra.mxu0 0.0
        %826 = vmatprep.subr.mxu0 0.0
        %827 = vmatpush2.msra.mxu0 0.0
        %828 = vmatprep.subr.mxu0 0.0
        %829 = vmatpush2.msra.mxu0 0.0
        %830 = vmatprep.subr.mxu0 0.0
        %831 = vmatpush2.msra.mxu0 0.0
        %832 = vmatprep.subr.mxu0 0.0
        %833 = vmatpush2.msra.mxu0 0.0
        %834 = vmatprep.subr.mxu0 0.0
        %835 = vmatpush2.msra.mxu0 0.0
        %836 = vmatprep.subr.mxu0 0.0
        %837 = vmatpush2.msra.mxu0 0.0
        %838 = vmatprep.subr.mxu0 0.0
        %839 = vmatpush2.msra.mxu0 0.0
        %840 = vmatprep.subr.mxu0 0.0
        %841 = vmatpush2.msra.mxu0 0.0
        %842 = vmatprep.subr.mxu0 0.0
        %843 = vmatpush2.msra.mxu0 0.0
        %844 = vmatprep.subr.mxu0 0.0
        %845 = vmatpush2.msra.mxu0 0.0
        %846 = vmatprep.subr.mxu0 0.0
        %847 = vmatpush2.msra.mxu0 0.0
        %848 = vmatprep.mubr.f32.mxu0 0.0
        %v849 = vand.u32 %v407, 4294901760
        %850 = vmatmul.mubr.f32.gmra.mxu0 %v849
        %v851 = vpop.f32.mrf.mxu0
        %v852 = vadd.f32 %v780, %v851
        %v853 = vpop.f32.mrf.mxu0
        %854 = vdwg.mxu0
        %v856 = vsel %vm405, %v336, 0
        %v859 = vsel %vm405, %v337, 0
        %v862 = vsel %vm405, %v338, 0
        %v865 = vsel %vm405, %v339, 0
        %v868 = vsel %vm405, %v340, 0
        %v871 = vsel %vm405, %v341, 0
        %v874 = vsel %vm405, %v342, 0
        %v877 = vsel %vm405, %v343, 0
        %v880 = vsel %vm405, %v344, 0
        %v883 = vsel %vm405, %v345, 0
        %v886 = vsel %vm405, %v346, 0
        %v889 = vsel %vm405, %v347, 0
        %v892 = vsel %vm405, %v348, 0
        %v895 = vsel %vm405, %v349, 0
        %v898 = vsel %vm405, %v350, 0
        %v901 = vsel %vm405, %v351, 0
        %903 = vmatprep.subr.mxu0 0.0
        %904 = vmatpush1.msra.mxu0 0.0
        %905 = vmatprep.subr.mxu0 0.0
        %906 = vmatpush1.msra.mxu0 0.0
        %907 = vmatprep.subr.mxu0 0.0
        %908 = vmatpush1.msra.mxu0 0.0
        %909 = vmatprep.subr.mxu0 0.0
        %910 = vmatpush1.msra.mxu0 0.0
        %911 = vmatprep.subr.mxu0 0.0
        %912 = vmatpush1.msra.mxu0 0.0
        %913 = vmatprep.subr.mxu0 0.0
        %914 = vmatpush1.msra.mxu0 0.0
        %915 = vmatprep.subr.mxu0 0.0
        %916 = vmatpush1.msra.mxu0 0.0
        %917 = vmatprep.subr.mxu0 0.0
        %918 = vmatpush1.msra.mxu0 0.0
        %919 = vmatprep.subr.mxu0 0.0
        %920 = vmatpush1.msra.mxu0 0.0
        %921 = vmatprep.subr.mxu0 0.0
        %922 = vmatpush1.msra.mxu0 0.0
        %923 = vmatprep.subr.mxu0 0.0
        %924 = vmatpush1.msra.mxu0 0.0
        %925 = vmatprep.subr.mxu0 0.0
        %926 = vmatpush1.msra.mxu0 0.0
        %927 = vmatprep.subr.mxu0 0.0
        %928 = vmatpush1.msra.mxu0 0.0
        %929 = vmatprep.subr.mxu0 0.0
        %930 = vmatpush1.msra.mxu0 0.0
        %931 = vmatprep.subr.mxu0 0.0
        %932 = vmatpush1.msra.mxu0 0.0
        %933 = vmatprep.subr.mxu0 0.0
        %v934 = vand.u32 %v852, 4294901760
        %935 = vmatpush1.msra.mxu0 %v934
        %936 = vmatprep.subr.mxu0 0.0
        %937 = vmatpush2.msra.mxu0 0.0
        %938 = vmatprep.subr.mxu0 0.0
        %939 = vmatpush2.msra.mxu0 0.0
        %940 = vmatprep.subr.mxu0 0.0
        %941 = vmatpush2.msra.mxu0 0.0
        %942 = vmatprep.subr.mxu0 0.0
        %943 = vmatpush2.msra.mxu0 0.0
        %944 = vmatprep.subr.mxu0 0.0
        %945 = vmatpush2.msra.mxu0 0.0
        %946 = vmatprep.subr.mxu0 0.0
        %947 = vmatpush2.msra.mxu0 0.0
        %948 = vmatprep.subr.mxu0 0.0
        %949 = vmatpush2.msra.mxu0 0.0
        %950 = vmatprep.subr.mxu0 0.0
        %951 = vmatpush2.msra.mxu0 0.0
        %952 = vmatprep.subr.mxu0 0.0
        %953 = vmatpush2.msra.mxu0 0.0
        %954 = vmatprep.subr.mxu0 0.0
        %955 = vmatpush2.msra.mxu0 0.0
        %956 = vmatprep.subr.mxu0 0.0
        %957 = vmatpush2.msra.mxu0 0.0
        %958 = vmatprep.subr.mxu0 0.0
        %959 = vmatpush2.msra.mxu0 0.0
        %960 = vmatprep.subr.mxu0 0.0
        %961 = vmatpush2.msra.mxu0 0.0
        %962 = vmatprep.subr.mxu0 0.0
        %963 = vmatpush2.msra.mxu0 0.0
        %964 = vmatprep.subr.mxu0 0.0
        %965 = vmatpush2.msra.mxu0 0.0
        %966 = vmatprep.subr.mxu0 0.0
        %967 = vmatpush2.msra.mxu0 0.0
        %968 = vmatprep.mubr.f32.mxu0 0.0
        %v969 = vand.u32 %v856, 4294901760
        %v970 = vsub.f32 %v856, %v969
        %v971 = vand.u32 %v970, 4294901760
        %v972 = vsub.f32 %v970, %v971
        %v973 = vand.u32 %v972, 4294901760
        %974 = vmatmul.mubr.f32.gmra.mxu0 %v973
        %v975 = vpop.f32.mrf.mxu0
        %v976 = vadd.f32 0.0, %v975
        %v977 = vpop.f32.mrf.mxu0
        %978 = vmatprep.mubr.f32.mxu0 0.0
        %v979 = vand.u32 %v859, 4294901760
        %v980 = vsub.f32 %v859, %v979
        %v981 = vand.u32 %v980, 4294901760
        %v982 = vsub.f32 %v980, %v981
        %v983 = vand.u32 %v982, 4294901760
        %984 = vmatmul.mubr.f32.gmra.mxu0 %v983
        %v985 = vpop.f32.mrf.mxu0
        %v986 = vadd.f32 0.0, %v985
        %v987 = vpop.f32.mrf.mxu0
        %988 = vmatprep.mubr.f32.mxu0 0.0
        %v989 = vand.u32 %v862, 4294901760
        %v990 = vsub.f32 %v862, %v989
        %v991 = vand.u32 %v990, 4294901760
        %v992 = vsub.f32 %v990, %v991
        %v993 = vand.u32 %v992, 4294901760
        %994 = vmatmul.mubr.f32.gmra.mxu0 %v993
        %v995 = vpop.f32.mrf.mxu0
        %v996 = vadd.f32 0.0, %v995
        %v997 = vpop.f32.mrf.mxu0
        %998 = vmatprep.mubr.f32.mxu0 0.0
        %v999 = vand.u32 %v865, 4294901760
        %v1000 = vsub.f32 %v865, %v999
        %v1001 = vand.u32 %v1000, 4294901760
        %v1002 = vsub.f32 %v1000, %v1001
        %v1003 = vand.u32 %v1002, 4294901760
        %1004 = vmatmul.mubr.f32.gmra.mxu0 %v1003
        %v1005 = vpop.f32.mrf.mxu0
        %v1006 = vadd.f32 0.0, %v1005
        %v1007 = vpop.f32.mrf.mxu0
        %1008 = vmatprep.mubr.f32.mxu0 0.0
        %v1009 = vand.u32 %v868, 4294901760
        %v1010 = vsub.f32 %v868, %v1009
        %v1011 = vand.u32 %v1010, 4294901760
        %v1012 = vsub.f32 %v1010, %v1011
        %v1013 = vand.u32 %v1012, 4294901760
        %1014 = vmatmul.mubr.f32.gmra.mxu0 %v1013
        %v1015 = vpop.f32.mrf.mxu0
        %v1016 = vadd.f32 0.0, %v1015
        %v1017 = vpop.f32.mrf.mxu0
        %1018 = vmatprep.mubr.f32.mxu0 0.0
        %v1019 = vand.u32 %v871, 4294901760
        %v1020 = vsub.f32 %v871, %v1019
        %v1021 = vand.u32 %v1020, 4294901760
        %v1022 = vsub.f32 %v1020, %v1021
        %v1023 = vand.u32 %v1022, 4294901760
        %1024 = vmatmul.mubr.f32.gmra.mxu0 %v1023
        %v1025 = vpop.f32.mrf.mxu0
        %v1026 = vadd.f32 0.0, %v1025
        %v1027 = vpop.f32.mrf.mxu0
        %1028 = vmatprep.mubr.f32.mxu0 0.0
        %v1029 = vand.u32 %v874, 4294901760
        %v1030 = vsub.f32 %v874, %v1029
        %v1031 = vand.u32 %v1030, 4294901760
        %v1032 = vsub.f32 %v1030, %v1031
        %v1033 = vand.u32 %v1032, 4294901760
        %1034 = vmatmul.mubr.f32.gmra.mxu0 %v1033
        %v1035 = vpop.f32.mrf.mxu0
        %v1036 = vadd.f32 0.0, %v1035
        %v1037 = vpop.f32.mrf.mxu0
        %1038 = vmatprep.mubr.f32.mxu0 0.0
        %v1039 = vand.u32 %v877, 4294901760
        %v1040 = vsub.f32 %v877, %v1039
        %v1041 = vand.u32 %v1040, 4294901760
        %v1042 = vsub.f32 %v1040, %v1041
        %v1043 = vand.u32 %v1042, 4294901760
        %1044 = vmatmul.mubr.f32.gmra.mxu0 %v1043
        %v1045 = vpop.f32.mrf.mxu0
        %v1046 = vadd.f32 0.0, %v1045
        %v1047 = vpop.f32.mrf.mxu0
        %1048 = vmatprep.mubr.f32.mxu0 0.0
        %v1049 = vand.u32 %v880, 4294901760
        %v1050 = vsub.f32 %v880, %v1049
        %v1051 = vand.u32 %v1050, 4294901760
        %v1052 = vsub.f32 %v1050, %v1051
        %v1053 = vand.u32 %v1052, 4294901760
        %1054 = vmatmul.mubr.f32.gmra.mxu0 %v1053
        %v1055 = vpop.f32.mrf.mxu0
        %v1056 = vadd.f32 0.0, %v1055
        %v1057 = vpop.f32.mrf.mxu0
        %1058 = vmatprep.mubr.f32.mxu0 0.0
        %v1059 = vand.u32 %v883, 4294901760
        %v1060 = vsub.f32 %v883, %v1059
        %v1061 = vand.u32 %v1060, 4294901760
        %v1062 = vsub.f32 %v1060, %v1061
        %v1063 = vand.u32 %v1062, 4294901760
        %1064 = vmatmul.mubr.f32.gmra.mxu0 %v1063
        %v1065 = vpop.f32.mrf.mxu0
        %v1066 = vadd.f32 0.0, %v1065
        %v1067 = vpop.f32.mrf.mxu0
        %1068 = vmatprep.mubr.f32.mxu0 0.0
        %v1069 = vand.u32 %v886, 4294901760
        %v1070 = vsub.f32 %v886, %v1069
        %v1071 = vand.u32 %v1070, 4294901760
        %v1072 = vsub.f32 %v1070, %v1071
        %v1073 = vand.u32 %v1072, 4294901760
        %1074 = vmatmul.mubr.f32.gmra.mxu0 %v1073
        %v1075 = vpop.f32.mrf.mxu0
        %v1076 = vadd.f32 0.0, %v1075
        %v1077 = vpop.f32.mrf.mxu0
        %1078 = vmatprep.mubr.f32.mxu0 0.0
        %v1079 = vand.u32 %v889, 4294901760
        %v1080 = vsub.f32 %v889, %v1079
        %v1081 = vand.u32 %v1080, 4294901760
        %v1082 = vsub.f32 %v1080, %v1081
        %v1083 = vand.u32 %v1082, 4294901760
        %1084 = vmatmul.mubr.f32.gmra.mxu0 %v1083
        %v1085 = vpop.f32.mrf.mxu0
        %v1086 = vadd.f32 0.0, %v1085
        %v1087 = vpop.f32.mrf.mxu0
        %1088 = vmatprep.mubr.f32.mxu0 0.0
        %v1089 = vand.u32 %v892, 4294901760
        %v1090 = vsub.f32 %v892, %v1089
        %v1091 = vand.u32 %v1090, 4294901760
        %v1092 = vsub.f32 %v1090, %v1091
        %v1093 = vand.u32 %v1092, 4294901760
        %1094 = vmatmul.mubr.f32.gmra.mxu0 %v1093
        %v1095 = vpop.f32.mrf.mxu0
        %v1096 = vadd.f32 0.0, %v1095
        %v1097 = vpop.f32.mrf.mxu0
        %1098 = vmatprep.mubr.f32.mxu0 0.0
        %v1099 = vand.u32 %v895, 4294901760
        %v1100 = vsub.f32 %v895, %v1099
        %v1101 = vand.u32 %v1100, 4294901760
        %v1102 = vsub.f32 %v1100, %v1101
        %v1103 = vand.u32 %v1102, 4294901760
        %1104 = vmatmul.mubr.f32.gmra.mxu0 %v1103
        %v1105 = vpop.f32.mrf.mxu0
        %v1106 = vadd.f32 0.0, %v1105
        %v1107 = vpop.f32.mrf.mxu0
        %1108 = vmatprep.mubr.f32.mxu0 0.0
        %v1109 = vand.u32 %v898, 4294901760
        %v1110 = vsub.f32 %v898, %v1109
        %v1111 = vand.u32 %v1110, 4294901760
        %v1112 = vsub.f32 %v1110, %v1111
        %v1113 = vand.u32 %v1112, 4294901760
        %1114 = vmatmul.mubr.f32.gmra.mxu0 %v1113
        %v1115 = vpop.f32.mrf.mxu0
        %v1116 = vadd.f32 0.0, %v1115
        %v1117 = vpop.f32.mrf.mxu0
        %1118 = vmatprep.mubr.f32.mxu0 0.0
        %v1119 = vand.u32 %v901, 4294901760
        %v1120 = vsub.f32 %v901, %v1119
        %v1121 = vand.u32 %v1120, 4294901760
        %v1122 = vsub.f32 %v1120, %v1121
        %v1123 = vand.u32 %v1122, 4294901760
        %1124 = vmatmul.mubr.f32.gmra.mxu0 %v1123
        %v1125 = vpop.f32.mrf.mxu0
        %v1126 = vadd.f32 0.0, %v1125
        %v1127 = vpop.f32.mrf.mxu0
        %1128 = vdwg.mxu0
        %1129 = vmatprep.subr.mxu0 0.0
        %1130 = vmatpush1.msra.mxu0 0.0
        %1131 = vmatprep.subr.mxu0 0.0
        %1132 = vmatpush1.msra.mxu0 0.0
        %1133 = vmatprep.subr.mxu0 0.0
        %1134 = vmatpush1.msra.mxu0 0.0
        %1135 = vmatprep.subr.mxu0 0.0
        %1136 = vmatpush1.msra.mxu0 0.0
        %1137 = vmatprep.subr.mxu0 0.0
        %1138 = vmatpush1.msra.mxu0 0.0
        %1139 = vmatprep.subr.mxu0 0.0
        %1140 = vmatpush1.msra.mxu0 0.0
        %1141 = vmatprep.subr.mxu0 0.0
        %1142 = vmatpush1.msra.mxu0 0.0
        %1143 = vmatprep.subr.mxu0 0.0
        %1144 = vmatpush1.msra.mxu0 0.0
        %1145 = vmatprep.subr.mxu0 0.0
        %1146 = vmatpush1.msra.mxu0 0.0
        %1147 = vmatprep.subr.mxu0 0.0
        %1148 = vmatpush1.msra.mxu0 0.0
        %1149 = vmatprep.subr.mxu0 0.0
        %1150 = vmatpush1.msra.mxu0 0.0
        %1151 = vmatprep.subr.mxu0 0.0
        %1152 = vmatpush1.msra.mxu0 0.0
        %1153 = vmatprep.subr.mxu0 0.0
        %1154 = vmatpush1.msra.mxu0 0.0
        %1155 = vmatprep.subr.mxu0 0.0
        %1156 = vmatpush1.msra.mxu0 0.0
        %1157 = vmatprep.subr.mxu0 0.0
        %1158 = vmatpush1.msra.mxu0 0.0
        %1159 = vmatprep.subr.mxu0 0.0
        %v1160 = vand.u32 %v852, 4294901760
        %v1161 = vsub.f32 %v852, %v1160
        %v1162 = vand.u32 %v1161, 4294901760
        %v1163 = vsub.f32 %v1161, %v1162
        %v1164 = vand.u32 %v1163, 4294901760
        %1165 = vmatpush1.msra.mxu0 %v1164
        %1166 = vmatprep.subr.mxu0 0.0
        %1167 = vmatpush2.msra.mxu0 0.0
        %1168 = vmatprep.subr.mxu0 0.0
        %1169 = vmatpush2.msra.mxu0 0.0
        %1170 = vmatprep.subr.mxu0 0.0
        %1171 = vmatpush2.msra.mxu0 0.0
        %1172 = vmatprep.subr.mxu0 0.0
        %1173 = vmatpush2.msra.mxu0 0.0
        %1174 = vmatprep.subr.mxu0 0.0
        %1175 = vmatpush2.msra.mxu0 0.0
        %1176 = vmatprep.subr.mxu0 0.0
        %1177 = vmatpush2.msra.mxu0 0.0
        %1178 = vmatprep.subr.mxu0 0.0
        %1179 = vmatpush2.msra.mxu0 0.0
        %1180 = vmatprep.subr.mxu0 0.0
        %1181 = vmatpush2.msra.mxu0 0.0
        %1182 = vmatprep.subr.mxu0 0.0
        %1183 = vmatpush2.msra.mxu0 0.0
        %1184 = vmatprep.subr.mxu0 0.0
        %1185 = vmatpush2.msra.mxu0 0.0
        %1186 = vmatprep.subr.mxu0 0.0
        %1187 = vmatpush2.msra.mxu0 0.0
        %1188 = vmatprep.subr.mxu0 0.0
        %1189 = vmatpush2.msra.mxu0 0.0
        %1190 = vmatprep.subr.mxu0 0.0
        %1191 = vmatpush2.msra.mxu0 0.0
        %1192 = vmatprep.subr.mxu0 0.0
        %1193 = vmatpush2.msra.mxu0 0.0
        %1194 = vmatprep.subr.mxu0 0.0
        %1195 = vmatpush2.msra.mxu0 0.0
        %1196 = vmatprep.subr.mxu0 0.0
        %1197 = vmatpush2.msra.mxu0 0.0
        %1198 = vmatprep.mubr.f32.mxu0 0.0
        %v1199 = vand.u32 %v856, 4294901760
        %1200 = vmatmul.mubr.f32.gmra.mxu0 %v1199
        %v1201 = vpop.f32.mrf.mxu0
        %v1202 = vadd.f32 %v976, %v1201
        %v1203 = vpop.f32.mrf.mxu0
        %1204 = vmatprep.mubr.f32.mxu0 0.0
        %v1205 = vand.u32 %v859, 4294901760
        %1206 = vmatmul.mubr.f32.gmra.mxu0 %v1205
        %v1207 = vpop.f32.mrf.mxu0
        %v1208 = vadd.f32 %v986, %v1207
        %v1209 = vpop.f32.mrf.mxu0
        %1210 = vmatprep.mubr.f32.mxu0 0.0
        %v1211 = vand.u32 %v862, 4294901760
        %1212 = vmatmul.mubr.f32.gmra.mxu0 %v1211
        %v1213 = vpop.f32.mrf.mxu0
        %v1214 = vadd.f32 %v996, %v1213
        %v1215 = vpop.f32.mrf.mxu0
        %1216 = vmatprep.mubr.f32.mxu0 0.0
        %v1217 = vand.u32 %v865, 4294901760
        %1218 = vmatmul.mubr.f32.gmra.mxu0 %v1217
        %v1219 = vpop.f32.mrf.mxu0
        %v1220 = vadd.f32 %v1006, %v1219
        %v1221 = vpop.f32.mrf.mxu0
        %1222 = vmatprep.mubr.f32.mxu0 0.0
        %v1223 = vand.u32 %v868, 4294901760
        %1224 = vmatmul.mubr.f32.gmra.mxu0 %v1223
        %v1225 = vpop.f32.mrf.mxu0
        %v1226 = vadd.f32 %v1016, %v1225
        %v1227 = vpop.f32.mrf.mxu0
        %1228 = vmatprep.mubr.f32.mxu0 0.0
        %v1229 = vand.u32 %v871, 4294901760
        %1230 = vmatmul.mubr.f32.gmra.mxu0 %v1229
        %v1231 = vpop.f32.mrf.mxu0
        %v1232 = vadd.f32 %v1026, %v1231
        %v1233 = vpop.f32.mrf.mxu0
        %1234 = vmatprep.mubr.f32.mxu0 0.0
        %v1235 = vand.u32 %v874, 4294901760
        %1236 = vmatmul.mubr.f32.gmra.mxu0 %v1235
        %v1237 = vpop.f32.mrf.mxu0
        %v1238 = vadd.f32 %v1036, %v1237
        %v1239 = vpop.f32.mrf.mxu0
        %1240 = vmatprep.mubr.f32.mxu0 0.0
        %v1241 = vand.u32 %v877, 4294901760
        %1242 = vmatmul.mubr.f32.gmra.mxu0 %v1241
        %v1243 = vpop.f32.mrf.mxu0
        %v1244 = vadd.f32 %v1046, %v1243
        %v1245 = vpop.f32.mrf.mxu0
        %1246 = vmatprep.mubr.f32.mxu0 0.0
        %v1247 = vand.u32 %v880, 4294901760
        %1248 = vmatmul.mubr.f32.gmra.mxu0 %v1247
        %v1249 = vpop.f32.mrf.mxu0
        %v1250 = vadd.f32 %v1056, %v1249
        %v1251 = vpop.f32.mrf.mxu0
        %1252 = vmatprep.mubr.f32.mxu0 0.0
        %v1253 = vand.u32 %v883, 4294901760
        %1254 = vmatmul.mubr.f32.gmra.mxu0 %v1253
        %v1255 = vpop.f32.mrf.mxu0
        %v1256 = vadd.f32 %v1066, %v1255
        %v1257 = vpop.f32.mrf.mxu0
        %1258 = vmatprep.mubr.f32.mxu0 0.0
        %v1259 = vand.u32 %v886, 4294901760
        %1260 = vmatmul.mubr.f32.gmra.mxu0 %v1259
        %v1261 = vpop.f32.mrf.mxu0
        %v1262 = vadd.f32 %v1076, %v1261
        %v1263 = vpop.f32.mrf.mxu0
        %1264 = vmatprep.mubr.f32.mxu0 0.0
        %v1265 = vand.u32 %v889, 4294901760
        %1266 = vmatmul.mubr.f32.gmra.mxu0 %v1265
        %v1267 = vpop.f32.mrf.mxu0
        %v1268 = vadd.f32 %v1086, %v1267
        %v1269 = vpop.f32.mrf.mxu0
        %1270 = vmatprep.mubr.f32.mxu0 0.0
        %v1271 = vand.u32 %v892, 4294901760
        %1272 = vmatmul.mubr.f32.gmra.mxu0 %v1271
        %v1273 = vpop.f32.mrf.mxu0
        %v1274 = vadd.f32 %v1096, %v1273
        %v1275 = vpop.f32.mrf.mxu0
        %1276 = vmatprep.mubr.f32.mxu0 0.0
        %v1277 = vand.u32 %v895, 4294901760
        %1278 = vmatmul.mubr.f32.gmra.mxu0 %v1277
        %v1279 = vpop.f32.mrf.mxu0
        %v1280 = vadd.f32 %v1106, %v1279
        %v1281 = vpop.f32.mrf.mxu0
        %1282 = vmatprep.mubr.f32.mxu0 0.0
        %v1283 = vand.u32 %v898, 4294901760
        %1284 = vmatmul.mubr.f32.gmra.mxu0 %v1283
        %v1285 = vpop.f32.mrf.mxu0
        %v1286 = vadd.f32 %v1116, %v1285
        %v1287 = vpop.f32.mrf.mxu0
        %1288 = vmatprep.mubr.f32.mxu0 0.0
        %v1289 = vand.u32 %v901, 4294901760
        %1290 = vmatmul.mubr.f32.gmra.mxu0 %v1289
        %v1291 = vpop.f32.mrf.mxu0
        %v1292 = vadd.f32 %v1126, %v1291
        %v1293 = vpop.f32.mrf.mxu0
        %1294 = vdwg.mxu0
        %1295 = vmatprep.subr.mxu0 0.0
        %1296 = vmatpush1.msra.mxu0 0.0
        %1297 = vmatprep.subr.mxu0 0.0
        %1298 = vmatpush1.msra.mxu0 0.0
        %1299 = vmatprep.subr.mxu0 0.0
        %1300 = vmatpush1.msra.mxu0 0.0
        %1301 = vmatprep.subr.mxu0 0.0
        %1302 = vmatpush1.msra.mxu0 0.0
        %1303 = vmatprep.subr.mxu0 0.0
        %1304 = vmatpush1.msra.mxu0 0.0
        %1305 = vmatprep.subr.mxu0 0.0
        %1306 = vmatpush1.msra.mxu0 0.0
        %1307 = vmatprep.subr.mxu0 0.0
        %1308 = vmatpush1.msra.mxu0 0.0
        %1309 = vmatprep.subr.mxu0 0.0
        %1310 = vmatpush1.msra.mxu0 0.0
        %1311 = vmatprep.subr.mxu0 0.0
        %1312 = vmatpush1.msra.mxu0 0.0
        %1313 = vmatprep.subr.mxu0 0.0
        %1314 = vmatpush1.msra.mxu0 0.0
        %1315 = vmatprep.subr.mxu0 0.0
        %1316 = vmatpush1.msra.mxu0 0.0
        %1317 = vmatprep.subr.mxu0 0.0
        %1318 = vmatpush1.msra.mxu0 0.0
        %1319 = vmatprep.subr.mxu0 0.0
        %1320 = vmatpush1.msra.mxu0 0.0
        %1321 = vmatprep.subr.mxu0 0.0
        %1322 = vmatpush1.msra.mxu0 0.0
        %1323 = vmatprep.subr.mxu0 0.0
        %1324 = vmatpush1.msra.mxu0 0.0
        %1325 = vmatprep.subr.mxu0 0.0
        %v1326 = vand.u32 %v852, 4294901760
        %v1327 = vsub.f32 %v852, %v1326
        %1328 = vmatpush1.msra.mxu0 %v1327
        %1329 = vmatprep.subr.mxu0 0.0
        %1330 = vmatpush2.msra.mxu0 0.0
        %1331 = vmatprep.subr.mxu0 0.0
        %1332 = vmatpush2.msra.mxu0 0.0
        %1333 = vmatprep.subr.mxu0 0.0
        %1334 = vmatpush2.msra.mxu0 0.0
        %1335 = vmatprep.subr.mxu0 0.0
        %1336 = vmatpush2.msra.mxu0 0.0
        %1337 = vmatprep.subr.mxu0 0.0
        %1338 = vmatpush2.msra.mxu0 0.0
        %1339 = vmatprep.subr.mxu0 0.0
        %1340 = vmatpush2.msra.mxu0 0.0
        %1341 = vmatprep.subr.mxu0 0.0
        %1342 = vmatpush2.msra.mxu0 0.0
        %1343 = vmatprep.subr.mxu0 0.0
        %1344 = vmatpush2.msra.mxu0 0.0
        %1345 = vmatprep.subr.mxu0 0.0
        %1346 = vmatpush2.msra.mxu0 0.0
        %1347 = vmatprep.subr.mxu0 0.0
        %1348 = vmatpush2.msra.mxu0 0.0
        %1349 = vmatprep.subr.mxu0 0.0
        %1350 = vmatpush2.msra.mxu0 0.0
        %1351 = vmatprep.subr.mxu0 0.0
        %1352 = vmatpush2.msra.mxu0 0.0
        %1353 = vmatprep.subr.mxu0 0.0
        %1354 = vmatpush2.msra.mxu0 0.0
        %1355 = vmatprep.subr.mxu0 0.0
        %1356 = vmatpush2.msra.mxu0 0.0
        %1357 = vmatprep.subr.mxu0 0.0
        %1358 = vmatpush2.msra.mxu0 0.0
        %1359 = vmatprep.subr.mxu0 0.0
        %1360 = vmatpush2.msra.mxu0 0.0
        %1361 = vmatprep.mubr.f32.mxu0 0.0
        %v1362 = vand.u32 %v856, 4294901760
        %v1363 = vsub.f32 %v856, %v1362
        %1364 = vmatmul.mubr.f32.gmra.mxu0 %v1363
        %v1365 = vpop.f32.mrf.mxu0
        %v1366 = vadd.f32 %v1202, %v1365
        %v1367 = vpop.f32.mrf.mxu0
        %1368 = vmatprep.mubr.f32.mxu0 0.0
        %v1369 = vand.u32 %v859, 4294901760
        %v1370 = vsub.f32 %v859, %v1369
        %1371 = vmatmul.mubr.f32.gmra.mxu0 %v1370
        %v1372 = vpop.f32.mrf.mxu0
        %v1373 = vadd.f32 %v1208, %v1372
        %v1374 = vpop.f32.mrf.mxu0
        %1375 = vmatprep.mubr.f32.mxu0 0.0
        %v1376 = vand.u32 %v862, 4294901760
        %v1377 = vsub.f32 %v862, %v1376
        %1378 = vmatmul.mubr.f32.gmra.mxu0 %v1377
        %v1379 = vpop.f32.mrf.mxu0
        %v1380 = vadd.f32 %v1214, %v1379
        %v1381 = vpop.f32.mrf.mxu0
        %1382 = vmatprep.mubr.f32.mxu0 0.0
        %v1383 = vand.u32 %v865, 4294901760
        %v1384 = vsub.f32 %v865, %v1383
        %1385 = vmatmul.mubr.f32.gmra.mxu0 %v1384
        %v1386 = vpop.f32.mrf.mxu0
        %v1387 = vadd.f32 %v1220, %v1386
        %v1388 = vpop.f32.mrf.mxu0
        %1389 = vmatprep.mubr.f32.mxu0 0.0
        %v1390 = vand.u32 %v868, 4294901760
        %v1391 = vsub.f32 %v868, %v1390
        %1392 = vmatmul.mubr.f32.gmra.mxu0 %v1391
        %v1393 = vpop.f32.mrf.mxu0
        %v1394 = vadd.f32 %v1226, %v1393
        %v1395 = vpop.f32.mrf.mxu0
        %1396 = vmatprep.mubr.f32.mxu0 0.0
        %v1397 = vand.u32 %v871, 4294901760
        %v1398 = vsub.f32 %v871, %v1397
        %1399 = vmatmul.mubr.f32.gmra.mxu0 %v1398
        %v1400 = vpop.f32.mrf.mxu0
        %v1401 = vadd.f32 %v1232, %v1400
        %v1402 = vpop.f32.mrf.mxu0
        %1403 = vmatprep.mubr.f32.mxu0 0.0
        %v1404 = vand.u32 %v874, 4294901760
        %v1405 = vsub.f32 %v874, %v1404
        %1406 = vmatmul.mubr.f32.gmra.mxu0 %v1405
        %v1407 = vpop.f32.mrf.mxu0
        %v1408 = vadd.f32 %v1238, %v1407
        %v1409 = vpop.f32.mrf.mxu0
        %1410 = vmatprep.mubr.f32.mxu0 0.0
        %v1411 = vand.u32 %v877, 4294901760
        %v1412 = vsub.f32 %v877, %v1411
        %1413 = vmatmul.mubr.f32.gmra.mxu0 %v1412
        %v1414 = vpop.f32.mrf.mxu0
        %v1415 = vadd.f32 %v1244, %v1414
        %v1416 = vpop.f32.mrf.mxu0
        %1417 = vmatprep.mubr.f32.mxu0 0.0
        %v1418 = vand.u32 %v880, 4294901760
        %v1419 = vsub.f32 %v880, %v1418
        %1420 = vmatmul.mubr.f32.gmra.mxu0 %v1419
        %v1421 = vpop.f32.mrf.mxu0
        %v1422 = vadd.f32 %v1250, %v1421
        %v1423 = vpop.f32.mrf.mxu0
        %1424 = vmatprep.mubr.f32.mxu0 0.0
        %v1425 = vand.u32 %v883, 4294901760
        %v1426 = vsub.f32 %v883, %v1425
        %1427 = vmatmul.mubr.f32.gmra.mxu0 %v1426
        %v1428 = vpop.f32.mrf.mxu0
        %v1429 = vadd.f32 %v1256, %v1428
        %v1430 = vpop.f32.mrf.mxu0
        %1431 = vmatprep.mubr.f32.mxu0 0.0
        %v1432 = vand.u32 %v886, 4294901760
        %v1433 = vsub.f32 %v886, %v1432
        %1434 = vmatmul.mubr.f32.gmra.mxu0 %v1433
        %v1435 = vpop.f32.mrf.mxu0
        %v1436 = vadd.f32 %v1262, %v1435
        %v1437 = vpop.f32.mrf.mxu0
        %1438 = vmatprep.mubr.f32.mxu0 0.0
        %v1439 = vand.u32 %v889, 4294901760
        %v1440 = vsub.f32 %v889, %v1439
        %1441 = vmatmul.mubr.f32.gmra.mxu0 %v1440
        %v1442 = vpop.f32.mrf.mxu0
        %v1443 = vadd.f32 %v1268, %v1442
        %v1444 = vpop.f32.mrf.mxu0
        %1445 = vmatprep.mubr.f32.mxu0 0.0
        %v1446 = vand.u32 %v892, 4294901760
        %v1447 = vsub.f32 %v892, %v1446
        %1448 = vmatmul.mubr.f32.gmra.mxu0 %v1447
        %v1449 = vpop.f32.mrf.mxu0
        %v1450 = vadd.f32 %v1274, %v1449
        %v1451 = vpop.f32.mrf.mxu0
        %1452 = vmatprep.mubr.f32.mxu0 0.0
        %v1453 = vand.u32 %v895, 4294901760
        %v1454 = vsub.f32 %v895, %v1453
        %1455 = vmatmul.mubr.f32.gmra.mxu0 %v1454
        %v1456 = vpop.f32.mrf.mxu0
        %v1457 = vadd.f32 %v1280, %v1456
        %v1458 = vpop.f32.mrf.mxu0
        %1459 = vmatprep.mubr.f32.mxu0 0.0
        %v1460 = vand.u32 %v898, 4294901760
        %v1461 = vsub.f32 %v898, %v1460
        %1462 = vmatmul.mubr.f32.gmra.mxu0 %v1461
        %v1463 = vpop.f32.mrf.mxu0
        %v1464 = vadd.f32 %v1286, %v1463
        %v1465 = vpop.f32.mrf.mxu0
        %1466 = vmatprep.mubr.f32.mxu0 0.0
        %v1467 = vand.u32 %v901, 4294901760
        %v1468 = vsub.f32 %v901, %v1467
        %1469 = vmatmul.mubr.f32.gmra.mxu0 %v1468
        %v1470 = vpop.f32.mrf.mxu0
        %v1471 = vadd.f32 %v1292, %v1470
        %v1472 = vpop.f32.mrf.mxu0
        %1473 = vdwg.mxu0
        %1474 = vmatprep.subr.mxu0 0.0
        %1475 = vmatpush1.msra.mxu0 0.0
        %1476 = vmatprep.subr.mxu0 0.0
        %1477 = vmatpush1.msra.mxu0 0.0
        %1478 = vmatprep.subr.mxu0 0.0
        %1479 = vmatpush1.msra.mxu0 0.0
        %1480 = vmatprep.subr.mxu0 0.0
        %1481 = vmatpush1.msra.mxu0 0.0
        %1482 = vmatprep.subr.mxu0 0.0
        %1483 = vmatpush1.msra.mxu0 0.0
        %1484 = vmatprep.subr.mxu0 0.0
        %1485 = vmatpush1.msra.mxu0 0.0
        %1486 = vmatprep.subr.mxu0 0.0
        %1487 = vmatpush1.msra.mxu0 0.0
        %1488 = vmatprep.subr.mxu0 0.0
        %1489 = vmatpush1.msra.mxu0 0.0
        %1490 = vmatprep.subr.mxu0 0.0
        %1491 = vmatpush1.msra.mxu0 0.0
        %1492 = vmatprep.subr.mxu0 0.0
        %1493 = vmatpush1.msra.mxu0 0.0
        %1494 = vmatprep.subr.mxu0 0.0
        %1495 = vmatpush1.msra.mxu0 0.0
        %1496 = vmatprep.subr.mxu0 0.0
        %1497 = vmatpush1.msra.mxu0 0.0
        %1498 = vmatprep.subr.mxu0 0.0
        %1499 = vmatpush1.msra.mxu0 0.0
        %1500 = vmatprep.subr.mxu0 0.0
        %1501 = vmatpush1.msra.mxu0 0.0
        %1502 = vmatprep.subr.mxu0 0.0
        %1503 = vmatpush1.msra.mxu0 0.0
        %1504 = vmatprep.subr.mxu0 0.0
        %v1505 = vand.u32 %v852, 4294901760
        %1506 = vmatpush1.msra.mxu0 %v1505
        %1507 = vmatprep.subr.mxu0 0.0
        %1508 = vmatpush2.msra.mxu0 0.0
        %1509 = vmatprep.subr.mxu0 0.0
        %1510 = vmatpush2.msra.mxu0 0.0
        %1511 = vmatprep.subr.mxu0 0.0
        %1512 = vmatpush2.msra.mxu0 0.0
        %1513 = vmatprep.subr.mxu0 0.0
        %1514 = vmatpush2.msra.mxu0 0.0
        %1515 = vmatprep.subr.mxu0 0.0
        %1516 = vmatpush2.msra.mxu0 0.0
        %1517 = vmatprep.subr.mxu0 0.0
        %1518 = vmatpush2.msra.mxu0 0.0
        %1519 = vmatprep.subr.mxu0 0.0
        %1520 = vmatpush2.msra.mxu0 0.0
        %1521 = vmatprep.subr.mxu0 0.0
        %1522 = vmatpush2.msra.mxu0 0.0
        %1523 = vmatprep.subr.mxu0 0.0
        %1524 = vmatpush2.msra.mxu0 0.0
        %1525 = vmatprep.subr.mxu0 0.0
        %1526 = vmatpush2.msra.mxu0 0.0
        %1527 = vmatprep.subr.mxu0 0.0
        %1528 = vmatpush2.msra.mxu0 0.0
        %1529 = vmatprep.subr.mxu0 0.0
        %1530 = vmatpush2.msra.mxu0 0.0
        %1531 = vmatprep.subr.mxu0 0.0
        %1532 = vmatpush2.msra.mxu0 0.0
        %1533 = vmatprep.subr.mxu0 0.0
        %1534 = vmatpush2.msra.mxu0 0.0
        %1535 = vmatprep.subr.mxu0 0.0
        %1536 = vmatpush2.msra.mxu0 0.0
        %1537 = vmatprep.subr.mxu0 0.0
        %1538 = vmatpush2.msra.mxu0 0.0
        %1539 = vmatprep.mubr.f32.mxu0 0.0
        %v1540 = vand.u32 %v856, 4294901760
        %v1541 = vsub.f32 %v856, %v1540
        %v1542 = vand.u32 %v1541, 4294901760
        %1543 = vmatmul.mubr.f32.gmra.mxu0 %v1542
        %v1544 = vpop.f32.mrf.mxu0
        %v1545 = vadd.f32 %v1366, %v1544
        %v1546 = vpop.f32.mrf.mxu0
        %1547 = vmatprep.mubr.f32.mxu0 0.0
        %v1548 = vand.u32 %v859, 4294901760
        %v1549 = vsub.f32 %v859, %v1548
        %v1550 = vand.u32 %v1549, 4294901760
        %1551 = vmatmul.mubr.f32.gmra.mxu0 %v1550
        %v1552 = vpop.f32.mrf.mxu0
        %v1553 = vadd.f32 %v1373, %v1552
        %v1554 = vpop.f32.mrf.mxu0
        %1555 = vmatprep.mubr.f32.mxu0 0.0
        %v1556 = vand.u32 %v862, 4294901760
        %v1557 = vsub.f32 %v862, %v1556
        %v1558 = vand.u32 %v1557, 4294901760
        %1559 = vmatmul.mubr.f32.gmra.mxu0 %v1558
        %v1560 = vpop.f32.mrf.mxu0
        %v1561 = vadd.f32 %v1380, %v1560
        %v1562 = vpop.f32.mrf.mxu0
        %1563 = vmatprep.mubr.f32.mxu0 0.0
        %v1564 = vand.u32 %v865, 4294901760
        %v1565 = vsub.f32 %v865, %v1564
        %v1566 = vand.u32 %v1565, 4294901760
        %1567 = vmatmul.mubr.f32.gmra.mxu0 %v1566
        %v1568 = vpop.f32.mrf.mxu0
        %v1569 = vadd.f32 %v1387, %v1568
        %v1570 = vpop.f32.mrf.mxu0
        %1571 = vmatprep.mubr.f32.mxu0 0.0
        %v1572 = vand.u32 %v868, 4294901760
        %v1573 = vsub.f32 %v868, %v1572
        %v1574 = vand.u32 %v1573, 4294901760
        %1575 = vmatmul.mubr.f32.gmra.mxu0 %v1574
        %v1576 = vpop.f32.mrf.mxu0
        %v1577 = vadd.f32 %v1394, %v1576
        %v1578 = vpop.f32.mrf.mxu0
        %1579 = vmatprep.mubr.f32.mxu0 0.0
        %v1580 = vand.u32 %v871, 4294901760
        %v1581 = vsub.f32 %v871, %v1580
        %v1582 = vand.u32 %v1581, 4294901760
        %1583 = vmatmul.mubr.f32.gmra.mxu0 %v1582
        %v1584 = vpop.f32.mrf.mxu0
        %v1585 = vadd.f32 %v1401, %v1584
        %v1586 = vpop.f32.mrf.mxu0
        %1587 = vmatprep.mubr.f32.mxu0 0.0
        %v1588 = vand.u32 %v874, 4294901760
        %v1589 = vsub.f32 %v874, %v1588
        %v1590 = vand.u32 %v1589, 4294901760
        %1591 = vmatmul.mubr.f32.gmra.mxu0 %v1590
        %v1592 = vpop.f32.mrf.mxu0
        %v1593 = vadd.f32 %v1408, %v1592
        %v1594 = vpop.f32.mrf.mxu0
        %1595 = vmatprep.mubr.f32.mxu0 0.0
        %v1596 = vand.u32 %v877, 4294901760
        %v1597 = vsub.f32 %v877, %v1596
        %v1598 = vand.u32 %v1597, 4294901760
        %1599 = vmatmul.mubr.f32.gmra.mxu0 %v1598
        %v1600 = vpop.f32.mrf.mxu0
        %v1601 = vadd.f32 %v1415, %v1600
        %v1602 = vpop.f32.mrf.mxu0
        %1603 = vmatprep.mubr.f32.mxu0 0.0
        %v1604 = vand.u32 %v880, 4294901760
        %v1605 = vsub.f32 %v880, %v1604
        %v1606 = vand.u32 %v1605, 4294901760
        %1607 = vmatmul.mubr.f32.gmra.mxu0 %v1606
        %v1608 = vpop.f32.mrf.mxu0
        %v1609 = vadd.f32 %v1422, %v1608
        %v1610 = vpop.f32.mrf.mxu0
        %1611 = vmatprep.mubr.f32.mxu0 0.0
        %v1612 = vand.u32 %v883, 4294901760
        %v1613 = vsub.f32 %v883, %v1612
        %v1614 = vand.u32 %v1613, 4294901760
        %1615 = vmatmul.mubr.f32.gmra.mxu0 %v1614
        %v1616 = vpop.f32.mrf.mxu0
        %v1617 = vadd.f32 %v1429, %v1616
        %v1618 = vpop.f32.mrf.mxu0
        %1619 = vmatprep.mubr.f32.mxu0 0.0
        %v1620 = vand.u32 %v886, 4294901760
        %v1621 = vsub.f32 %v886, %v1620
        %v1622 = vand.u32 %v1621, 4294901760
        %1623 = vmatmul.mubr.f32.gmra.mxu0 %v1622
        %v1624 = vpop.f32.mrf.mxu0
        %v1625 = vadd.f32 %v1436, %v1624
        %v1626 = vpop.f32.mrf.mxu0
        %1627 = vmatprep.mubr.f32.mxu0 0.0
        %v1628 = vand.u32 %v889, 4294901760
        %v1629 = vsub.f32 %v889, %v1628
        %v1630 = vand.u32 %v1629, 4294901760
        %1631 = vmatmul.mubr.f32.gmra.mxu0 %v1630
        %v1632 = vpop.f32.mrf.mxu0
        %v1633 = vadd.f32 %v1443, %v1632
        %v1634 = vpop.f32.mrf.mxu0
        %1635 = vmatprep.mubr.f32.mxu0 0.0
        %v1636 = vand.u32 %v892, 4294901760
        %v1637 = vsub.f32 %v892, %v1636
        %v1638 = vand.u32 %v1637, 4294901760
        %1639 = vmatmul.mubr.f32.gmra.mxu0 %v1638
        %v1640 = vpop.f32.mrf.mxu0
        %v1641 = vadd.f32 %v1450, %v1640
        %v1642 = vpop.f32.mrf.mxu0
        %1643 = vmatprep.mubr.f32.mxu0 0.0
        %v1644 = vand.u32 %v895, 4294901760
        %v1645 = vsub.f32 %v895, %v1644
        %v1646 = vand.u32 %v1645, 4294901760
        %1647 = vmatmul.mubr.f32.gmra.mxu0 %v1646
        %v1648 = vpop.f32.mrf.mxu0
        %v1649 = vadd.f32 %v1457, %v1648
        %v1650 = vpop.f32.mrf.mxu0
        %1651 = vmatprep.mubr.f32.mxu0 0.0
        %v1652 = vand.u32 %v898, 4294901760
        %v1653 = vsub.f32 %v898, %v1652
        %v1654 = vand.u32 %v1653, 4294901760
        %1655 = vmatmul.mubr.f32.gmra.mxu0 %v1654
        %v1656 = vpop.f32.mrf.mxu0
        %v1657 = vadd.f32 %v1464, %v1656
        %v1658 = vpop.f32.mrf.mxu0
        %1659 = vmatprep.mubr.f32.mxu0 0.0
        %v1660 = vand.u32 %v901, 4294901760
        %v1661 = vsub.f32 %v901, %v1660
        %v1662 = vand.u32 %v1661, 4294901760
        %1663 = vmatmul.mubr.f32.gmra.mxu0 %v1662
        %v1664 = vpop.f32.mrf.mxu0
        %v1665 = vadd.f32 %v1471, %v1664
        %v1666 = vpop.f32.mrf.mxu0
        %1667 = vdwg.mxu0
        %1668 = vmatprep.subr.mxu0 0.0
        %1669 = vmatpush1.msra.mxu0 0.0
        %1670 = vmatprep.subr.mxu0 0.0
        %1671 = vmatpush1.msra.mxu0 0.0
        %1672 = vmatprep.subr.mxu0 0.0
        %1673 = vmatpush1.msra.mxu0 0.0
        %1674 = vmatprep.subr.mxu0 0.0
        %1675 = vmatpush1.msra.mxu0 0.0
        %1676 = vmatprep.subr.mxu0 0.0
        %1677 = vmatpush1.msra.mxu0 0.0
        %1678 = vmatprep.subr.mxu0 0.0
        %1679 = vmatpush1.msra.mxu0 0.0
        %1680 = vmatprep.subr.mxu0 0.0
        %1681 = vmatpush1.msra.mxu0 0.0
        %1682 = vmatprep.subr.mxu0 0.0
        %1683 = vmatpush1.msra.mxu0 0.0
        %1684 = vmatprep.subr.mxu0 0.0
        %1685 = vmatpush1.msra.mxu0 0.0
        %1686 = vmatprep.subr.mxu0 0.0
        %1687 = vmatpush1.msra.mxu0 0.0
        %1688 = vmatprep.subr.mxu0 0.0
        %1689 = vmatpush1.msra.mxu0 0.0
        %1690 = vmatprep.subr.mxu0 0.0
        %1691 = vmatpush1.msra.mxu0 0.0
        %1692 = vmatprep.subr.mxu0 0.0
        %1693 = vmatpush1.msra.mxu0 0.0
        %1694 = vmatprep.subr.mxu0 0.0
        %1695 = vmatpush1.msra.mxu0 0.0
        %1696 = vmatprep.subr.mxu0 0.0
        %1697 = vmatpush1.msra.mxu0 0.0
        %1698 = vmatprep.subr.mxu0 0.0
        %v1699 = vand.u32 %v852, 4294901760
        %v1700 = vsub.f32 %v852, %v1699
        %v1701 = vand.u32 %v1700, 4294901760
        %1702 = vmatpush1.msra.mxu0 %v1701
        %1703 = vmatprep.subr.mxu0 0.0
        %1704 = vmatpush2.msra.mxu0 0.0
        %1705 = vmatprep.subr.mxu0 0.0
        %1706 = vmatpush2.msra.mxu0 0.0
        %1707 = vmatprep.subr.mxu0 0.0
        %1708 = vmatpush2.msra.mxu0 0.0
        %1709 = vmatprep.subr.mxu0 0.0
        %1710 = vmatpush2.msra.mxu0 0.0
        %1711 = vmatprep.subr.mxu0 0.0
        %1712 = vmatpush2.msra.mxu0 0.0
        %1713 = vmatprep.subr.mxu0 0.0
        %1714 = vmatpush2.msra.mxu0 0.0
        %1715 = vmatprep.subr.mxu0 0.0
        %1716 = vmatpush2.msra.mxu0 0.0
        %1717 = vmatprep.subr.mxu0 0.0
        %1718 = vmatpush2.msra.mxu0 0.0
        %1719 = vmatprep.subr.mxu0 0.0
        %1720 = vmatpush2.msra.mxu0 0.0
        %1721 = vmatprep.subr.mxu0 0.0
        %1722 = vmatpush2.msra.mxu0 0.0
        %1723 = vmatprep.subr.mxu0 0.0
        %1724 = vmatpush2.msra.mxu0 0.0
        %1725 = vmatprep.subr.mxu0 0.0
        %1726 = vmatpush2.msra.mxu0 0.0
        %1727 = vmatprep.subr.mxu0 0.0
        %1728 = vmatpush2.msra.mxu0 0.0
        %1729 = vmatprep.subr.mxu0 0.0
        %1730 = vmatpush2.msra.mxu0 0.0
        %1731 = vmatprep.subr.mxu0 0.0
        %1732 = vmatpush2.msra.mxu0 0.0
        %1733 = vmatprep.subr.mxu0 0.0
        %1734 = vmatpush2.msra.mxu0 0.0
        %1735 = vmatprep.mubr.f32.mxu0 0.0
        %v1736 = vand.u32 %v856, 4294901760
        %1737 = vmatmul.mubr.f32.gmra.mxu0 %v1736
        %v1738 = vpop.f32.mrf.mxu0
        %v1739 = vadd.f32 %v1545, %v1738
        %v1740 = vpop.f32.mrf.mxu0
        %1741 = vmatprep.mubr.f32.mxu0 0.0
        %v1742 = vand.u32 %v859, 4294901760
        %1743 = vmatmul.mubr.f32.gmra.mxu0 %v1742
        %v1744 = vpop.f32.mrf.mxu0
        %v1745 = vadd.f32 %v1553, %v1744
        %v1746 = vpop.f32.mrf.mxu0
        %1747 = vmatprep.mubr.f32.mxu0 0.0
        %v1748 = vand.u32 %v862, 4294901760
        %1749 = vmatmul.mubr.f32.gmra.mxu0 %v1748
        %v1750 = vpop.f32.mrf.mxu0
        %v1751 = vadd.f32 %v1561, %v1750
        %v1752 = vpop.f32.mrf.mxu0
        %1753 = vmatprep.mubr.f32.mxu0 0.0
        %v1754 = vand.u32 %v865, 4294901760
        %1755 = vmatmul.mubr.f32.gmra.mxu0 %v1754
        %v1756 = vpop.f32.mrf.mxu0
        %v1757 = vadd.f32 %v1569, %v1756
        %v1758 = vpop.f32.mrf.mxu0
        %1759 = vmatprep.mubr.f32.mxu0 0.0
        %v1760 = vand.u32 %v868, 4294901760
        %1761 = vmatmul.mubr.f32.gmra.mxu0 %v1760
        %v1762 = vpop.f32.mrf.mxu0
        %v1763 = vadd.f32 %v1577, %v1762
        %v1764 = vpop.f32.mrf.mxu0
        %1765 = vmatprep.mubr.f32.mxu0 0.0
        %v1766 = vand.u32 %v871, 4294901760
        %1767 = vmatmul.mubr.f32.gmra.mxu0 %v1766
        %v1768 = vpop.f32.mrf.mxu0
        %v1769 = vadd.f32 %v1585, %v1768
        %v1770 = vpop.f32.mrf.mxu0
        %1771 = vmatprep.mubr.f32.mxu0 0.0
        %v1772 = vand.u32 %v874, 4294901760
        %1773 = vmatmul.mubr.f32.gmra.mxu0 %v1772
        %v1774 = vpop.f32.mrf.mxu0
        %v1775 = vadd.f32 %v1593, %v1774
        %v1776 = vpop.f32.mrf.mxu0
        %1777 = vmatprep.mubr.f32.mxu0 0.0
        %v1778 = vand.u32 %v877, 4294901760
        %1779 = vmatmul.mubr.f32.gmra.mxu0 %v1778
        %v1780 = vpop.f32.mrf.mxu0
        %v1781 = vadd.f32 %v1601, %v1780
        %v1782 = vpop.f32.mrf.mxu0
        %1783 = vmatprep.mubr.f32.mxu0 0.0
        %v1784 = vand.u32 %v880, 4294901760
        %1785 = vmatmul.mubr.f32.gmra.mxu0 %v1784
        %v1786 = vpop.f32.mrf.mxu0
        %v1787 = vadd.f32 %v1609, %v1786
        %v1788 = vpop.f32.mrf.mxu0
        %1789 = vmatprep.mubr.f32.mxu0 0.0
        %v1790 = vand.u32 %v883, 4294901760
        %1791 = vmatmul.mubr.f32.gmra.mxu0 %v1790
        %v1792 = vpop.f32.mrf.mxu0
        %v1793 = vadd.f32 %v1617, %v1792
        %v1794 = vpop.f32.mrf.mxu0
        %1795 = vmatprep.mubr.f32.mxu0 0.0
        %v1796 = vand.u32 %v886, 4294901760
        %1797 = vmatmul.mubr.f32.gmra.mxu0 %v1796
        %v1798 = vpop.f32.mrf.mxu0
        %v1799 = vadd.f32 %v1625, %v1798
        %v1800 = vpop.f32.mrf.mxu0
        %1801 = vmatprep.mubr.f32.mxu0 0.0
        %v1802 = vand.u32 %v889, 4294901760
        %1803 = vmatmul.mubr.f32.gmra.mxu0 %v1802
        %v1804 = vpop.f32.mrf.mxu0
        %v1805 = vadd.f32 %v1633, %v1804
        %v1806 = vpop.f32.mrf.mxu0
        %1807 = vmatprep.mubr.f32.mxu0 0.0
        %v1808 = vand.u32 %v892, 4294901760
        %1809 = vmatmul.mubr.f32.gmra.mxu0 %v1808
        %v1810 = vpop.f32.mrf.mxu0
        %v1811 = vadd.f32 %v1641, %v1810
        %v1812 = vpop.f32.mrf.mxu0
        %1813 = vmatprep.mubr.f32.mxu0 0.0
        %v1814 = vand.u32 %v895, 4294901760
        %1815 = vmatmul.mubr.f32.gmra.mxu0 %v1814
        %v1816 = vpop.f32.mrf.mxu0
        %v1817 = vadd.f32 %v1649, %v1816
        %v1818 = vpop.f32.mrf.mxu0
        %1819 = vmatprep.mubr.f32.mxu0 0.0
        %v1820 = vand.u32 %v898, 4294901760
        %1821 = vmatmul.mubr.f32.gmra.mxu0 %v1820
        %v1822 = vpop.f32.mrf.mxu0
        %v1823 = vadd.f32 %v1657, %v1822
        %v1824 = vpop.f32.mrf.mxu0
        %1825 = vmatprep.mubr.f32.mxu0 0.0
        %v1826 = vand.u32 %v901, 4294901760
        %1827 = vmatmul.mubr.f32.gmra.mxu0 %v1826
        %v1828 = vpop.f32.mrf.mxu0
        %v1829 = vadd.f32 %v1665, %v1828
        %v1830 = vpop.f32.mrf.mxu0
        %1831 = vdwg.mxu0
        %1832 = vmatprep.subr.mxu0 0.0
        %1833 = vmatpush1.msra.mxu0 0.0
        %1834 = vmatprep.subr.mxu0 0.0
        %1835 = vmatpush1.msra.mxu0 0.0
        %1836 = vmatprep.subr.mxu0 0.0
        %1837 = vmatpush1.msra.mxu0 0.0
        %1838 = vmatprep.subr.mxu0 0.0
        %1839 = vmatpush1.msra.mxu0 0.0
        %1840 = vmatprep.subr.mxu0 0.0
        %1841 = vmatpush1.msra.mxu0 0.0
        %1842 = vmatprep.subr.mxu0 0.0
        %1843 = vmatpush1.msra.mxu0 0.0
        %1844 = vmatprep.subr.mxu0 0.0
        %1845 = vmatpush1.msra.mxu0 0.0
        %1846 = vmatprep.subr.mxu0 0.0
        %1847 = vmatpush1.msra.mxu0 0.0
        %1848 = vmatprep.subr.mxu0 0.0
        %1849 = vmatpush1.msra.mxu0 0.0
        %1850 = vmatprep.subr.mxu0 0.0
        %1851 = vmatpush1.msra.mxu0 0.0
        %1852 = vmatprep.subr.mxu0 0.0
        %1853 = vmatpush1.msra.mxu0 0.0
        %1854 = vmatprep.subr.mxu0 0.0
        %1855 = vmatpush1.msra.mxu0 0.0
        %1856 = vmatprep.subr.mxu0 0.0
        %1857 = vmatpush1.msra.mxu0 0.0
        %1858 = vmatprep.subr.mxu0 0.0
        %1859 = vmatpush1.msra.mxu0 0.0
        %1860 = vmatprep.subr.mxu0 0.0
        %1861 = vmatpush1.msra.mxu0 0.0
        %1862 = vmatprep.subr.mxu0 0.0
        %v1863 = vand.u32 %v852, 4294901760
        %1864 = vmatpush1.msra.mxu0 %v1863
        %1865 = vmatprep.subr.mxu0 0.0
        %1866 = vmatpush2.msra.mxu0 0.0
        %1867 = vmatprep.subr.mxu0 0.0
        %1868 = vmatpush2.msra.mxu0 0.0
        %1869 = vmatprep.subr.mxu0 0.0
        %1870 = vmatpush2.msra.mxu0 0.0
        %1871 = vmatprep.subr.mxu0 0.0
        %1872 = vmatpush2.msra.mxu0 0.0
        %1873 = vmatprep.subr.mxu0 0.0
        %1874 = vmatpush2.msra.mxu0 0.0
        %1875 = vmatprep.subr.mxu0 0.0
        %1876 = vmatpush2.msra.mxu0 0.0
        %1877 = vmatprep.subr.mxu0 0.0
        %1878 = vmatpush2.msra.mxu0 0.0
        %1879 = vmatprep.subr.mxu0 0.0
        %1880 = vmatpush2.msra.mxu0 0.0
        %1881 = vmatprep.subr.mxu0 0.0
        %1882 = vmatpush2.msra.mxu0 0.0
        %1883 = vmatprep.subr.mxu0 0.0
        %1884 = vmatpush2.msra.mxu0 0.0
        %1885 = vmatprep.subr.mxu0 0.0
        %1886 = vmatpush2.msra.mxu0 0.0
        %1887 = vmatprep.subr.mxu0 0.0
        %1888 = vmatpush2.msra.mxu0 0.0
        %1889 = vmatprep.subr.mxu0 0.0
        %1890 = vmatpush2.msra.mxu0 0.0
        %1891 = vmatprep.subr.mxu0 0.0
        %1892 = vmatpush2.msra.mxu0 0.0
        %1893 = vmatprep.subr.mxu0 0.0
        %1894 = vmatpush2.msra.mxu0 0.0
        %1895 = vmatprep.subr.mxu0 0.0
        %1896 = vmatpush2.msra.mxu0 0.0
        %1897 = vmatprep.mubr.f32.mxu0 0.0
        %v1898 = vand.u32 %v856, 4294901760
        %1899 = vmatmul.mubr.f32.gmra.mxu0 %v1898
        %v1900 = vpop.f32.mrf.mxu0
        %v1901 = vadd.f32 %v1739, %v1900
        %v1902 = vpop.f32.mrf.mxu0
        %1903 = vmatprep.mubr.f32.mxu0 0.0
        %v1904 = vand.u32 %v859, 4294901760
        %1905 = vmatmul.mubr.f32.gmra.mxu0 %v1904
        %v1906 = vpop.f32.mrf.mxu0
        %v1907 = vadd.f32 %v1745, %v1906
        %v1908 = vpop.f32.mrf.mxu0
        %1909 = vmatprep.mubr.f32.mxu0 0.0
        %v1910 = vand.u32 %v862, 4294901760
        %1911 = vmatmul.mubr.f32.gmra.mxu0 %v1910
        %v1912 = vpop.f32.mrf.mxu0
        %v1913 = vadd.f32 %v1751, %v1912
        %v1914 = vpop.f32.mrf.mxu0
        %1915 = vmatprep.mubr.f32.mxu0 0.0
        %v1916 = vand.u32 %v865, 4294901760
        %1917 = vmatmul.mubr.f32.gmra.mxu0 %v1916
        %v1918 = vpop.f32.mrf.mxu0
        %v1919 = vadd.f32 %v1757, %v1918
        %v1920 = vpop.f32.mrf.mxu0
        %1921 = vmatprep.mubr.f32.mxu0 0.0
        %v1922 = vand.u32 %v868, 4294901760
        %1923 = vmatmul.mubr.f32.gmra.mxu0 %v1922
        %v1924 = vpop.f32.mrf.mxu0
        %v1925 = vadd.f32 %v1763, %v1924
        %v1926 = vpop.f32.mrf.mxu0
        %1927 = vmatprep.mubr.f32.mxu0 0.0
        %v1928 = vand.u32 %v871, 4294901760
        %1929 = vmatmul.mubr.f32.gmra.mxu0 %v1928
        %v1930 = vpop.f32.mrf.mxu0
        %v1931 = vadd.f32 %v1769, %v1930
        %v1932 = vpop.f32.mrf.mxu0
        %1933 = vmatprep.mubr.f32.mxu0 0.0
        %v1934 = vand.u32 %v874, 4294901760
        %1935 = vmatmul.mubr.f32.gmra.mxu0 %v1934
        %v1936 = vpop.f32.mrf.mxu0
        %v1937 = vadd.f32 %v1775, %v1936
        %v1938 = vpop.f32.mrf.mxu0
        %1939 = vmatprep.mubr.f32.mxu0 0.0
        %v1940 = vand.u32 %v877, 4294901760
        %1941 = vmatmul.mubr.f32.gmra.mxu0 %v1940
        %v1942 = vpop.f32.mrf.mxu0
        %v1943 = vadd.f32 %v1781, %v1942
        %v1944 = vpop.f32.mrf.mxu0
        %1945 = vmatprep.mubr.f32.mxu0 0.0
        %v1946 = vand.u32 %v880, 4294901760
        %1947 = vmatmul.mubr.f32.gmra.mxu0 %v1946
        %v1948 = vpop.f32.mrf.mxu0
        %v1949 = vadd.f32 %v1787, %v1948
        %v1950 = vpop.f32.mrf.mxu0
        %1951 = vmatprep.mubr.f32.mxu0 0.0
        %v1952 = vand.u32 %v883, 4294901760
        %1953 = vmatmul.mubr.f32.gmra.mxu0 %v1952
        %v1954 = vpop.f32.mrf.mxu0
        %v1955 = vadd.f32 %v1793, %v1954
        %v1956 = vpop.f32.mrf.mxu0
        %1957 = vmatprep.mubr.f32.mxu0 0.0
        %v1958 = vand.u32 %v886, 4294901760
        %1959 = vmatmul.mubr.f32.gmra.mxu0 %v1958
        %v1960 = vpop.f32.mrf.mxu0
        %v1961 = vadd.f32 %v1799, %v1960
        %v1962 = vpop.f32.mrf.mxu0
        %1963 = vmatprep.mubr.f32.mxu0 0.0
        %v1964 = vand.u32 %v889, 4294901760
        %1965 = vmatmul.mubr.f32.gmra.mxu0 %v1964
        %v1966 = vpop.f32.mrf.mxu0
        %v1967 = vadd.f32 %v1805, %v1966
        %v1968 = vpop.f32.mrf.mxu0
        %1969 = vmatprep.mubr.f32.mxu0 0.0
        %v1970 = vand.u32 %v892, 4294901760
        %1971 = vmatmul.mubr.f32.gmra.mxu0 %v1970
        %v1972 = vpop.f32.mrf.mxu0
        %v1973 = vadd.f32 %v1811, %v1972
        %v1974 = vpop.f32.mrf.mxu0
        %1975 = vmatprep.mubr.f32.mxu0 0.0
        %v1976 = vand.u32 %v895, 4294901760
        %1977 = vmatmul.mubr.f32.gmra.mxu0 %v1976
        %v1978 = vpop.f32.mrf.mxu0
        %v1979 = vadd.f32 %v1817, %v1978
        %v1980 = vpop.f32.mrf.mxu0
        %1981 = vmatprep.mubr.f32.mxu0 0.0
        %v1982 = vand.u32 %v898, 4294901760
        %1983 = vmatmul.mubr.f32.gmra.mxu0 %v1982
        %v1984 = vpop.f32.mrf.mxu0
        %v1985 = vadd.f32 %v1823, %v1984
        %v1986 = vpop.f32.mrf.mxu0
        %1987 = vmatprep.mubr.f32.mxu0 0.0
        %v1988 = vand.u32 %v901, 4294901760
        %1989 = vmatmul.mubr.f32.gmra.mxu0 %v1988
        %v1990 = vpop.f32.mrf.mxu0
        %v1991 = vadd.f32 %v1829, %v1990
        %v1992 = vpop.f32.mrf.mxu0
        %1993 = vdwg.mxu0
        %vm1994 = vcmp.ge.f32.partialorder %v1901, 0.0
        %vm1995 = vcmp.ge.f32.partialorder %v1907, 0.0
        %vm1996 = vcmp.ge.f32.partialorder %v1913, 0.0
        %vm1997 = vcmp.ge.f32.partialorder %v1919, 0.0
        %vm1998 = vcmp.ge.f32.partialorder %v1925, 0.0
        %vm1999 = vcmp.ge.f32.partialorder %v1931, 0.0
        %vm2000 = vcmp.ge.f32.partialorder %v1937, 0.0
        %vm2001 = vcmp.ge.f32.partialorder %v1943, 0.0
        %vm2002 = vcmp.ge.f32.partialorder %v1949, 0.0
        %vm2003 = vcmp.ge.f32.partialorder %v1955, 0.0
        %vm2004 = vcmp.ge.f32.partialorder %v1961, 0.0
        %vm2005 = vcmp.ge.f32.partialorder %v1967, 0.0
        %vm2006 = vcmp.ge.f32.partialorder %v1973, 0.0
        %vm2007 = vcmp.ge.f32.partialorder %v1979, 0.0
        %vm2008 = vcmp.ge.f32.partialorder %v1985, 0.0
        %vm2009 = vcmp.ge.f32.partialorder %v1991, 0.0
        %v2010 = vmul.f32 %v1901, 0.2
        %v2011 = vmul.f32 %v1907, 0.2
        %v2012 = vmul.f32 %v1913, 0.2
        %v2013 = vmul.f32 %v1919, 0.2
        %v2014 = vmul.f32 %v1925, 0.2
        %v2015 = vmul.f32 %v1931, 0.2
        %v2016 = vmul.f32 %v1937, 0.2
        %v2017 = vmul.f32 %v1943, 0.2
        %v2018 = vmul.f32 %v1949, 0.2
        %v2019 = vmul.f32 %v1955, 0.2
        %v2020 = vmul.f32 %v1961, 0.2
        %v2021 = vmul.f32 %v1967, 0.2
        %v2022 = vmul.f32 %v1973, 0.2
        %v2023 = vmul.f32 %v1979, 0.2
        %v2024 = vmul.f32 %v1985, 0.2
        %v2025 = vmul.f32 %v1991, 0.2
        %v2026 = vsel %vm1994, %v1901, %v2010
        %v2027 = vsel %vm1995, %v1907, %v2011
        %v2028 = vsel %vm1996, %v1913, %v2012
        %v2029 = vsel %vm1997, %v1919, %v2013
        %v2030 = vsel %vm1998, %v1925, %v2014
        %v2031 = vsel %vm1999, %v1931, %v2015
        %v2032 = vsel %vm2000, %v1937, %v2016
        %v2033 = vsel %vm2001, %v1943, %v2017
        %v2034 = vsel %vm2002, %v1949, %v2018
        %v2035 = vsel %vm2003, %v1955, %v2019
        %v2036 = vsel %vm2004, %v1961, %v2020
        %v2037 = vsel %vm2005, %v1967, %v2021
        %v2038 = vsel %vm2006, %v1973, %v2022
        %v2039 = vsel %vm2007, %v1979, %v2023
        %v2040 = vsel %vm2008, %v1985, %v2024
        %v2041 = vsel %vm2009, %v1991, %v2025
        %v2042 = vsel %vm388, %v2026, -1e+12
        %v2043 = vsel %vm389, %v2027, -1e+12
        %v2044 = vsel %vm390, %v2028, -1e+12
        %v2045 = vsel %vm391, %v2029, -1e+12
        %v2046 = vsel %vm392, %v2030, -1e+12
        %v2047 = vsel %vm393, %v2031, -1e+12
        %v2048 = vsel %vm394, %v2032, -1e+12
        %v2049 = vsel %vm395, %v2033, -1e+12
        %v2050 = vsel %vm396, %v2034, -1e+12
        %v2051 = vsel %vm397, %v2035, -1e+12
        %v2052 = vsel %vm398, %v2036, -1e+12
        %v2053 = vsel %vm399, %v2037, -1e+12
        %v2054 = vsel %vm400, %v2038, -1e+12
        %v2055 = vsel %vm401, %v2039, -1e+12
        %v2056 = vsel %vm402, %v2040, -1e+12
        %v2057 = vsel %vm403, %v2041, -1e+12
        %2058 = vmax.xlane.f32.xlu0 %v2042
        %v2059 = vpop.xlane.xlu0 %2058
        %2060 = vmax.xlane.f32.xlu0 %v2043
        %v2061 = vpop.xlane.xlu0 %2060
        %2062 = vmax.xlane.f32.xlu0 %v2044
        %v2063 = vpop.xlane.xlu0 %2062
        %2064 = vmax.xlane.f32.xlu0 %v2045
        %v2065 = vpop.xlane.xlu0 %2064
        %2066 = vmax.xlane.f32.xlu0 %v2046
        %v2067 = vpop.xlane.xlu0 %2066
        %2068 = vmax.xlane.f32.xlu0 %v2047
        %v2069 = vpop.xlane.xlu0 %2068
        %2070 = vmax.xlane.f32.xlu0 %v2048
        %v2071 = vpop.xlane.xlu0 %2070
        %2072 = vmax.xlane.f32.xlu0 %v2049
        %v2073 = vpop.xlane.xlu0 %2072
        %2074 = vmax.xlane.f32.xlu0 %v2050
        %v2075 = vpop.xlane.xlu0 %2074
        %2076 = vmax.xlane.f32.xlu0 %v2051
        %v2077 = vpop.xlane.xlu0 %2076
        %2078 = vmax.xlane.f32.xlu0 %v2052
        %v2079 = vpop.xlane.xlu0 %2078
        %2080 = vmax.xlane.f32.xlu0 %v2053
        %v2081 = vpop.xlane.xlu0 %2080
        %2082 = vmax.xlane.f32.xlu0 %v2054
        %v2083 = vpop.xlane.xlu0 %2082
        %2084 = vmax.xlane.f32.xlu0 %v2055
        %v2085 = vpop.xlane.xlu0 %2084
        %2086 = vmax.xlane.f32.xlu0 %v2056
        %v2087 = vpop.xlane.xlu0 %2086
        %2088 = vmax.xlane.f32.xlu0 %v2057
        %v2089 = vpop.xlane.xlu0 %2088
        %v2090 = vsub.f32 %v2042, %v2059
        %v2091 = vsub.f32 %v2043, %v2061
        %v2092 = vsub.f32 %v2044, %v2063
        %v2093 = vsub.f32 %v2045, %v2065
        %v2094 = vsub.f32 %v2046, %v2067
        %v2095 = vsub.f32 %v2047, %v2069
        %v2096 = vsub.f32 %v2048, %v2071
        %v2097 = vsub.f32 %v2049, %v2073
        %v2098 = vsub.f32 %v2050, %v2075
        %v2099 = vsub.f32 %v2051, %v2077
        %v2100 = vsub.f32 %v2052, %v2079
        %v2101 = vsub.f32 %v2053, %v2081
        %v2102 = vsub.f32 %v2054, %v2083
        %v2103 = vsub.f32 %v2055, %v2085
        %v2104 = vsub.f32 %v2056, %v2087
        %v2105 = vsub.f32 %v2057, %v2089
        %v2106 = vmul.f32 %v2090, 1.442695
        %v2107 = vpow.pop %v2106
        %v2108 = vmul.f32 %v2091, 1.442695
        %v2109 = vpow.pop %v2108
        %v2110 = vmul.f32 %v2092, 1.442695
        %v2111 = vpow.pop %v2110
        %v2112 = vmul.f32 %v2093, 1.442695
        %v2113 = vpow.pop %v2112
        %v2114 = vmul.f32 %v2094, 1.442695
        %v2115 = vpow.pop %v2114
        %v2116 = vmul.f32 %v2095, 1.442695
        %v2117 = vpow.pop %v2116
        %v2118 = vmul.f32 %v2096, 1.442695
        %v2119 = vpow.pop %v2118
        %v2120 = vmul.f32 %v2097, 1.442695
        %v2121 = vpow.pop %v2120
        %v2122 = vmul.f32 %v2098, 1.442695
        %v2123 = vpow.pop %v2122
        %v2124 = vmul.f32 %v2099, 1.442695
        %v2125 = vpow.pop %v2124
        %v2126 = vmul.f32 %v2100, 1.442695
        %v2127 = vpow.pop %v2126
        %v2128 = vmul.f32 %v2101, 1.442695
        %v2129 = vpow.pop %v2128
        %v2130 = vmul.f32 %v2102, 1.442695
        %v2131 = vpow.pop %v2130
        %v2132 = vmul.f32 %v2103, 1.442695
        %v2133 = vpow.pop %v2132
        %v2134 = vmul.f32 %v2104, 1.442695
        %v2135 = vpow.pop %v2134
        %v2136 = vmul.f32 %v2105, 1.442695
        %v2137 = vpow.pop %v2136
        %2138 = vadd.xlane.f32.xlu0 %v2107
        %v2139 = vpop.xlane.xlu0 %2138
        %2140 = vadd.xlane.f32.xlu0 %v2109
        %v2141 = vpop.xlane.xlu0 %2140
        %2142 = vadd.xlane.f32.xlu0 %v2111
        %v2143 = vpop.xlane.xlu0 %2142
        %2144 = vadd.xlane.f32.xlu0 %v2113
        %v2145 = vpop.xlane.xlu0 %2144
        %2146 = vadd.xlane.f32.xlu0 %v2115
        %v2147 = vpop.xlane.xlu0 %2146
        %2148 = vadd.xlane.f32.xlu0 %v2117
        %v2149 = vpop.xlane.xlu0 %2148
        %2150 = vadd.xlane.f32.xlu0 %v2119
        %v2151 = vpop.xlane.xlu0 %2150
        %2152 = vadd.xlane.f32.xlu0 %v2121
        %v2153 = vpop.xlane.xlu0 %2152
        %2154 = vadd.xlane.f32.xlu0 %v2123
        %v2155 = vpop.xlane.xlu0 %2154
        %2156 = vadd.xlane.f32.xlu0 %v2125
        %v2157 = vpop.xlane.xlu0 %2156
        %2158 = vadd.xlane.f32.xlu0 %v2127
        %v2159 = vpop.xlane.xlu0 %2158
        %2160 = vadd.xlane.f32.xlu0 %v2129
        %v2161 = vpop.xlane.xlu0 %2160
        %2162 = vadd.xlane.f32.xlu0 %v2131
        %v2163 = vpop.xlane.xlu0 %2162
        %2164 = vadd.xlane.f32.xlu0 %v2133
        %v2165 = vpop.xlane.xlu0 %2164
        %2166 = vadd.xlane.f32.xlu0 %v2135
        %v2167 = vpop.xlane.xlu0 %2166
        %2168 = vadd.xlane.f32.xlu0 %v2137
        %v2169 = vpop.xlane.xlu0 %2168
        %v2170 = vrcp.pop %v2139
        %v2171 = vmul.f32 %v2107, %v2170
        %v2172 = vrcp.pop %v2141
        %v2173 = vmul.f32 %v2109, %v2172
        %v2174 = vrcp.pop %v2143
        %v2175 = vmul.f32 %v2111, %v2174
        %v2176 = vrcp.pop %v2145
        %v2177 = vmul.f32 %v2113, %v2176
        %v2178 = vrcp.pop %v2147
        %v2179 = vmul.f32 %v2115, %v2178
        %v2180 = vrcp.pop %v2149
        %v2181 = vmul.f32 %v2117, %v2180
        %v2182 = vrcp.pop %v2151
        %v2183 = vmul.f32 %v2119, %v2182
        %v2184 = vrcp.pop %v2153
        %v2185 = vmul.f32 %v2121, %v2184
        %v2186 = vrcp.pop %v2155
        %v2187 = vmul.f32 %v2123, %v2186
        %v2188 = vrcp.pop %v2157
        %v2189 = vmul.f32 %v2125, %v2188
        %v2190 = vrcp.pop %v2159
        %v2191 = vmul.f32 %v2127, %v2190
        %v2192 = vrcp.pop %v2161
        %v2193 = vmul.f32 %v2129, %v2192
        %v2194 = vrcp.pop %v2163
        %v2195 = vmul.f32 %v2131, %v2194
        %v2196 = vrcp.pop %v2165
        %v2197 = vmul.f32 %v2133, %v2196
        %v2198 = vrcp.pop %v2167
        %v2199 = vmul.f32 %v2135, %v2198
        %v2200 = vrcp.pop %v2169
        %v2201 = vmul.f32 %v2137, %v2200
        %v2202 = vsel %vm388, %v2171, 0.0
        %v2203 = vsel %vm389, %v2173, 0.0
        %v2204 = vsel %vm390, %v2175, 0.0
        %v2205 = vsel %vm391, %v2177, 0.0
        %v2206 = vsel %vm392, %v2179, 0.0
        %v2207 = vsel %vm393, %v2181, 0.0
        %v2208 = vsel %vm394, %v2183, 0.0
        %v2209 = vsel %vm395, %v2185, 0.0
        %v2210 = vsel %vm396, %v2187, 0.0
        %v2211 = vsel %vm397, %v2189, 0.0
        %v2212 = vsel %vm398, %v2191, 0.0
        %v2213 = vsel %vm399, %v2193, 0.0
        %v2214 = vsel %vm400, %v2195, 0.0
        %v2215 = vsel %vm401, %v2197, 0.0
        %v2216 = vsel %vm402, %v2199, 0.0
        %v2217 = vsel %vm403, %v2201, 0.0
        %2218 = vst [vmem:[#allocation2] sm:$0xff] %v335
        %2219 = vmatprep.subr.mxu0 0.0
        %v2220 = vand.u32 %v2217, 4294901760
        %2221 = vmatpush1.msra.mxu0 %v2220
        %2222 = vmatprep.subr.mxu0 0.0
        %v2223 = vand.u32 %v2216, 4294901760
        %2224 = vmatpush1.msra.mxu0 %v2223
        %2225 = vmatprep.subr.mxu0 0.0
        %v2226 = vand.u32 %v2215, 4294901760
        %2227 = vmatpush1.msra.mxu0 %v2226
        %2228 = vmatprep.subr.mxu0 0.0
        %v2229 = vand.u32 %v2214, 4294901760
        %2230 = vmatpush1.msra.mxu0 %v2229
        %2231 = vmatprep.subr.mxu0 0.0
        %v2232 = vand.u32 %v2213, 4294901760
        %2233 = vmatpush1.msra.mxu0 %v2232
        %2234 = vmatprep.subr.mxu0 0.0
        %v2235 = vand.u32 %v2212, 4294901760
        %2236 = vmatpush1.msra.mxu0 %v2235
        %2237 = vmatprep.subr.mxu0 0.0
        %v2238 = vand.u32 %v2211, 4294901760
        %2239 = vmatpush1.msra.mxu0 %v2238
        %2240 = vmatprep.subr.mxu0 0.0
        %v2241 = vand.u32 %v2210, 4294901760
        %2242 = vmatpush1.msra.mxu0 %v2241
        %2243 = vmatprep.subr.mxu0 0.0
        %v2244 = vand.u32 %v2209, 4294901760
        %2245 = vmatpush1.msra.mxu0 %v2244
        %2246 = vmatprep.subr.mxu0 0.0
        %v2247 = vand.u32 %v2208, 4294901760
        %2248 = vmatpush1.msra.mxu0 %v2247
        %2249 = vmatprep.subr.mxu0 0.0
        %v2250 = vand.u32 %v2207, 4294901760
        %2251 = vmatpush1.msra.mxu0 %v2250
        %2252 = vmatprep.subr.mxu0 0.0
        %v2253 = vand.u32 %v2206, 4294901760
        %2254 = vmatpush1.msra.mxu0 %v2253
        %2255 = vmatprep.subr.mxu0 0.0
        %v2256 = vand.u32 %v2205, 4294901760
        %2257 = vmatpush1.msra.mxu0 %v2256
        %2258 = vmatprep.subr.mxu0 0.0
        %v2259 = vand.u32 %v2204, 4294901760
        %2260 = vmatpush1.msra.mxu0 %v2259
        %2261 = vmatprep.subr.mxu0 0.0
        %v2262 = vand.u32 %v2203, 4294901760
        %2263 = vmatpush1.msra.mxu0 %v2262
        %2264 = vmatprep.subr.mxu0 0.0
        %v2265 = vand.u32 %v2202, 4294901760
        %2266 = vmatpush1.msra.mxu0 %v2265
        %2267 = vmatprep.subr.mxu0 0.0
        %2268 = vmatpush2.msra.mxu0 0.0
        %2269 = vmatprep.subr.mxu0 0.0
        %2270 = vmatpush2.msra.mxu0 0.0
        %2271 = vmatprep.subr.mxu0 0.0
        %2272 = vmatpush2.msra.mxu0 0.0
        %2273 = vmatprep.subr.mxu0 0.0
        %2274 = vmatpush2.msra.mxu0 0.0
        %2275 = vmatprep.subr.mxu0 0.0
        %2276 = vmatpush2.msra.mxu0 0.0
        %2277 = vmatprep.subr.mxu0 0.0
        %2278 = vmatpush2.msra.mxu0 0.0
        %2279 = vmatprep.subr.mxu0 0.0
        %2280 = vmatpush2.msra.mxu0 0.0
        %2281 = vmatprep.subr.mxu0 0.0
        %2282 = vmatpush2.msra.mxu0 0.0
        %2283 = vmatprep.subr.mxu0 0.0
        %2284 = vmatpush2.msra.mxu0 0.0
        %2285 = vmatprep.subr.mxu0 0.0
        %2286 = vmatpush2.msra.mxu0 0.0
        %2287 = vmatprep.subr.mxu0 0.0
        %2288 = vmatpush2.msra.mxu0 0.0
        %2289 = vmatprep.subr.mxu0 0.0
        %2290 = vmatpush2.msra.mxu0 0.0
        %2291 = vmatprep.subr.mxu0 0.0
        %2292 = vmatpush2.msra.mxu0 0.0
        %2293 = vmatprep.subr.mxu0 0.0
        %2294 = vmatpush2.msra.mxu0 0.0
        %2295 = vmatprep.subr.mxu0 0.0
        %2296 = vmatpush2.msra.mxu0 0.0
        %2297 = vmatprep.subr.mxu0 0.0
        %2298 = vmatpush2.msra.mxu0 0.0
        %2299 = vmatprep.mubr.f32.mxu0 0.0
        %v2300 = vand.u32 %v335, 4294901760
        %v2301 = vsub.f32 %v335, %v2300
        %v2302 = vand.u32 %v2301, 4294901760
        %v2303 = vsub.f32 %v2301, %v2302
        %v2304 = vand.u32 %v2303, 4294901760
        %2305 = vmatmul.mubr.f32.gmra.mxu0 %v2304
        %v2306 = vpop.f32.mrf.mxu0
        %v2307 = vadd.f32 0.0, %v2306
        %v2308 = vpop.f32.mrf.mxu0
        %2309 = vdwg.mxu0
        %2310 = vmatprep.subr.mxu0 0.0
        %v2311 = vand.u32 %v2217, 4294901760
        %v2312 = vsub.f32 %v2217, %v2311
        %v2313 = vand.u32 %v2312, 4294901760
        %v2314 = vsub.f32 %v2312, %v2313
        %v2315 = vand.u32 %v2314, 4294901760
        %2316 = vmatpush1.msra.mxu0 %v2315
        %2317 = vmatprep.subr.mxu0 0.0
        %v2318 = vand.u32 %v2216, 4294901760
        %v2319 = vsub.f32 %v2216, %v2318
        %v2320 = vand.u32 %v2319, 4294901760
        %v2321 = vsub.f32 %v2319, %v2320
        %v2322 = vand.u32 %v2321, 4294901760
        %2323 = vmatpush1.msra.mxu0 %v2322
        %2324 = vmatprep.subr.mxu0 0.0
        %v2325 = vand.u32 %v2215, 4294901760
        %v2326 = vsub.f32 %v2215, %v2325
        %v2327 = vand.u32 %v2326, 4294901760
        %v2328 = vsub.f32 %v2326, %v2327
        %v2329 = vand.u32 %v2328, 4294901760
        %2330 = vmatpush1.msra.mxu0 %v2329
        %2331 = vmatprep.subr.mxu0 0.0
        %v2332 = vand.u32 %v2214, 4294901760
        %v2333 = vsub.f32 %v2214, %v2332
        %v2334 = vand.u32 %v2333, 4294901760
        %v2335 = vsub.f32 %v2333, %v2334
        %v2336 = vand.u32 %v2335, 4294901760
        %2337 = vmatpush1.msra.mxu0 %v2336
        %2338 = vmatprep.subr.mxu0 0.0
        %v2339 = vand.u32 %v2213, 4294901760
        %v2340 = vsub.f32 %v2213, %v2339
        %v2341 = vand.u32 %v2340, 4294901760
        %v2342 = vsub.f32 %v2340, %v2341
        %v2343 = vand.u32 %v2342, 4294901760
        %2344 = vmatpush1.msra.mxu0 %v2343
        %2345 = vmatprep.subr.mxu0 0.0
        %v2346 = vand.u32 %v2212, 4294901760
        %v2347 = vsub.f32 %v2212, %v2346
        %v2348 = vand.u32 %v2347, 4294901760
        %v2349 = vsub.f32 %v2347, %v2348
        %v2350 = vand.u32 %v2349, 4294901760
        %2351 = vmatpush1.msra.mxu0 %v2350
        %2352 = vmatprep.subr.mxu0 0.0
        %v2353 = vand.u32 %v2211, 4294901760
        %v2354 = vsub.f32 %v2211, %v2353
        %v2355 = vand.u32 %v2354, 4294901760
        %v2356 = vsub.f32 %v2354, %v2355
        %v2357 = vand.u32 %v2356, 4294901760
        %2358 = vmatpush1.msra.mxu0 %v2357
        %2359 = vmatprep.subr.mxu0 0.0
        %v2360 = vand.u32 %v2210, 4294901760
        %v2361 = vsub.f32 %v2210, %v2360
        %v2362 = vand.u32 %v2361, 4294901760
        %v2363 = vsub.f32 %v2361, %v2362
        %v2364 = vand.u32 %v2363, 4294901760
        %2365 = vmatpush1.msra.mxu0 %v2364
        %2366 = vmatprep.subr.mxu0 0.0
        %v2367 = vand.u32 %v2209, 4294901760
        %v2368 = vsub.f32 %v2209, %v2367
        %v2369 = vand.u32 %v2368, 4294901760
        %v2370 = vsub.f32 %v2368, %v2369
        %v2371 = vand.u32 %v2370, 4294901760
        %2372 = vmatpush1.msra.mxu0 %v2371
        %2373 = vmatprep.subr.mxu0 0.0
        %v2374 = vand.u32 %v2208, 4294901760
        %v2375 = vsub.f32 %v2208, %v2374
        %v2376 = vand.u32 %v2375, 4294901760
        %v2377 = vsub.f32 %v2375, %v2376
        %v2378 = vand.u32 %v2377, 4294901760
        %2379 = vmatpush1.msra.mxu0 %v2378
        %2380 = vmatprep.subr.mxu0 0.0
        %v2381 = vand.u32 %v2207, 4294901760
        %v2382 = vsub.f32 %v2207, %v2381
        %v2383 = vand.u32 %v2382, 4294901760
        %v2384 = vsub.f32 %v2382, %v2383
        %v2385 = vand.u32 %v2384, 4294901760
        %2386 = vmatpush1.msra.mxu0 %v2385
        %2387 = vmatprep.subr.mxu0 0.0
        %v2388 = vand.u32 %v2206, 4294901760
        %v2389 = vsub.f32 %v2206, %v2388
        %v2390 = vand.u32 %v2389, 4294901760
        %v2391 = vsub.f32 %v2389, %v2390
        %v2392 = vand.u32 %v2391, 4294901760
        %2393 = vmatpush1.msra.mxu0 %v2392
        %2394 = vmatprep.subr.mxu0 0.0
        %v2395 = vand.u32 %v2205, 4294901760
        %v2396 = vsub.f32 %v2205, %v2395
        %v2397 = vand.u32 %v2396, 4294901760
        %v2398 = vsub.f32 %v2396, %v2397
        %v2399 = vand.u32 %v2398, 4294901760
        %2400 = vmatpush1.msra.mxu0 %v2399
        %2401 = vmatprep.subr.mxu0 0.0
        %v2402 = vand.u32 %v2204, 4294901760
        %v2403 = vsub.f32 %v2204, %v2402
        %v2404 = vand.u32 %v2403, 4294901760
        %v2405 = vsub.f32 %v2403, %v2404
        %v2406 = vand.u32 %v2405, 4294901760
        %2407 = vmatpush1.msra.mxu0 %v2406
        %2408 = vmatprep.subr.mxu0 0.0
        %v2409 = vand.u32 %v2203, 4294901760
        %v2410 = vsub.f32 %v2203, %v2409
        %v2411 = vand.u32 %v2410, 4294901760
        %v2412 = vsub.f32 %v2410, %v2411
        %v2413 = vand.u32 %v2412, 4294901760
        %2414 = vmatpush1.msra.mxu0 %v2413
        %2415 = vmatprep.subr.mxu0 0.0
        %v2416 = vand.u32 %v2202, 4294901760
        %v2417 = vsub.f32 %v2202, %v2416
        %v2418 = vand.u32 %v2417, 4294901760
        %v2419 = vsub.f32 %v2417, %v2418
        %v2420 = vand.u32 %v2419, 4294901760
        %2421 = vmatpush1.msra.mxu0 %v2420
        %2422 = vmatprep.subr.mxu0 0.0
        %2423 = vmatpush2.msra.mxu0 0.0
        %2424 = vmatprep.subr.mxu0 0.0
        %2425 = vmatpush2.msra.mxu0 0.0
        %2426 = vmatprep.subr.mxu0 0.0
        %2427 = vmatpush2.msra.mxu0 0.0
        %2428 = vmatprep.subr.mxu0 0.0
        %2429 = vmatpush2.msra.mxu0 0.0
        %2430 = vmatprep.subr.mxu0 0.0
        %2431 = vmatpush2.msra.mxu0 0.0
        %2432 = vmatprep.subr.mxu0 0.0
        %2433 = vmatpush2.msra.mxu0 0.0
        %2434 = vmatprep.subr.mxu0 0.0
        %2435 = vmatpush2.msra.mxu0 0.0
        %2436 = vmatprep.subr.mxu0 0.0
        %2437 = vmatpush2.msra.mxu0 0.0
        %2438 = vmatprep.subr.mxu0 0.0
        %2439 = vmatpush2.msra.mxu0 0.0
        %2440 = vmatprep.subr.mxu0 0.0
        %2441 = vmatpush2.msra.mxu0 0.0
        %2442 = vmatprep.subr.mxu0 0.0
        %2443 = vmatpush2.msra.mxu0 0.0
        %2444 = vmatprep.subr.mxu0 0.0
        %2445 = vmatpush2.msra.mxu0 0.0
        %2446 = vmatprep.subr.mxu0 0.0
        %2447 = vmatpush2.msra.mxu0 0.0
        %2448 = vmatprep.subr.mxu0 0.0
        %2449 = vmatpush2.msra.mxu0 0.0
        %2450 = vmatprep.subr.mxu0 0.0
        %2451 = vmatpush2.msra.mxu0 0.0
        %2452 = vmatprep.subr.mxu0 0.0
        %2453 = vmatpush2.msra.mxu0 0.0
        %2454 = vmatprep.mubr.f32.mxu0 0.0
        %v2455 = vand.u32 %v335, 4294901760
        %2456 = vmatmul.mubr.f32.gmra.mxu0 %v2455
        %v2457 = vpop.f32.mrf.mxu0
        %v2458 = vadd.f32 %v2307, %v2457
        %v2459 = vpop.f32.mrf.mxu0
        %2460 = vdwg.mxu0
        %2461 = vmatprep.subr.mxu0 0.0
        %v2462 = vand.u32 %v2217, 4294901760
        %v2463 = vsub.f32 %v2217, %v2462
        %2464 = vmatpush1.msra.mxu0 %v2463
        %2465 = vmatprep.subr.mxu0 0.0
        %v2466 = vand.u32 %v2216, 4294901760
        %v2467 = vsub.f32 %v2216, %v2466
        %2468 = vmatpush1.msra.mxu0 %v2467
        %2469 = vmatprep.subr.mxu0 0.0
        %v2470 = vand.u32 %v2215, 4294901760
        %v2471 = vsub.f32 %v2215, %v2470
        %2472 = vmatpush1.msra.mxu0 %v2471
        %2473 = vmatprep.subr.mxu0 0.0
        %v2474 = vand.u32 %v2214, 4294901760
        %v2475 = vsub.f32 %v2214, %v2474
        %2476 = vmatpush1.msra.mxu0 %v2475
        %2477 = vmatprep.subr.mxu0 0.0
        %v2478 = vand.u32 %v2213, 4294901760
        %v2479 = vsub.f32 %v2213, %v2478
        %2480 = vmatpush1.msra.mxu0 %v2479
        %2481 = vmatprep.subr.mxu0 0.0
        %v2482 = vand.u32 %v2212, 4294901760
        %v2483 = vsub.f32 %v2212, %v2482
        %2484 = vmatpush1.msra.mxu0 %v2483
        %2485 = vmatprep.subr.mxu0 0.0
        %v2486 = vand.u32 %v2211, 4294901760
        %v2487 = vsub.f32 %v2211, %v2486
        %2488 = vmatpush1.msra.mxu0 %v2487
        %2489 = vmatprep.subr.mxu0 0.0
        %v2490 = vand.u32 %v2210, 4294901760
        %v2491 = vsub.f32 %v2210, %v2490
        %2492 = vmatpush1.msra.mxu0 %v2491
        %2493 = vmatprep.subr.mxu0 0.0
        %v2494 = vand.u32 %v2209, 4294901760
        %v2495 = vsub.f32 %v2209, %v2494
        %2496 = vmatpush1.msra.mxu0 %v2495
        %2497 = vmatprep.subr.mxu0 0.0
        %v2498 = vand.u32 %v2208, 4294901760
        %v2499 = vsub.f32 %v2208, %v2498
        %2500 = vmatpush1.msra.mxu0 %v2499
        %2501 = vmatprep.subr.mxu0 0.0
        %v2502 = vand.u32 %v2207, 4294901760
        %v2503 = vsub.f32 %v2207, %v2502
        %2504 = vmatpush1.msra.mxu0 %v2503
        %2505 = vmatprep.subr.mxu0 0.0
        %v2506 = vand.u32 %v2206, 4294901760
        %v2507 = vsub.f32 %v2206, %v2506
        %2508 = vmatpush1.msra.mxu0 %v2507
        %2509 = vmatprep.subr.mxu0 0.0
        %v2510 = vand.u32 %v2205, 4294901760
        %v2511 = vsub.f32 %v2205, %v2510
        %2512 = vmatpush1.msra.mxu0 %v2511
        %2513 = vmatprep.subr.mxu0 0.0
        %v2514 = vand.u32 %v2204, 4294901760
        %v2515 = vsub.f32 %v2204, %v2514
        %2516 = vmatpush1.msra.mxu0 %v2515
        %2517 = vmatprep.subr.mxu0 0.0
        %v2518 = vand.u32 %v2203, 4294901760
        %v2519 = vsub.f32 %v2203, %v2518
        %2520 = vmatpush1.msra.mxu0 %v2519
        %2521 = vmatprep.subr.mxu0 0.0
        %v2522 = vand.u32 %v2202, 4294901760
        %v2523 = vsub.f32 %v2202, %v2522
        %2524 = vmatpush1.msra.mxu0 %v2523
        %2525 = vmatprep.subr.mxu0 0.0
        %2526 = vmatpush2.msra.mxu0 0.0
        %2527 = vmatprep.subr.mxu0 0.0
        %2528 = vmatpush2.msra.mxu0 0.0
        %2529 = vmatprep.subr.mxu0 0.0
        %2530 = vmatpush2.msra.mxu0 0.0
        %2531 = vmatprep.subr.mxu0 0.0
        %2532 = vmatpush2.msra.mxu0 0.0
        %2533 = vmatprep.subr.mxu0 0.0
        %2534 = vmatpush2.msra.mxu0 0.0
        %2535 = vmatprep.subr.mxu0 0.0
        %2536 = vmatpush2.msra.mxu0 0.0
        %2537 = vmatprep.subr.mxu0 0.0
        %2538 = vmatpush2.msra.mxu0 0.0
        %2539 = vmatprep.subr.mxu0 0.0
        %2540 = vmatpush2.msra.mxu0 0.0
        %2541 = vmatprep.subr.mxu0 0.0
        %2542 = vmatpush2.msra.mxu0 0.0
        %2543 = vmatprep.subr.mxu0 0.0
        %2544 = vmatpush2.msra.mxu0 0.0
        %2545 = vmatprep.subr.mxu0 0.0
        %2546 = vmatpush2.msra.mxu0 0.0
        %2547 = vmatprep.subr.mxu0 0.0
        %2548 = vmatpush2.msra.mxu0 0.0
        %2549 = vmatprep.subr.mxu0 0.0
        %2550 = vmatpush2.msra.mxu0 0.0
        %2551 = vmatprep.subr.mxu0 0.0
        %2552 = vmatpush2.msra.mxu0 0.0
        %2553 = vmatprep.subr.mxu0 0.0
        %2554 = vmatpush2.msra.mxu0 0.0
        %2555 = vmatprep.subr.mxu0 0.0
        %2556 = vmatpush2.msra.mxu0 0.0
        %2557 = vmatprep.mubr.f32.mxu0 0.0
        %v2558 = vand.u32 %v335, 4294901760
        %v2559 = vsub.f32 %v335, %v2558
        %2560 = vmatmul.mubr.f32.gmra.mxu0 %v2559
        %v2561 = vpop.f32.mrf.mxu0
        %v2562 = vadd.f32 %v2458, %v2561
        %v2563 = vpop.f32.mrf.mxu0
        %2564 = vdwg.mxu0
        %2565 = vmatprep.subr.mxu0 0.0
        %v2566 = vand.u32 %v2217, 4294901760
        %2567 = vmatpush1.msra.mxu0 %v2566
        %2568 = vmatprep.subr.mxu0 0.0
        %v2569 = vand.u32 %v2216, 4294901760
        %2570 = vmatpush1.msra.mxu0 %v2569
        %2571 = vmatprep.subr.mxu0 0.0
        %v2572 = vand.u32 %v2215, 4294901760
        %2573 = vmatpush1.msra.mxu0 %v2572
        %2574 = vmatprep.subr.mxu0 0.0
        %v2575 = vand.u32 %v2214, 4294901760
        %2576 = vmatpush1.msra.mxu0 %v2575
        %2577 = vmatprep.subr.mxu0 0.0
        %v2578 = vand.u32 %v2213, 4294901760
        %2579 = vmatpush1.msra.mxu0 %v2578
        %2580 = vmatprep.subr.mxu0 0.0
        %v2581 = vand.u32 %v2212, 4294901760
        %2582 = vmatpush1.msra.mxu0 %v2581
        %2583 = vmatprep.subr.mxu0 0.0
        %v2584 = vand.u32 %v2211, 4294901760
        %2585 = vmatpush1.msra.mxu0 %v2584
        %2586 = vmatprep.subr.mxu0 0.0
        %v2587 = vand.u32 %v2210, 4294901760
        %2588 = vmatpush1.msra.mxu0 %v2587
        %2589 = vmatprep.subr.mxu0 0.0
        %v2590 = vand.u32 %v2209, 4294901760
        %2591 = vmatpush1.msra.mxu0 %v2590
        %2592 = vmatprep.subr.mxu0 0.0
        %v2593 = vand.u32 %v2208, 4294901760
        %2594 = vmatpush1.msra.mxu0 %v2593
        %2595 = vmatprep.subr.mxu0 0.0
        %v2596 = vand.u32 %v2207, 4294901760
        %2597 = vmatpush1.msra.mxu0 %v2596
        %2598 = vmatprep.subr.mxu0 0.0
        %v2599 = vand.u32 %v2206, 4294901760
        %2600 = vmatpush1.msra.mxu0 %v2599
        %2601 = vmatprep.subr.mxu0 0.0
        %v2602 = vand.u32 %v2205, 4294901760
        %2603 = vmatpush1.msra.mxu0 %v2602
        %2604 = vmatprep.subr.mxu0 0.0
        %v2605 = vand.u32 %v2204, 4294901760
        %2606 = vmatpush1.msra.mxu0 %v2605
        %2607 = vmatprep.subr.mxu0 0.0
        %v2608 = vand.u32 %v2203, 4294901760
        %2609 = vmatpush1.msra.mxu0 %v2608
        %2610 = vmatprep.subr.mxu0 0.0
        %v2611 = vand.u32 %v2202, 4294901760
        %2612 = vmatpush1.msra.mxu0 %v2611
        %2613 = vmatprep.subr.mxu0 0.0
        %2614 = vmatpush2.msra.mxu0 0.0
        %2615 = vmatprep.subr.mxu0 0.0
        %2616 = vmatpush2.msra.mxu0 0.0
        %2617 = vmatprep.subr.mxu0 0.0
        %2618 = vmatpush2.msra.mxu0 0.0
        %2619 = vmatprep.subr.mxu0 0.0
        %2620 = vmatpush2.msra.mxu0 0.0
        %2621 = vmatprep.subr.mxu0 0.0
        %2622 = vmatpush2.msra.mxu0 0.0
        %2623 = vmatprep.subr.mxu0 0.0
        %2624 = vmatpush2.msra.mxu0 0.0
        %2625 = vmatprep.subr.mxu0 0.0
        %2626 = vmatpush2.msra.mxu0 0.0
        %2627 = vmatprep.subr.mxu0 0.0
        %2628 = vmatpush2.msra.mxu0 0.0
        %2629 = vmatprep.subr.mxu0 0.0
        %2630 = vmatpush2.msra.mxu0 0.0
        %2631 = vmatprep.subr.mxu0 0.0
        %2632 = vmatpush2.msra.mxu0 0.0
        %2633 = vmatprep.subr.mxu0 0.0
        %2634 = vmatpush2.msra.mxu0 0.0
        %2635 = vmatprep.subr.mxu0 0.0
        %2636 = vmatpush2.msra.mxu0 0.0
        %2637 = vmatprep.subr.mxu0 0.0
        %2638 = vmatpush2.msra.mxu0 0.0
        %2639 = vmatprep.subr.mxu0 0.0
        %2640 = vmatpush2.msra.mxu0 0.0
        %2641 = vmatprep.subr.mxu0 0.0
        %2642 = vmatpush2.msra.mxu0 0.0
        %2643 = vmatprep.subr.mxu0 0.0
        %2644 = vmatpush2.msra.mxu0 0.0
        %2645 = vmatprep.mubr.f32.mxu0 0.0
        %v2646 = vand.u32 %v335, 4294901760
        %v2647 = vsub.f32 %v335, %v2646
        %v2648 = vand.u32 %v2647, 4294901760
        %2649 = vmatmul.mubr.f32.gmra.mxu0 %v2648
        %v2650 = vpop.f32.mrf.mxu0
        %v2651 = vadd.f32 %v2562, %v2650
        %v2652 = vpop.f32.mrf.mxu0
        %2653 = vdwg.mxu0
        %2654 = vmatprep.subr.mxu0 0.0
        %v2655 = vand.u32 %v2217, 4294901760
        %v2656 = vsub.f32 %v2217, %v2655
        %v2657 = vand.u32 %v2656, 4294901760
        %2658 = vmatpush1.msra.mxu0 %v2657
        %2659 = vmatprep.subr.mxu0 0.0
        %v2660 = vand.u32 %v2216, 4294901760
        %v2661 = vsub.f32 %v2216, %v2660
        %v2662 = vand.u32 %v2661, 4294901760
        %2663 = vmatpush1.msra.mxu0 %v2662
        %2664 = vmatprep.subr.mxu0 0.0
        %v2665 = vand.u32 %v2215, 4294901760
        %v2666 = vsub.f32 %v2215, %v2665
        %v2667 = vand.u32 %v2666, 4294901760
        %2668 = vmatpush1.msra.mxu0 %v2667
        %2669 = vmatprep.subr.mxu0 0.0
        %v2670 = vand.u32 %v2214, 4294901760
        %v2671 = vsub.f32 %v2214, %v2670
        %v2672 = vand.u32 %v2671, 4294901760
        %2673 = vmatpush1.msra.mxu0 %v2672
        %2674 = vmatprep.subr.mxu0 0.0
        %v2675 = vand.u32 %v2213, 4294901760
        %v2676 = vsub.f32 %v2213, %v2675
        %v2677 = vand.u32 %v2676, 4294901760
        %2678 = vmatpush1.msra.mxu0 %v2677
        %2679 = vmatprep.subr.mxu0 0.0
        %v2680 = vand.u32 %v2212, 4294901760
        %v2681 = vsub.f32 %v2212, %v2680
        %v2682 = vand.u32 %v2681, 4294901760
        %2683 = vmatpush1.msra.mxu0 %v2682
        %2684 = vmatprep.subr.mxu0 0.0
        %v2685 = vand.u32 %v2211, 4294901760
        %v2686 = vsub.f32 %v2211, %v2685
        %v2687 = vand.u32 %v2686, 4294901760
        %2688 = vmatpush1.msra.mxu0 %v2687
        %2689 = vmatprep.subr.mxu0 0.0
        %v2690 = vand.u32 %v2210, 4294901760
        %v2691 = vsub.f32 %v2210, %v2690
        %v2692 = vand.u32 %v2691, 4294901760
        %2693 = vmatpush1.msra.mxu0 %v2692
        %2694 = vmatprep.subr.mxu0 0.0
        %v2695 = vand.u32 %v2209, 4294901760
        %v2696 = vsub.f32 %v2209, %v2695
        %v2697 = vand.u32 %v2696, 4294901760
        %2698 = vmatpush1.msra.mxu0 %v2697
        %2699 = vmatprep.subr.mxu0 0.0
        %v2700 = vand.u32 %v2208, 4294901760
        %v2701 = vsub.f32 %v2208, %v2700
        %v2702 = vand.u32 %v2701, 4294901760
        %2703 = vmatpush1.msra.mxu0 %v2702
        %2704 = vmatprep.subr.mxu0 0.0
        %v2705 = vand.u32 %v2207, 4294901760
        %v2706 = vsub.f32 %v2207, %v2705
        %v2707 = vand.u32 %v2706, 4294901760
        %2708 = vmatpush1.msra.mxu0 %v2707
        %2709 = vmatprep.subr.mxu0 0.0
        %v2710 = vand.u32 %v2206, 4294901760
        %v2711 = vsub.f32 %v2206, %v2710
        %v2712 = vand.u32 %v2711, 4294901760
        %2713 = vmatpush1.msra.mxu0 %v2712
        %2714 = vmatprep.subr.mxu0 0.0
        %v2715 = vand.u32 %v2205, 4294901760
        %v2716 = vsub.f32 %v2205, %v2715
        %v2717 = vand.u32 %v2716, 4294901760
        %2718 = vmatpush1.msra.mxu0 %v2717
        %2719 = vmatprep.subr.mxu0 0.0
        %v2720 = vand.u32 %v2204, 4294901760
        %v2721 = vsub.f32 %v2204, %v2720
        %v2722 = vand.u32 %v2721, 4294901760
        %2723 = vmatpush1.msra.mxu0 %v2722
        %2724 = vmatprep.subr.mxu0 0.0
        %v2725 = vand.u32 %v2203, 4294901760
        %v2726 = vsub.f32 %v2203, %v2725
        %v2727 = vand.u32 %v2726, 4294901760
        %2728 = vmatpush1.msra.mxu0 %v2727
        %2729 = vmatprep.subr.mxu0 0.0
        %v2730 = vand.u32 %v2202, 4294901760
        %v2731 = vsub.f32 %v2202, %v2730
        %v2732 = vand.u32 %v2731, 4294901760
        %2733 = vmatpush1.msra.mxu0 %v2732
        %2734 = vmatprep.subr.mxu0 0.0
        %2735 = vmatpush2.msra.mxu0 0.0
        %2736 = vmatprep.subr.mxu0 0.0
        %2737 = vmatpush2.msra.mxu0 0.0
        %2738 = vmatprep.subr.mxu0 0.0
        %2739 = vmatpush2.msra.mxu0 0.0
        %2740 = vmatprep.subr.mxu0 0.0
        %2741 = vmatpush2.msra.mxu0 0.0
        %2742 = vmatprep.subr.mxu0 0.0
        %2743 = vmatpush2.msra.mxu0 0.0
        %2744 = vmatprep.subr.mxu0 0.0
        %2745 = vmatpush2.msra.mxu0 0.0
        %2746 = vmatprep.subr.mxu0 0.0
        %2747 = vmatpush2.msra.mxu0 0.0
        %2748 = vmatprep.subr.mxu0 0.0
        %2749 = vmatpush2.msra.mxu0 0.0
        %2750 = vmatprep.subr.mxu0 0.0
        %2751 = vmatpush2.msra.mxu0 0.0
        %2752 = vmatprep.subr.mxu0 0.0
        %2753 = vmatpush2.msra.mxu0 0.0
        %2754 = vmatprep.subr.mxu0 0.0
        %2755 = vmatpush2.msra.mxu0 0.0
        %2756 = vmatprep.subr.mxu0 0.0
        %2757 = vmatpush2.msra.mxu0 0.0
        %2758 = vmatprep.subr.mxu0 0.0
        %2759 = vmatpush2.msra.mxu0 0.0
        %2760 = vmatprep.subr.mxu0 0.0
        %2761 = vmatpush2.msra.mxu0 0.0
        %2762 = vmatprep.subr.mxu0 0.0
        %2763 = vmatpush2.msra.mxu0 0.0
        %2764 = vmatprep.subr.mxu0 0.0
        %2765 = vmatpush2.msra.mxu0 0.0
        %2766 = vmatprep.mubr.f32.mxu0 0.0
        %v2767 = vand.u32 %v335, 4294901760
        %2768 = vmatmul.mubr.f32.gmra.mxu0 %v2767
        %v2769 = vpop.f32.mrf.mxu0
        %v2770 = vadd.f32 %v2651, %v2769
        %v2771 = vpop.f32.mrf.mxu0
        %2772 = vdwg.mxu0
        %2773 = vmatprep.subr.mxu0 0.0
        %v2774 = vand.u32 %v2217, 4294901760
        %2775 = vmatpush1.msra.mxu0 %v2774
        %2776 = vmatprep.subr.mxu0 0.0
        %v2777 = vand.u32 %v2216, 4294901760
        %2778 = vmatpush1.msra.mxu0 %v2777
        %2779 = vmatprep.subr.mxu0 0.0
        %v2780 = vand.u32 %v2215, 4294901760
        %2781 = vmatpush1.msra.mxu0 %v2780
        %2782 = vmatprep.subr.mxu0 0.0
        %v2783 = vand.u32 %v2214, 4294901760
        %2784 = vmatpush1.msra.mxu0 %v2783
        %2785 = vmatprep.subr.mxu0 0.0
        %v2786 = vand.u32 %v2213, 4294901760
        %2787 = vmatpush1.msra.mxu0 %v2786
        %2788 = vmatprep.subr.mxu0 0.0
        %v2789 = vand.u32 %v2212, 4294901760
        %2790 = vmatpush1.msra.mxu0 %v2789
        %2791 = vmatprep.subr.mxu0 0.0
        %v2792 = vand.u32 %v2211, 4294901760
        %2793 = vmatpush1.msra.mxu0 %v2792
        %2794 = vmatprep.subr.mxu0 0.0
        %v2795 = vand.u32 %v2210, 4294901760
        %2796 = vmatpush1.msra.mxu0 %v2795
        %2797 = vmatprep.subr.mxu0 0.0
        %v2798 = vand.u32 %v2209, 4294901760
        %2799 = vmatpush1.msra.mxu0 %v2798
        %2800 = vmatprep.subr.mxu0 0.0
        %v2801 = vand.u32 %v2208, 4294901760
        %2802 = vmatpush1.msra.mxu0 %v2801
        %2803 = vmatprep.subr.mxu0 0.0
        %v2804 = vand.u32 %v2207, 4294901760
        %2805 = vmatpush1.msra.mxu0 %v2804
        %2806 = vmatprep.subr.mxu0 0.0
        %v2807 = vand.u32 %v2206, 4294901760
        %2808 = vmatpush1.msra.mxu0 %v2807
        %2809 = vmatprep.subr.mxu0 0.0
        %v2810 = vand.u32 %v2205, 4294901760
        %2811 = vmatpush1.msra.mxu0 %v2810
        %2812 = vmatprep.subr.mxu0 0.0
        %v2813 = vand.u32 %v2204, 4294901760
        %2814 = vmatpush1.msra.mxu0 %v2813
        %2815 = vmatprep.subr.mxu0 0.0
        %v2816 = vand.u32 %v2203, 4294901760
        %2817 = vmatpush1.msra.mxu0 %v2816
        %2818 = vmatprep.subr.mxu0 0.0
        %v2819 = vand.u32 %v2202, 4294901760
        %2820 = vmatpush1.msra.mxu0 %v2819
        %2821 = vmatprep.subr.mxu0 0.0
        %2822 = vmatpush2.msra.mxu0 0.0
        %2823 = vmatprep.subr.mxu0 0.0
        %2824 = vmatpush2.msra.mxu0 0.0
        %2825 = vmatprep.subr.mxu0 0.0
        %2826 = vmatpush2.msra.mxu0 0.0
        %2827 = vmatprep.subr.mxu0 0.0
        %2828 = vmatpush2.msra.mxu0 0.0
        %2829 = vmatprep.subr.mxu0 0.0
        %2830 = vmatpush2.msra.mxu0 0.0
        %2831 = vmatprep.subr.mxu0 0.0
        %2832 = vmatpush2.msra.mxu0 0.0
        %2833 = vmatprep.subr.mxu0 0.0
        %2834 = vmatpush2.msra.mxu0 0.0
        %2835 = vmatprep.subr.mxu0 0.0
        %2836 = vmatpush2.msra.mxu0 0.0
        %2837 = vmatprep.subr.mxu0 0.0
        %2838 = vmatpush2.msra.mxu0 0.0
        %2839 = vmatprep.subr.mxu0 0.0
        %2840 = vmatpush2.msra.mxu0 0.0
        %2841 = vmatprep.subr.mxu0 0.0
        %2842 = vmatpush2.msra.mxu0 0.0
        %2843 = vmatprep.subr.mxu0 0.0
        %2844 = vmatpush2.msra.mxu0 0.0
        %2845 = vmatprep.subr.mxu0 0.0
        %2846 = vmatpush2.msra.mxu0 0.0
        %2847 = vmatprep.subr.mxu0 0.0
        %2848 = vmatpush2.msra.mxu0 0.0
        %2849 = vmatprep.subr.mxu0 0.0
        %2850 = vmatpush2.msra.mxu0 0.0
        %2851 = vmatprep.subr.mxu0 0.0
        %2852 = vmatpush2.msra.mxu0 0.0
        %2853 = vmatprep.mubr.f32.mxu0 0.0
        %v2854 = vand.u32 %v335, 4294901760
        %2855 = vmatmul.mubr.f32.gmra.mxu0 %v2854
        %v2856 = vpop.f32.mrf.mxu0
        %v2857 = vadd.f32 %v2770, %v2856
        %v2858 = vpop.f32.mrf.mxu0
        %2859 = vdwg.mxu0
        %2860 = vst [vmem:[#allocation2 + $0x8] sm:$0xff] %v2857
        %2861 = vmatprep.subr.mxu0 0.0
        %v2862 = vand.u32 %v2217, 4294901760
        %2863 = vmatpush1.msra.mxu0 %v2862
        %2864 = vmatprep.subr.mxu0 0.0
        %v2865 = vand.u32 %v2216, 4294901760
        %2866 = vmatpush1.msra.mxu0 %v2865
        %2867 = vmatprep.subr.mxu0 0.0
        %v2868 = vand.u32 %v2215, 4294901760
        %2869 = vmatpush1.msra.mxu0 %v2868
        %2870 = vmatprep.subr.mxu0 0.0
        %v2871 = vand.u32 %v2214, 4294901760
        %2872 = vmatpush1.msra.mxu0 %v2871
        %2873 = vmatprep.subr.mxu0 0.0
        %v2874 = vand.u32 %v2213, 4294901760
        %2875 = vmatpush1.msra.mxu0 %v2874
        %2876 = vmatprep.subr.mxu0 0.0
        %v2877 = vand.u32 %v2212, 4294901760
        %2878 = vmatpush1.msra.mxu0 %v2877
        %2879 = vmatprep.subr.mxu0 0.0
        %v2880 = vand.u32 %v2211, 4294901760
        %2881 = vmatpush1.msra.mxu0 %v2880
        %2882 = vmatprep.subr.mxu0 0.0
        %v2883 = vand.u32 %v2210, 4294901760
        %2884 = vmatpush1.msra.mxu0 %v2883
        %2885 = vmatprep.subr.mxu0 0.0
        %v2886 = vand.u32 %v2209, 4294901760
        %2887 = vmatpush1.msra.mxu0 %v2886
        %2888 = vmatprep.subr.mxu0 0.0
        %v2889 = vand.u32 %v2208, 4294901760
        %2890 = vmatpush1.msra.mxu0 %v2889
        %2891 = vmatprep.subr.mxu0 0.0
        %v2892 = vand.u32 %v2207, 4294901760
        %2893 = vmatpush1.msra.mxu0 %v2892
        %2894 = vmatprep.subr.mxu0 0.0
        %v2895 = vand.u32 %v2206, 4294901760
        %2896 = vmatpush1.msra.mxu0 %v2895
        %2897 = vmatprep.subr.mxu0 0.0
        %v2898 = vand.u32 %v2205, 4294901760
        %2899 = vmatpush1.msra.mxu0 %v2898
        %2900 = vmatprep.subr.mxu0 0.0
        %v2901 = vand.u32 %v2204, 4294901760
        %2902 = vmatpush1.msra.mxu0 %v2901
        %2903 = vmatprep.subr.mxu0 0.0
        %v2904 = vand.u32 %v2203, 4294901760
        %2905 = vmatpush1.msra.mxu0 %v2904
        %2906 = vmatprep.subr.mxu0 0.0
        %v2907 = vand.u32 %v2202, 4294901760
        %2908 = vmatpush1.msra.mxu0 %v2907
        %2909 = vmatprep.subr.mxu0 0.0
        %2910 = vmatpush2.msra.mxu0 0.0
        %2911 = vmatprep.subr.mxu0 0.0
        %2912 = vmatpush2.msra.mxu0 0.0
        %2913 = vmatprep.subr.mxu0 0.0
        %2914 = vmatpush2.msra.mxu0 0.0
        %2915 = vmatprep.subr.mxu0 0.0
        %2916 = vmatpush2.msra.mxu0 0.0
        %2917 = vmatprep.subr.mxu0 0.0
        %2918 = vmatpush2.msra.mxu0 0.0
        %2919 = vmatprep.subr.mxu0 0.0
        %2920 = vmatpush2.msra.mxu0 0.0
        %2921 = vmatprep.subr.mxu0 0.0
        %2922 = vmatpush2.msra.mxu0 0.0
        %2923 = vmatprep.subr.mxu0 0.0
        %2924 = vmatpush2.msra.mxu0 0.0
        %2925 = vmatprep.subr.mxu0 0.0
        %2926 = vmatpush2.msra.mxu0 0.0
        %2927 = vmatprep.subr.mxu0 0.0
        %2928 = vmatpush2.msra.mxu0 0.0
        %2929 = vmatprep.subr.mxu0 0.0
        %2930 = vmatpush2.msra.mxu0 0.0
        %2931 = vmatprep.subr.mxu0 0.0
        %2932 = vmatpush2.msra.mxu0 0.0
        %2933 = vmatprep.subr.mxu0 0.0
        %2934 = vmatpush2.msra.mxu0 0.0
        %2935 = vmatprep.subr.mxu0 0.0
        %2936 = vmatpush2.msra.mxu0 0.0
        %2937 = vmatprep.subr.mxu0 0.0
        %2938 = vmatpush2.msra.mxu0 0.0
        %2939 = vmatprep.subr.mxu0 0.0
        %2940 = vmatpush2.msra.mxu0 0.0
        %2941 = vmatprep.mubr.f32.mxu0 0.0
        %v2942 = vand.u32 %v2857, 4294901760
        %v2943 = vsub.f32 %v2857, %v2942
        %v2944 = vand.u32 %v2943, 4294901760
        %v2945 = vsub.f32 %v2943, %v2944
        %v2946 = vand.u32 %v2945, 4294901760
        %2947 = vmatmul.mubr.f32.gmra.mxu0 %v2946
        %v2948 = vpop.f32.mrf.mxu0
        %v2949 = vadd.f32 0.0, %v2948
        %v2950 = vpop.f32.mrf.mxu0
        %2951 = vdwg.mxu0
        %2952 = vmatprep.subr.mxu0 0.0
        %v2953 = vand.u32 %v2217, 4294901760
        %v2954 = vsub.f32 %v2217, %v2953
        %v2955 = vand.u32 %v2954, 4294901760
        %v2956 = vsub.f32 %v2954, %v2955
        %v2957 = vand.u32 %v2956, 4294901760
        %2958 = vmatpush1.msra.mxu0 %v2957
        %2959 = vmatprep.subr.mxu0 0.0
        %v2960 = vand.u32 %v2216, 4294901760
        %v2961 = vsub.f32 %v2216, %v2960
        %v2962 = vand.u32 %v2961, 4294901760
        %v2963 = vsub.f32 %v2961, %v2962
        %v2964 = vand.u32 %v2963, 4294901760
        %2965 = vmatpush1.msra.mxu0 %v2964
        %2966 = vmatprep.subr.mxu0 0.0
        %v2967 = vand.u32 %v2215, 4294901760
        %v2968 = vsub.f32 %v2215, %v2967
        %v2969 = vand.u32 %v2968, 4294901760
        %v2970 = vsub.f32 %v2968, %v2969
        %v2971 = vand.u32 %v2970, 4294901760
        %2972 = vmatpush1.msra.mxu0 %v2971
        %2973 = vmatprep.subr.mxu0 0.0
        %v2974 = vand.u32 %v2214, 4294901760
        %v2975 = vsub.f32 %v2214, %v2974
        %v2976 = vand.u32 %v2975, 4294901760
        %v2977 = vsub.f32 %v2975, %v2976
        %v2978 = vand.u32 %v2977, 4294901760
        %2979 = vmatpush1.msra.mxu0 %v2978
        %2980 = vmatprep.subr.mxu0 0.0
        %v2981 = vand.u32 %v2213, 4294901760
        %v2982 = vsub.f32 %v2213, %v2981
        %v2983 = vand.u32 %v2982, 4294901760
        %v2984 = vsub.f32 %v2982, %v2983
        %v2985 = vand.u32 %v2984, 4294901760
        %2986 = vmatpush1.msra.mxu0 %v2985
        %2987 = vmatprep.subr.mxu0 0.0
        %v2988 = vand.u32 %v2212, 4294901760
        %v2989 = vsub.f32 %v2212, %v2988
        %v2990 = vand.u32 %v2989, 4294901760
        %v2991 = vsub.f32 %v2989, %v2990
        %v2992 = vand.u32 %v2991, 4294901760
        %2993 = vmatpush1.msra.mxu0 %v2992
        %2994 = vmatprep.subr.mxu0 0.0
        %v2995 = vand.u32 %v2211, 4294901760
        %v2996 = vsub.f32 %v2211, %v2995
        %v2997 = vand.u32 %v2996, 4294901760
        %v2998 = vsub.f32 %v2996, %v2997
        %v2999 = vand.u32 %v2998, 4294901760
        %3000 = vmatpush1.msra.mxu0 %v2999
        %3001 = vmatprep.subr.mxu0 0.0
        %v3002 = vand.u32 %v2210, 4294901760
        %v3003 = vsub.f32 %v2210, %v3002
        %v3004 = vand.u32 %v3003, 4294901760
        %v3005 = vsub.f32 %v3003, %v3004
        %v3006 = vand.u32 %v3005, 4294901760
        %3007 = vmatpush1.msra.mxu0 %v3006
        %3008 = vmatprep.subr.mxu0 0.0
        %v3009 = vand.u32 %v2209, 4294901760
        %v3010 = vsub.f32 %v2209, %v3009
        %v3011 = vand.u32 %v3010, 4294901760
        %v3012 = vsub.f32 %v3010, %v3011
        %v3013 = vand.u32 %v3012, 4294901760
        %3014 = vmatpush1.msra.mxu0 %v3013
        %3015 = vmatprep.subr.mxu0 0.0
        %v3016 = vand.u32 %v2208, 4294901760
        %v3017 = vsub.f32 %v2208, %v3016
        %v3018 = vand.u32 %v3017, 4294901760
        %v3019 = vsub.f32 %v3017, %v3018
        %v3020 = vand.u32 %v3019, 4294901760
        %3021 = vmatpush1.msra.mxu0 %v3020
        %3022 = vmatprep.subr.mxu0 0.0
        %v3023 = vand.u32 %v2207, 4294901760
        %v3024 = vsub.f32 %v2207, %v3023
        %v3025 = vand.u32 %v3024, 4294901760
        %v3026 = vsub.f32 %v3024, %v3025
        %v3027 = vand.u32 %v3026, 4294901760
        %3028 = vmatpush1.msra.mxu0 %v3027
        %3029 = vmatprep.subr.mxu0 0.0
        %v3030 = vand.u32 %v2206, 4294901760
        %v3031 = vsub.f32 %v2206, %v3030
        %v3032 = vand.u32 %v3031, 4294901760
        %v3033 = vsub.f32 %v3031, %v3032
        %v3034 = vand.u32 %v3033, 4294901760
        %3035 = vmatpush1.msra.mxu0 %v3034
        %3036 = vmatprep.subr.mxu0 0.0
        %v3037 = vand.u32 %v2205, 4294901760
        %v3038 = vsub.f32 %v2205, %v3037
        %v3039 = vand.u32 %v3038, 4294901760
        %v3040 = vsub.f32 %v3038, %v3039
        %v3041 = vand.u32 %v3040, 4294901760
        %3042 = vmatpush1.msra.mxu0 %v3041
        %3043 = vmatprep.subr.mxu0 0.0
        %v3044 = vand.u32 %v2204, 4294901760
        %v3045 = vsub.f32 %v2204, %v3044
        %v3046 = vand.u32 %v3045, 4294901760
        %v3047 = vsub.f32 %v3045, %v3046
        %v3048 = vand.u32 %v3047, 4294901760
        %3049 = vmatpush1.msra.mxu0 %v3048
        %3050 = vmatprep.subr.mxu0 0.0
        %v3051 = vand.u32 %v2203, 4294901760
        %v3052 = vsub.f32 %v2203, %v3051
        %v3053 = vand.u32 %v3052, 4294901760
        %v3054 = vsub.f32 %v3052, %v3053
        %v3055 = vand.u32 %v3054, 4294901760
        %3056 = vmatpush1.msra.mxu0 %v3055
        %3057 = vmatprep.subr.mxu0 0.0
        %v3058 = vand.u32 %v2202, 4294901760
        %v3059 = vsub.f32 %v2202, %v3058
        %v3060 = vand.u32 %v3059, 4294901760
        %v3061 = vsub.f32 %v3059, %v3060
        %v3062 = vand.u32 %v3061, 4294901760
        %3063 = vmatpush1.msra.mxu0 %v3062
        %3064 = vmatprep.subr.mxu0 0.0
        %3065 = vmatpush2.msra.mxu0 0.0
        %3066 = vmatprep.subr.mxu0 0.0
        %3067 = vmatpush2.msra.mxu0 0.0
        %3068 = vmatprep.subr.mxu0 0.0
        %3069 = vmatpush2.msra.mxu0 0.0
        %3070 = vmatprep.subr.mxu0 0.0
        %3071 = vmatpush2.msra.mxu0 0.0
        %3072 = vmatprep.subr.mxu0 0.0
        %3073 = vmatpush2.msra.mxu0 0.0
        %3074 = vmatprep.subr.mxu0 0.0
        %3075 = vmatpush2.msra.mxu0 0.0
        %3076 = vmatprep.subr.mxu0 0.0
        %3077 = vmatpush2.msra.mxu0 0.0
        %3078 = vmatprep.subr.mxu0 0.0
        %3079 = vmatpush2.msra.mxu0 0.0
        %3080 = vmatprep.subr.mxu0 0.0
        %3081 = vmatpush2.msra.mxu0 0.0
        %3082 = vmatprep.subr.mxu0 0.0
        %3083 = vmatpush2.msra.mxu0 0.0
        %3084 = vmatprep.subr.mxu0 0.0
        %3085 = vmatpush2.msra.mxu0 0.0
        %3086 = vmatprep.subr.mxu0 0.0
        %3087 = vmatpush2.msra.mxu0 0.0
        %3088 = vmatprep.subr.mxu0 0.0
        %3089 = vmatpush2.msra.mxu0 0.0
        %3090 = vmatprep.subr.mxu0 0.0
        %3091 = vmatpush2.msra.mxu0 0.0
        %3092 = vmatprep.subr.mxu0 0.0
        %3093 = vmatpush2.msra.mxu0 0.0
        %3094 = vmatprep.subr.mxu0 0.0
        %3095 = vmatpush2.msra.mxu0 0.0
        %3096 = vmatprep.mubr.f32.mxu0 0.0
        %v3097 = vand.u32 %v2857, 4294901760
        %3098 = vmatmul.mubr.f32.gmra.mxu0 %v3097
        %v3099 = vpop.f32.mrf.mxu0
        %v3100 = vadd.f32 %v2949, %v3099
        %v3101 = vpop.f32.mrf.mxu0
        %3102 = vdwg.mxu0
        %3103 = vmatprep.subr.mxu0 0.0
        %v3104 = vand.u32 %v2217, 4294901760
        %v3105 = vsub.f32 %v2217, %v3104
        %3106 = vmatpush1.msra.mxu0 %v3105
        %3107 = vmatprep.subr.mxu0 0.0
        %v3108 = vand.u32 %v2216, 4294901760
        %v3109 = vsub.f32 %v2216, %v3108
        %3110 = vmatpush1.msra.mxu0 %v3109
        %3111 = vmatprep.subr.mxu0 0.0
        %v3112 = vand.u32 %v2215, 4294901760
        %v3113 = vsub.f32 %v2215, %v3112
        %3114 = vmatpush1.msra.mxu0 %v3113
        %3115 = vmatprep.subr.mxu0 0.0
        %v3116 = vand.u32 %v2214, 4294901760
        %v3117 = vsub.f32 %v2214, %v3116
        %3118 = vmatpush1.msra.mxu0 %v3117
        %3119 = vmatprep.subr.mxu0 0.0
        %v3120 = vand.u32 %v2213, 4294901760
        %v3121 = vsub.f32 %v2213, %v3120
        %3122 = vmatpush1.msra.mxu0 %v3121
        %3123 = vmatprep.subr.mxu0 0.0
        %v3124 = vand.u32 %v2212, 4294901760
        %v3125 = vsub.f32 %v2212, %v3124
        %3126 = vmatpush1.msra.mxu0 %v3125
        %3127 = vmatprep.subr.mxu0 0.0
        %v3128 = vand.u32 %v2211, 4294901760
        %v3129 = vsub.f32 %v2211, %v3128
        %3130 = vmatpush1.msra.mxu0 %v3129
        %3131 = vmatprep.subr.mxu0 0.0
        %v3132 = vand.u32 %v2210, 4294901760
        %v3133 = vsub.f32 %v2210, %v3132
        %3134 = vmatpush1.msra.mxu0 %v3133
        %3135 = vmatprep.subr.mxu0 0.0
        %v3136 = vand.u32 %v2209, 4294901760
        %v3137 = vsub.f32 %v2209, %v3136
        %3138 = vmatpush1.msra.mxu0 %v3137
        %3139 = vmatprep.subr.mxu0 0.0
        %v3140 = vand.u32 %v2208, 4294901760
        %v3141 = vsub.f32 %v2208, %v3140
        %3142 = vmatpush1.msra.mxu0 %v3141
        %3143 = vmatprep.subr.mxu0 0.0
        %v3144 = vand.u32 %v2207, 4294901760
        %v3145 = vsub.f32 %v2207, %v3144
        %3146 = vmatpush1.msra.mxu0 %v3145
        %3147 = vmatprep.subr.mxu0 0.0
        %v3148 = vand.u32 %v2206, 4294901760
        %v3149 = vsub.f32 %v2206, %v3148
        %3150 = vmatpush1.msra.mxu0 %v3149
        %3151 = vmatprep.subr.mxu0 0.0
        %v3152 = vand.u32 %v2205, 4294901760
        %v3153 = vsub.f32 %v2205, %v3152
        %3154 = vmatpush1.msra.mxu0 %v3153
        %3155 = vmatprep.subr.mxu0 0.0
        %v3156 = vand.u32 %v2204, 4294901760
        %v3157 = vsub.f32 %v2204, %v3156
        %3158 = vmatpush1.msra.mxu0 %v3157
        %3159 = vmatprep.subr.mxu0 0.0
        %v3160 = vand.u32 %v2203, 4294901760
        %v3161 = vsub.f32 %v2203, %v3160
        %3162 = vmatpush1.msra.mxu0 %v3161
        %3163 = vmatprep.subr.mxu0 0.0
        %v3164 = vand.u32 %v2202, 4294901760
        %v3165 = vsub.f32 %v2202, %v3164
        %3166 = vmatpush1.msra.mxu0 %v3165
        %3167 = vmatprep.subr.mxu0 0.0
        %3168 = vmatpush2.msra.mxu0 0.0
        %3169 = vmatprep.subr.mxu0 0.0
        %3170 = vmatpush2.msra.mxu0 0.0
        %3171 = vmatprep.subr.mxu0 0.0
        %3172 = vmatpush2.msra.mxu0 0.0
        %3173 = vmatprep.subr.mxu0 0.0
        %3174 = vmatpush2.msra.mxu0 0.0
        %3175 = vmatprep.subr.mxu0 0.0
        %3176 = vmatpush2.msra.mxu0 0.0
        %3177 = vmatprep.subr.mxu0 0.0
        %3178 = vmatpush2.msra.mxu0 0.0
        %3179 = vmatprep.subr.mxu0 0.0
        %3180 = vmatpush2.msra.mxu0 0.0
        %3181 = vmatprep.subr.mxu0 0.0
        %3182 = vmatpush2.msra.mxu0 0.0
        %3183 = vmatprep.subr.mxu0 0.0
        %3184 = vmatpush2.msra.mxu0 0.0
        %3185 = vmatprep.subr.mxu0 0.0
        %3186 = vmatpush2.msra.mxu0 0.0
        %3187 = vmatprep.subr.mxu0 0.0
        %3188 = vmatpush2.msra.mxu0 0.0
        %3189 = vmatprep.subr.mxu0 0.0
        %3190 = vmatpush2.msra.mxu0 0.0
        %3191 = vmatprep.subr.mxu0 0.0
        %3192 = vmatpush2.msra.mxu0 0.0
        %3193 = vmatprep.subr.mxu0 0.0
        %3194 = vmatpush2.msra.mxu0 0.0
        %3195 = vmatprep.subr.mxu0 0.0
        %3196 = vmatpush2.msra.mxu0 0.0
        %3197 = vmatprep.subr.mxu0 0.0
        %3198 = vmatpush2.msra.mxu0 0.0
        %3199 = vmatprep.mubr.f32.mxu0 0.0
        %v3200 = vand.u32 %v2857, 4294901760
        %v3201 = vsub.f32 %v2857, %v3200
        %3202 = vmatmul.mubr.f32.gmra.mxu0 %v3201
        %v3203 = vpop.f32.mrf.mxu0
        %v3204 = vadd.f32 %v3100, %v3203
        %v3205 = vpop.f32.mrf.mxu0
        %3206 = vdwg.mxu0
        %3207 = vmatprep.subr.mxu0 0.0
        %v3208 = vand.u32 %v2217, 4294901760
        %3209 = vmatpush1.msra.mxu0 %v3208
        %3210 = vmatprep.subr.mxu0 0.0
        %v3211 = vand.u32 %v2216, 4294901760
        %3212 = vmatpush1.msra.mxu0 %v3211
        %3213 = vmatprep.subr.mxu0 0.0
        %v3214 = vand.u32 %v2215, 4294901760
        %3215 = vmatpush1.msra.mxu0 %v3214
        %3216 = vmatprep.subr.mxu0 0.0
        %v3217 = vand.u32 %v2214, 4294901760
        %3218 = vmatpush1.msra.mxu0 %v3217
        %3219 = vmatprep.subr.mxu0 0.0
        %v3220 = vand.u32 %v2213, 4294901760
        %3221 = vmatpush1.msra.mxu0 %v3220
        %3222 = vmatprep.subr.mxu0 0.0
        %v3223 = vand.u32 %v2212, 4294901760
        %3224 = vmatpush1.msra.mxu0 %v3223
        %3225 = vmatprep.subr.mxu0 0.0
        %v3226 = vand.u32 %v2211, 4294901760
        %3227 = vmatpush1.msra.mxu0 %v3226
        %3228 = vmatprep.subr.mxu0 0.0
        %v3229 = vand.u32 %v2210, 4294901760
        %3230 = vmatpush1.msra.mxu0 %v3229
        %3231 = vmatprep.subr.mxu0 0.0
        %v3232 = vand.u32 %v2209, 4294901760
        %3233 = vmatpush1.msra.mxu0 %v3232
        %3234 = vmatprep.subr.mxu0 0.0
        %v3235 = vand.u32 %v2208, 4294901760
        %3236 = vmatpush1.msra.mxu0 %v3235
        %3237 = vmatprep.subr.mxu0 0.0
        %v3238 = vand.u32 %v2207, 4294901760
        %3239 = vmatpush1.msra.mxu0 %v3238
        %3240 = vmatprep.subr.mxu0 0.0
        %v3241 = vand.u32 %v2206, 4294901760
        %3242 = vmatpush1.msra.mxu0 %v3241
        %3243 = vmatprep.subr.mxu0 0.0
        %v3244 = vand.u32 %v2205, 4294901760
        %3245 = vmatpush1.msra.mxu0 %v3244
        %3246 = vmatprep.subr.mxu0 0.0
        %v3247 = vand.u32 %v2204, 4294901760
        %3248 = vmatpush1.msra.mxu0 %v3247
        %3249 = vmatprep.subr.mxu0 0.0
        %v3250 = vand.u32 %v2203, 4294901760
        %3251 = vmatpush1.msra.mxu0 %v3250
        %3252 = vmatprep.subr.mxu0 0.0
        %v3253 = vand.u32 %v2202, 4294901760
        %3254 = vmatpush1.msra.mxu0 %v3253
        %3255 = vmatprep.subr.mxu0 0.0
        %3256 = vmatpush2.msra.mxu0 0.0
        %3257 = vmatprep.subr.mxu0 0.0
        %3258 = vmatpush2.msra.mxu0 0.0
        %3259 = vmatprep.subr.mxu0 0.0
        %3260 = vmatpush2.msra.mxu0 0.0
        %3261 = vmatprep.subr.mxu0 0.0
        %3262 = vmatpush2.msra.mxu0 0.0
        %3263 = vmatprep.subr.mxu0 0.0
        %3264 = vmatpush2.msra.mxu0 0.0
        %3265 = vmatprep.subr.mxu0 0.0
        %3266 = vmatpush2.msra.mxu0 0.0
        %3267 = vmatprep.subr.mxu0 0.0
        %3268 = vmatpush2.msra.mxu0 0.0
        %3269 = vmatprep.subr.mxu0 0.0
        %3270 = vmatpush2.msra.mxu0 0.0
        %3271 = vmatprep.subr.mxu0 0.0
        %3272 = vmatpush2.msra.mxu0 0.0
        %3273 = vmatprep.subr.mxu0 0.0
        %3274 = vmatpush2.msra.mxu0 0.0
        %3275 = vmatprep.subr.mxu0 0.0
        %3276 = vmatpush2.msra.mxu0 0.0
        %3277 = vmatprep.subr.mxu0 0.0
        %3278 = vmatpush2.msra.mxu0 0.0
        %3279 = vmatprep.subr.mxu0 0.0
        %3280 = vmatpush2.msra.mxu0 0.0
        %3281 = vmatprep.subr.mxu0 0.0
        %3282 = vmatpush2.msra.mxu0 0.0
        %3283 = vmatprep.subr.mxu0 0.0
        %3284 = vmatpush2.msra.mxu0 0.0
        %3285 = vmatprep.subr.mxu0 0.0
        %3286 = vmatpush2.msra.mxu0 0.0
        %3287 = vmatprep.mubr.f32.mxu0 0.0
        %v3288 = vand.u32 %v2857, 4294901760
        %v3289 = vsub.f32 %v2857, %v3288
        %v3290 = vand.u32 %v3289, 4294901760
        %3291 = vmatmul.mubr.f32.gmra.mxu0 %v3290
        %v3292 = vpop.f32.mrf.mxu0
        %v3293 = vadd.f32 %v3204, %v3292
        %v3294 = vpop.f32.mrf.mxu0
        %3295 = vdwg.mxu0
        %3296 = vmatprep.subr.mxu0 0.0
        %v3297 = vand.u32 %v2217, 4294901760
        %v3298 = vsub.f32 %v2217, %v3297
        %v3299 = vand.u32 %v3298, 4294901760
        %3300 = vmatpush1.msra.mxu0 %v3299
        %3301 = vmatprep.subr.mxu0 0.0
        %v3302 = vand.u32 %v2216, 4294901760
        %v3303 = vsub.f32 %v2216, %v3302
        %v3304 = vand.u32 %v3303, 4294901760
        %3305 = vmatpush1.msra.mxu0 %v3304
        %3306 = vmatprep.subr.mxu0 0.0
        %v3307 = vand.u32 %v2215, 4294901760
        %v3308 = vsub.f32 %v2215, %v3307
        %v3309 = vand.u32 %v3308, 4294901760
        %3310 = vmatpush1.msra.mxu0 %v3309
        %3311 = vmatprep.subr.mxu0 0.0
        %v3312 = vand.u32 %v2214, 4294901760
        %v3313 = vsub.f32 %v2214, %v3312
        %v3314 = vand.u32 %v3313, 4294901760
        %3315 = vmatpush1.msra.mxu0 %v3314
        %3316 = vmatprep.subr.mxu0 0.0
        %v3317 = vand.u32 %v2213, 4294901760
        %v3318 = vsub.f32 %v2213, %v3317
        %v3319 = vand.u32 %v3318, 4294901760
        %3320 = vmatpush1.msra.mxu0 %v3319
        %3321 = vmatprep.subr.mxu0 0.0
        %v3322 = vand.u32 %v2212, 4294901760
        %v3323 = vsub.f32 %v2212, %v3322
        %v3324 = vand.u32 %v3323, 4294901760
        %3325 = vmatpush1.msra.mxu0 %v3324
        %3326 = vmatprep.subr.mxu0 0.0
        %v3327 = vand.u32 %v2211, 4294901760
        %v3328 = vsub.f32 %v2211, %v3327
        %v3329 = vand.u32 %v3328, 4294901760
        %3330 = vmatpush1.msra.mxu0 %v3329
        %3331 = vmatprep.subr.mxu0 0.0
        %v3332 = vand.u32 %v2210, 4294901760
        %v3333 = vsub.f32 %v2210, %v3332
        %v3334 = vand.u32 %v3333, 4294901760
        %3335 = vmatpush1.msra.mxu0 %v3334
        %3336 = vmatprep.subr.mxu0 0.0
        %v3337 = vand.u32 %v2209, 4294901760
        %v3338 = vsub.f32 %v2209, %v3337
        %v3339 = vand.u32 %v3338, 4294901760
        %3340 = vmatpush1.msra.mxu0 %v3339
        %3341 = vmatprep.subr.mxu0 0.0
        %v3342 = vand.u32 %v2208, 4294901760
        %v3343 = vsub.f32 %v2208, %v3342
        %v3344 = vand.u32 %v3343, 4294901760
        %3345 = vmatpush1.msra.mxu0 %v3344
        %3346 = vmatprep.subr.mxu0 0.0
        %v3347 = vand.u32 %v2207, 4294901760
        %v3348 = vsub.f32 %v2207, %v3347
        %v3349 = vand.u32 %v3348, 4294901760
        %3350 = vmatpush1.msra.mxu0 %v3349
        %3351 = vmatprep.subr.mxu0 0.0
        %v3352 = vand.u32 %v2206, 4294901760
        %v3353 = vsub.f32 %v2206, %v3352
        %v3354 = vand.u32 %v3353, 4294901760
        %3355 = vmatpush1.msra.mxu0 %v3354
        %3356 = vmatprep.subr.mxu0 0.0
        %v3357 = vand.u32 %v2205, 4294901760
        %v3358 = vsub.f32 %v2205, %v3357
        %v3359 = vand.u32 %v3358, 4294901760
        %3360 = vmatpush1.msra.mxu0 %v3359
        %3361 = vmatprep.subr.mxu0 0.0
        %v3362 = vand.u32 %v2204, 4294901760
        %v3363 = vsub.f32 %v2204, %v3362
        %v3364 = vand.u32 %v3363, 4294901760
        %3365 = vmatpush1.msra.mxu0 %v3364
        %3366 = vmatprep.subr.mxu0 0.0
        %v3367 = vand.u32 %v2203, 4294901760
        %v3368 = vsub.f32 %v2203, %v3367
        %v3369 = vand.u32 %v3368, 4294901760
        %3370 = vmatpush1.msra.mxu0 %v3369
        %3371 = vmatprep.subr.mxu0 0.0
        %v3372 = vand.u32 %v2202, 4294901760
        %v3373 = vsub.f32 %v2202, %v3372
        %v3374 = vand.u32 %v3373, 4294901760
        %3375 = vmatpush1.msra.mxu0 %v3374
        %3376 = vmatprep.subr.mxu0 0.0
        %3377 = vmatpush2.msra.mxu0 0.0
        %3378 = vmatprep.subr.mxu0 0.0
        %3379 = vmatpush2.msra.mxu0 0.0
        %3380 = vmatprep.subr.mxu0 0.0
        %3381 = vmatpush2.msra.mxu0 0.0
        %3382 = vmatprep.subr.mxu0 0.0
        %3383 = vmatpush2.msra.mxu0 0.0
        %3384 = vmatprep.subr.mxu0 0.0
        %3385 = vmatpush2.msra.mxu0 0.0
        %3386 = vmatprep.subr.mxu0 0.0
        %3387 = vmatpush2.msra.mxu0 0.0
        %3388 = vmatprep.subr.mxu0 0.0
        %3389 = vmatpush2.msra.mxu0 0.0
        %3390 = vmatprep.subr.mxu0 0.0
        %3391 = vmatpush2.msra.mxu0 0.0
        %3392 = vmatprep.subr.mxu0 0.0
        %3393 = vmatpush2.msra.mxu0 0.0
        %3394 = vmatprep.subr.mxu0 0.0
        %3395 = vmatpush2.msra.mxu0 0.0
        %3396 = vmatprep.subr.mxu0 0.0
        %3397 = vmatpush2.msra.mxu0 0.0
        %3398 = vmatprep.subr.mxu0 0.0
        %3399 = vmatpush2.msra.mxu0 0.0
        %3400 = vmatprep.subr.mxu0 0.0
        %3401 = vmatpush2.msra.mxu0 0.0
        %3402 = vmatprep.subr.mxu0 0.0
        %3403 = vmatpush2.msra.mxu0 0.0
        %3404 = vmatprep.subr.mxu0 0.0
        %3405 = vmatpush2.msra.mxu0 0.0
        %3406 = vmatprep.subr.mxu0 0.0
        %3407 = vmatpush2.msra.mxu0 0.0
        %3408 = vmatprep.mubr.f32.mxu0 0.0
        %v3409 = vand.u32 %v2857, 4294901760
        %3410 = vmatmul.mubr.f32.gmra.mxu0 %v3409
        %v3411 = vpop.f32.mrf.mxu0
        %v3412 = vadd.f32 %v3293, %v3411
        %v3413 = vpop.f32.mrf.mxu0
        %3414 = vdwg.mxu0
        %3415 = vmatprep.subr.mxu0 0.0
        %v3416 = vand.u32 %v2217, 4294901760
        %3417 = vmatpush1.msra.mxu0 %v3416
        %3418 = vmatprep.subr.mxu0 0.0
        %v3419 = vand.u32 %v2216, 4294901760
        %3420 = vmatpush1.msra.mxu0 %v3419
        %3421 = vmatprep.subr.mxu0 0.0
        %v3422 = vand.u32 %v2215, 4294901760
        %3423 = vmatpush1.msra.mxu0 %v3422
        %3424 = vmatprep.subr.mxu0 0.0
        %v3425 = vand.u32 %v2214, 4294901760
        %3426 = vmatpush1.msra.mxu0 %v3425
        %3427 = vmatprep.subr.mxu0 0.0
        %v3428 = vand.u32 %v2213, 4294901760
        %3429 = vmatpush1.msra.mxu0 %v3428
        %3430 = vmatprep.subr.mxu0 0.0
        %v3431 = vand.u32 %v2212, 4294901760
        %3432 = vmatpush1.msra.mxu0 %v3431
        %3433 = vmatprep.subr.mxu0 0.0
        %v3434 = vand.u32 %v2211, 4294901760
        %3435 = vmatpush1.msra.mxu0 %v3434
        %3436 = vmatprep.subr.mxu0 0.0
        %v3437 = vand.u32 %v2210, 4294901760
        %3438 = vmatpush1.msra.mxu0 %v3437
        %3439 = vmatprep.subr.mxu0 0.0
        %v3440 = vand.u32 %v2209, 4294901760
        %3441 = vmatpush1.msra.mxu0 %v3440
        %3442 = vmatprep.subr.mxu0 0.0
        %v3443 = vand.u32 %v2208, 4294901760
        %3444 = vmatpush1.msra.mxu0 %v3443
        %3445 = vmatprep.subr.mxu0 0.0
        %v3446 = vand.u32 %v2207, 4294901760
        %3447 = vmatpush1.msra.mxu0 %v3446
        %3448 = vmatprep.subr.mxu0 0.0
        %v3449 = vand.u32 %v2206, 4294901760
        %3450 = vmatpush1.msra.mxu0 %v3449
        %3451 = vmatprep.subr.mxu0 0.0
        %v3452 = vand.u32 %v2205, 4294901760
        %3453 = vmatpush1.msra.mxu0 %v3452
        %3454 = vmatprep.subr.mxu0 0.0
        %v3455 = vand.u32 %v2204, 4294901760
        %3456 = vmatpush1.msra.mxu0 %v3455
        %3457 = vmatprep.subr.mxu0 0.0
        %v3458 = vand.u32 %v2203, 4294901760
        %3459 = vmatpush1.msra.mxu0 %v3458
        %3460 = vmatprep.subr.mxu0 0.0
        %v3461 = vand.u32 %v2202, 4294901760
        %3462 = vmatpush1.msra.mxu0 %v3461
        %3463 = vmatprep.subr.mxu0 0.0
        %3464 = vmatpush2.msra.mxu0 0.0
        %3465 = vmatprep.subr.mxu0 0.0
        %3466 = vmatpush2.msra.mxu0 0.0
        %3467 = vmatprep.subr.mxu0 0.0
        %3468 = vmatpush2.msra.mxu0 0.0
        %3469 = vmatprep.subr.mxu0 0.0
        %3470 = vmatpush2.msra.mxu0 0.0
        %3471 = vmatprep.subr.mxu0 0.0
        %3472 = vmatpush2.msra.mxu0 0.0
        %3473 = vmatprep.subr.mxu0 0.0
        %3474 = vmatpush2.msra.mxu0 0.0
        %3475 = vmatprep.subr.mxu0 0.0
        %3476 = vmatpush2.msra.mxu0 0.0
        %3477 = vmatprep.subr.mxu0 0.0
        %3478 = vmatpush2.msra.mxu0 0.0
        %3479 = vmatprep.subr.mxu0 0.0
        %3480 = vmatpush2.msra.mxu0 0.0
        %3481 = vmatprep.subr.mxu0 0.0
        %3482 = vmatpush2.msra.mxu0 0.0
        %3483 = vmatprep.subr.mxu0 0.0
        %3484 = vmatpush2.msra.mxu0 0.0
        %3485 = vmatprep.subr.mxu0 0.0
        %3486 = vmatpush2.msra.mxu0 0.0
        %3487 = vmatprep.subr.mxu0 0.0
        %3488 = vmatpush2.msra.mxu0 0.0
        %3489 = vmatprep.subr.mxu0 0.0
        %3490 = vmatpush2.msra.mxu0 0.0
        %3491 = vmatprep.subr.mxu0 0.0
        %3492 = vmatpush2.msra.mxu0 0.0
        %3493 = vmatprep.subr.mxu0 0.0
        %3494 = vmatpush2.msra.mxu0 0.0
        %3495 = vmatprep.mubr.f32.mxu0 0.0
        %v3496 = vand.u32 %v2857, 4294901760
        %3497 = vmatmul.mubr.f32.gmra.mxu0 %v3496
        %v3498 = vpop.f32.mrf.mxu0
        %v3499 = vadd.f32 %v3412, %v3498
        %v3500 = vpop.f32.mrf.mxu0
        %3501 = vdwg.mxu0
        %3502 = vst [vmem:[#allocation2 + $0x10] sm:$0xff] %v3499
        %v3503 = vld [vmem:[%s334] sm:$0xff]
        %v3504 = vld [vmem:[#allocation2] sm:$0xff]
        %v3505 = vld [vmem:[#allocation2 + $0x8] sm:$0xff]
        %v3506 = vld [vmem:[#allocation2 + $0x10] sm:$0xff]
        %v3507 = vld [vmem:[%s5] sm:$0xff]
        %3509 = vset.pattern.permute.xlu0 0
        %3510 = vperm.xlu0 %3509, %v3507
        %v3511 = vpop.permute.xlu0 %3510
        %vm3513 = vcmask 195584
        %v3515 = vsel %vm3513, %v3503, 0
        %3517 = vmatprep.subr.mxu0 0.0
        %3518 = vmatpush1.msra.mxu0 0.0
        %3519 = vmatprep.subr.mxu0 0.0
        %3520 = vmatpush1.msra.mxu0 0.0
        %3521 = vmatprep.subr.mxu0 0.0
        %3522 = vmatpush1.msra.mxu0 0.0
        %3523 = vmatprep.subr.mxu0 0.0
        %3524 = vmatpush1.msra.mxu0 0.0
        %3525 = vmatprep.subr.mxu0 0.0
        %3526 = vmatpush1.msra.mxu0 0.0
        %3527 = vmatprep.subr.mxu0 0.0
        %3528 = vmatpush1.msra.mxu0 0.0
        %3529 = vmatprep.subr.mxu0 0.0
        %3530 = vmatpush1.msra.mxu0 0.0
        %3531 = vmatprep.subr.mxu0 0.0
        %3532 = vmatpush1.msra.mxu0 0.0
        %3533 = vmatprep.subr.mxu0 0.0
        %3534 = vmatpush1.msra.mxu0 0.0
        %3535 = vmatprep.subr.mxu0 0.0
        %3536 = vmatpush1.msra.mxu0 0.0
        %3537 = vmatprep.subr.mxu0 0.0
        %3538 = vmatpush1.msra.mxu0 0.0
        %3539 = vmatprep.subr.mxu0 0.0
        %3540 = vmatpush1.msra.mxu0 0.0
        %3541 = vmatprep.subr.mxu0 0.0
        %3542 = vmatpush1.msra.mxu0 0.0
        %3543 = vmatprep.subr.mxu0 0.0
        %v3544 = vand.u32 %v3506, 4294901760
        %3545 = vmatpush1.msra.mxu0 %v3544
        %3546 = vmatprep.subr.mxu0 0.0
        %v3547 = vand.u32 %v3505, 4294901760
        %3548 = vmatpush1.msra.mxu0 %v3547
        %3549 = vmatprep.subr.mxu0 0.0
        %v3550 = vand.u32 %v3504, 4294901760
        %3551 = vmatpush1.msra.mxu0 %v3550
        %3552 = vmatprep.subr.mxu0 0.0
        %3553 = vmatpush2.msra.mxu0 0.0
        %3554 = vmatprep.subr.mxu0 0.0
        %3555 = vmatpush2.msra.mxu0 0.0
        %3556 = vmatprep.subr.mxu0 0.0
        %3557 = vmatpush2.msra.mxu0 0.0
        %3558 = vmatprep.subr.mxu0 0.0
        %3559 = vmatpush2.msra.mxu0 0.0
        %3560 = vmatprep.subr.mxu0 0.0
        %3561 = vmatpush2.msra.mxu0 0.0
        %3562 = vmatprep.subr.mxu0 0.0
        %3563 = vmatpush2.msra.mxu0 0.0
        %3564 = vmatprep.subr.mxu0 0.0
        %3565 = vmatpush2.msra.mxu0 0.0
        %3566 = vmatprep.subr.mxu0 0.0
        %3567 = vmatpush2.msra.mxu0 0.0
        %3568 = vmatprep.subr.mxu0 0.0
        %3569 = vmatpush2.msra.mxu0 0.0
        %3570 = vmatprep.subr.mxu0 0.0
        %3571 = vmatpush2.msra.mxu0 0.0
        %3572 = vmatprep.subr.mxu0 0.0
        %3573 = vmatpush2.msra.mxu0 0.0
        %3574 = vmatprep.subr.mxu0 0.0
        %3575 = vmatpush2.msra.mxu0 0.0
        %3576 = vmatprep.subr.mxu0 0.0
        %3577 = vmatpush2.msra.mxu0 0.0
        %3578 = vmatprep.subr.mxu0 0.0
        %3579 = vmatpush2.msra.mxu0 0.0
        %3580 = vmatprep.subr.mxu0 0.0
        %3581 = vmatpush2.msra.mxu0 0.0
        %3582 = vmatprep.subr.mxu0 0.0
        %3583 = vmatpush2.msra.mxu0 0.0
        %3584 = vmatprep.mubr.f32.mxu0 0.0
        %v3585 = vand.u32 %v3515, 4294901760
        %v3586 = vsub.f32 %v3515, %v3585
        %v3587 = vand.u32 %v3586, 4294901760
        %v3588 = vsub.f32 %v3586, %v3587
        %v3589 = vand.u32 %v3588, 4294901760
        %3590 = vmatmul.mubr.f32.gmra.mxu0 %v3589
        %v3591 = vpop.f32.mrf.mxu0
        %v3592 = vadd.f32 %v3511, %v3591
        %v3593 = vpop.f32.mrf.mxu0
        %3594 = vdwg.mxu0
        %3595 = vmatprep.subr.mxu0 0.0
        %3596 = vmatpush1.msra.mxu0 0.0
        %3597 = vmatprep.subr.mxu0 0.0
        %3598 = vmatpush1.msra.mxu0 0.0
        %3599 = vmatprep.subr.mxu0 0.0
        %3600 = vmatpush1.msra.mxu0 0.0
        %3601 = vmatprep.subr.mxu0 0.0
        %3602 = vmatpush1.msra.mxu0 0.0
        %3603 = vmatprep.subr.mxu0 0.0
        %3604 = vmatpush1.msra.mxu0 0.0
        %3605 = vmatprep.subr.mxu0 0.0
        %3606 = vmatpush1.msra.mxu0 0.0
        %3607 = vmatprep.subr.mxu0 0.0
        %3608 = vmatpush1.msra.mxu0 0.0
        %3609 = vmatprep.subr.mxu0 0.0
        %3610 = vmatpush1.msra.mxu0 0.0
        %3611 = vmatprep.subr.mxu0 0.0
        %3612 = vmatpush1.msra.mxu0 0.0
        %3613 = vmatprep.subr.mxu0 0.0
        %3614 = vmatpush1.msra.mxu0 0.0
        %3615 = vmatprep.subr.mxu0 0.0
        %3616 = vmatpush1.msra.mxu0 0.0
        %3617 = vmatprep.subr.mxu0 0.0
        %3618 = vmatpush1.msra.mxu0 0.0
        %3619 = vmatprep.subr.mxu0 0.0
        %3620 = vmatpush1.msra.mxu0 0.0
        %3621 = vmatprep.subr.mxu0 0.0
        %v3622 = vand.u32 %v3506, 4294901760
        %v3623 = vsub.f32 %v3506, %v3622
        %v3624 = vand.u32 %v3623, 4294901760
        %v3625 = vsub.f32 %v3623, %v3624
        %v3626 = vand.u32 %v3625, 4294901760
        %3627 = vmatpush1.msra.mxu0 %v3626
        %3628 = vmatprep.subr.mxu0 0.0
        %v3629 = vand.u32 %v3505, 4294901760
        %v3630 = vsub.f32 %v3505, %v3629
        %v3631 = vand.u32 %v3630, 4294901760
        %v3632 = vsub.f32 %v3630, %v3631
        %v3633 = vand.u32 %v3632, 4294901760
        %3634 = vmatpush1.msra.mxu0 %v3633
        %3635 = vmatprep.subr.mxu0 0.0
        %v3636 = vand.u32 %v3504, 4294901760
        %v3637 = vsub.f32 %v3504, %v3636
        %v3638 = vand.u32 %v3637, 4294901760
        %v3639 = vsub.f32 %v3637, %v3638
        %v3640 = vand.u32 %v3639, 4294901760
        %3641 = vmatpush1.msra.mxu0 %v3640
        %3642 = vmatprep.subr.mxu0 0.0
        %3643 = vmatpush2.msra.mxu0 0.0
        %3644 = vmatprep.subr.mxu0 0.0
        %3645 = vmatpush2.msra.mxu0 0.0
        %3646 = vmatprep.subr.mxu0 0.0
        %3647 = vmatpush2.msra.mxu0 0.0
        %3648 = vmatprep.subr.mxu0 0.0
        %3649 = vmatpush2.msra.mxu0 0.0
        %3650 = vmatprep.subr.mxu0 0.0
        %3651 = vmatpush2.msra.mxu0 0.0
        %3652 = vmatprep.subr.mxu0 0.0
        %3653 = vmatpush2.msra.mxu0 0.0
        %3654 = vmatprep.subr.mxu0 0.0
        %3655 = vmatpush2.msra.mxu0 0.0
        %3656 = vmatprep.subr.mxu0 0.0
        %3657 = vmatpush2.msra.mxu0 0.0
        %3658 = vmatprep.subr.mxu0 0.0
        %3659 = vmatpush2.msra.mxu0 0.0
        %3660 = vmatprep.subr.mxu0 0.0
        %3661 = vmatpush2.msra.mxu0 0.0
        %3662 = vmatprep.subr.mxu0 0.0
        %3663 = vmatpush2.msra.mxu0 0.0
        %3664 = vmatprep.subr.mxu0 0.0
        %3665 = vmatpush2.msra.mxu0 0.0
        %3666 = vmatprep.subr.mxu0 0.0
        %3667 = vmatpush2.msra.mxu0 0.0
        %3668 = vmatprep.subr.mxu0 0.0
        %3669 = vmatpush2.msra.mxu0 0.0
        %3670 = vmatprep.subr.mxu0 0.0
        %3671 = vmatpush2.msra.mxu0 0.0
        %3672 = vmatprep.subr.mxu0 0.0
        %3673 = vmatpush2.msra.mxu0 0.0
        %3674 = vmatprep.mubr.f32.mxu0 0.0
        %v3675 = vand.u32 %v3515, 4294901760
        %3676 = vmatmul.mubr.f32.gmra.mxu0 %v3675
        %v3677 = vpop.f32.mrf.mxu0
        %v3678 = vadd.f32 %v3592, %v3677
        %v3679 = vpop.f32.mrf.mxu0
        %3680 = vdwg.mxu0
        %3681 = vmatprep.subr.mxu0 0.0
        %3682 = vmatpush1.msra.mxu0 0.0
        %3683 = vmatprep.subr.mxu0 0.0
        %3684 = vmatpush1.msra.mxu0 0.0
        %3685 = vmatprep.subr.mxu0 0.0
        %3686 = vmatpush1.msra.mxu0 0.0
        %3687 = vmatprep.subr.mxu0 0.0
        %3688 = vmatpush1.msra.mxu0 0.0
        %3689 = vmatprep.subr.mxu0 0.0
        %3690 = vmatpush1.msra.mxu0 0.0
        %3691 = vmatprep.subr.mxu0 0.0
        %3692 = vmatpush1.msra.mxu0 0.0
        %3693 = vmatprep.subr.mxu0 0.0
        %3694 = vmatpush1.msra.mxu0 0.0
        %3695 = vmatprep.subr.mxu0 0.0
        %3696 = vmatpush1.msra.mxu0 0.0
        %3697 = vmatprep.subr.mxu0 0.0
        %3698 = vmatpush1.msra.mxu0 0.0
        %3699 = vmatprep.subr.mxu0 0.0
        %3700 = vmatpush1.msra.mxu0 0.0
        %3701 = vmatprep.subr.mxu0 0.0
        %3702 = vmatpush1.msra.mxu0 0.0
        %3703 = vmatprep.subr.mxu0 0.0
        %3704 = vmatpush1.msra.mxu0 0.0
        %3705 = vmatprep.subr.mxu0 0.0
        %3706 = vmatpush1.msra.mxu0 0.0
        %3707 = vmatprep.subr.mxu0 0.0
        %v3708 = vand.u32 %v3506, 4294901760
        %v3709 = vsub.f32 %v3506, %v3708
        %3710 = vmatpush1.msra.mxu0 %v3709
        %3711 = vmatprep.subr.mxu0 0.0
        %v3712 = vand.u32 %v3505, 4294901760
        %v3713 = vsub.f32 %v3505, %v3712
        %3714 = vmatpush1.msra.mxu0 %v3713
        %3715 = vmatprep.subr.mxu0 0.0
        %v3716 = vand.u32 %v3504, 4294901760
        %v3717 = vsub.f32 %v3504, %v3716
        %3718 = vmatpush1.msra.mxu0 %v3717
        %3719 = vmatprep.subr.mxu0 0.0
        %3720 = vmatpush2.msra.mxu0 0.0
        %3721 = vmatprep.subr.mxu0 0.0
        %3722 = vmatpush2.msra.mxu0 0.0
        %3723 = vmatprep.subr.mxu0 0.0
        %3724 = vmatpush2.msra.mxu0 0.0
        %3725 = vmatprep.subr.mxu0 0.0
        %3726 = vmatpush2.msra.mxu0 0.0
        %3727 = vmatprep.subr.mxu0 0.0
        %3728 = vmatpush2.msra.mxu0 0.0
        %3729 = vmatprep.subr.mxu0 0.0
        %3730 = vmatpush2.msra.mxu0 0.0
        %3731 = vmatprep.subr.mxu0 0.0
        %3732 = vmatpush2.msra.mxu0 0.0
        %3733 = vmatprep.subr.mxu0 0.0
        %3734 = vmatpush2.msra.mxu0 0.0
        %3735 = vmatprep.subr.mxu0 0.0
        %3736 = vmatpush2.msra.mxu0 0.0
        %3737 = vmatprep.subr.mxu0 0.0
        %3738 = vmatpush2.msra.mxu0 0.0
        %3739 = vmatprep.subr.mxu0 0.0
        %3740 = vmatpush2.msra.mxu0 0.0
        %3741 = vmatprep.subr.mxu0 0.0
        %3742 = vmatpush2.msra.mxu0 0.0
        %3743 = vmatprep.subr.mxu0 0.0
        %3744 = vmatpush2.msra.mxu0 0.0
        %3745 = vmatprep.subr.mxu0 0.0
        %3746 = vmatpush2.msra.mxu0 0.0
        %3747 = vmatprep.subr.mxu0 0.0
        %3748 = vmatpush2.msra.mxu0 0.0
        %3749 = vmatprep.subr.mxu0 0.0
        %3750 = vmatpush2.msra.mxu0 0.0
        %3751 = vmatprep.mubr.f32.mxu0 0.0
        %v3752 = vand.u32 %v3515, 4294901760
        %v3753 = vsub.f32 %v3515, %v3752
        %3754 = vmatmul.mubr.f32.gmra.mxu0 %v3753
        %v3755 = vpop.f32.mrf.mxu0
        %v3756 = vadd.f32 %v3678, %v3755
        %v3757 = vpop.f32.mrf.mxu0
        %3758 = vdwg.mxu0
        %3759 = vmatprep.subr.mxu0 0.0
        %3760 = vmatpush1.msra.mxu0 0.0
        %3761 = vmatprep.subr.mxu0 0.0
        %3762 = vmatpush1.msra.mxu0 0.0
        %3763 = vmatprep.subr.mxu0 0.0
        %3764 = vmatpush1.msra.mxu0 0.0
        %3765 = vmatprep.subr.mxu0 0.0
        %3766 = vmatpush1.msra.mxu0 0.0
        %3767 = vmatprep.subr.mxu0 0.0
        %3768 = vmatpush1.msra.mxu0 0.0
        %3769 = vmatprep.subr.mxu0 0.0
        %3770 = vmatpush1.msra.mxu0 0.0
        %3771 = vmatprep.subr.mxu0 0.0
        %3772 = vmatpush1.msra.mxu0 0.0
        %3773 = vmatprep.subr.mxu0 0.0
        %3774 = vmatpush1.msra.mxu0 0.0
        %3775 = vmatprep.subr.mxu0 0.0
        %3776 = vmatpush1.msra.mxu0 0.0
        %3777 = vmatprep.subr.mxu0 0.0
        %3778 = vmatpush1.msra.mxu0 0.0
        %3779 = vmatprep.subr.mxu0 0.0
        %3780 = vmatpush1.msra.mxu0 0.0
        %3781 = vmatprep.subr.mxu0 0.0
        %3782 = vmatpush1.msra.mxu0 0.0
        %3783 = vmatprep.subr.mxu0 0.0
        %3784 = vmatpush1.msra.mxu0 0.0
        %3785 = vmatprep.subr.mxu0 0.0
        %v3786 = vand.u32 %v3506, 4294901760
        %3787 = vmatpush1.msra.mxu0 %v3786
        %3788 = vmatprep.subr.mxu0 0.0
        %v3789 = vand.u32 %v3505, 4294901760
        %3790 = vmatpush1.msra.mxu0 %v3789
        %3791 = vmatprep.subr.mxu0 0.0
        %v3792 = vand.u32 %v3504, 4294901760
        %3793 = vmatpush1.msra.mxu0 %v3792
        %3794 = vmatprep.subr.mxu0 0.0
        %3795 = vmatpush2.msra.mxu0 0.0
        %3796 = vmatprep.subr.mxu0 0.0
        %3797 = vmatpush2.msra.mxu0 0.0
        %3798 = vmatprep.subr.mxu0 0.0
        %3799 = vmatpush2.msra.mxu0 0.0
        %3800 = vmatprep.subr.mxu0 0.0
        %3801 = vmatpush2.msra.mxu0 0.0
        %3802 = vmatprep.subr.mxu0 0.0
        %3803 = vmatpush2.msra.mxu0 0.0
        %3804 = vmatprep.subr.mxu0 0.0
        %3805 = vmatpush2.msra.mxu0 0.0
        %3806 = vmatprep.subr.mxu0 0.0
        %3807 = vmatpush2.msra.mxu0 0.0
        %3808 = vmatprep.subr.mxu0 0.0
        %3809 = vmatpush2.msra.mxu0 0.0
        %3810 = vmatprep.subr.mxu0 0.0
        %3811 = vmatpush2.msra.mxu0 0.0
        %3812 = vmatprep.subr.mxu0 0.0
        %3813 = vmatpush2.msra.mxu0 0.0
        %3814 = vmatprep.subr.mxu0 0.0
        %3815 = vmatpush2.msra.mxu0 0.0
        %3816 = vmatprep.subr.mxu0 0.0
        %3817 = vmatpush2.msra.mxu0 0.0
        %3818 = vmatprep.subr.mxu0 0.0
        %3819 = vmatpush2.msra.mxu0 0.0
        %3820 = vmatprep.subr.mxu0 0.0
        %3821 = vmatpush2.msra.mxu0 0.0
        %3822 = vmatprep.subr.mxu0 0.0
        %3823 = vmatpush2.msra.mxu0 0.0
        %3824 = vmatprep.subr.mxu0 0.0
        %3825 = vmatpush2.msra.mxu0 0.0
        %3826 = vmatprep.mubr.f32.mxu0 0.0
        %v3827 = vand.u32 %v3515, 4294901760
        %v3828 = vsub.f32 %v3515, %v3827
        %v3829 = vand.u32 %v3828, 4294901760
        %3830 = vmatmul.mubr.f32.gmra.mxu0 %v3829
        %v3831 = vpop.f32.mrf.mxu0
        %v3832 = vadd.f32 %v3756, %v3831
        %v3833 = vpop.f32.mrf.mxu0
        %3834 = vdwg.mxu0
        %3835 = vmatprep.subr.mxu0 0.0
        %3836 = vmatpush1.msra.mxu0 0.0
        %3837 = vmatprep.subr.mxu0 0.0
        %3838 = vmatpush1.msra.mxu0 0.0
        %3839 = vmatprep.subr.mxu0 0.0
        %3840 = vmatpush1.msra.mxu0 0.0
        %3841 = vmatprep.subr.mxu0 0.0
        %3842 = vmatpush1.msra.mxu0 0.0
        %3843 = vmatprep.subr.mxu0 0.0
        %3844 = vmatpush1.msra.mxu0 0.0
        %3845 = vmatprep.subr.mxu0 0.0
        %3846 = vmatpush1.msra.mxu0 0.0
        %3847 = vmatprep.subr.mxu0 0.0
        %3848 = vmatpush1.msra.mxu0 0.0
        %3849 = vmatprep.subr.mxu0 0.0
        %3850 = vmatpush1.msra.mxu0 0.0
        %3851 = vmatprep.subr.mxu0 0.0
        %3852 = vmatpush1.msra.mxu0 0.0
        %3853 = vmatprep.subr.mxu0 0.0
        %3854 = vmatpush1.msra.mxu0 0.0
        %3855 = vmatprep.subr.mxu0 0.0
        %3856 = vmatpush1.msra.mxu0 0.0
        %3857 = vmatprep.subr.mxu0 0.0
        %3858 = vmatpush1.msra.mxu0 0.0
        %3859 = vmatprep.subr.mxu0 0.0
        %3860 = vmatpush1.msra.mxu0 0.0
        %3861 = vmatprep.subr.mxu0 0.0
        %v3862 = vand.u32 %v3506, 4294901760
        %v3863 = vsub.f32 %v3506, %v3862
        %v3864 = vand.u32 %v3863, 4294901760
        %3865 = vmatpush1.msra.mxu0 %v3864
        %3866 = vmatprep.subr.mxu0 0.0
        %v3867 = vand.u32 %v3505, 4294901760
        %v3868 = vsub.f32 %v3505, %v3867
        %v3869 = vand.u32 %v3868, 4294901760
        %3870 = vmatpush1.msra.mxu0 %v3869
        %3871 = vmatprep.subr.mxu0 0.0
        %v3872 = vand.u32 %v3504, 4294901760
        %v3873 = vsub.f32 %v3504, %v3872
        %v3874 = vand.u32 %v3873, 4294901760
        %3875 = vmatpush1.msra.mxu0 %v3874
        %3876 = vmatprep.subr.mxu0 0.0
        %3877 = vmatpush2.msra.mxu0 0.0
        %3878 = vmatprep.subr.mxu0 0.0
        %3879 = vmatpush2.msra.mxu0 0.0
        %3880 = vmatprep.subr.mxu0 0.0
        %3881 = vmatpush2.msra.mxu0 0.0
        %3882 = vmatprep.subr.mxu0 0.0
        %3883 = vmatpush2.msra.mxu0 0.0
        %3884 = vmatprep.subr.mxu0 0.0
        %3885 = vmatpush2.msra.mxu0 0.0
        %3886 = vmatprep.subr.mxu0 0.0
        %3887 = vmatpush2.msra.mxu0 0.0
        %3888 = vmatprep.subr.mxu0 0.0
        %3889 = vmatpush2.msra.mxu0 0.0
        %3890 = vmatprep.subr.mxu0 0.0
        %3891 = vmatpush2.msra.mxu0 0.0
        %3892 = vmatprep.subr.mxu0 0.0
        %3893 = vmatpush2.msra.mxu0 0.0
        %3894 = vmatprep.subr.mxu0 0.0
        %3895 = vmatpush2.msra.mxu0 0.0
        %3896 = vmatprep.subr.mxu0 0.0
        %3897 = vmatpush2.msra.mxu0 0.0
        %3898 = vmatprep.subr.mxu0 0.0
        %3899 = vmatpush2.msra.mxu0 0.0
        %3900 = vmatprep.subr.mxu0 0.0
        %3901 = vmatpush2.msra.mxu0 0.0
        %3902 = vmatprep.subr.mxu0 0.0
        %3903 = vmatpush2.msra.mxu0 0.0
        %3904 = vmatprep.subr.mxu0 0.0
        %3905 = vmatpush2.msra.mxu0 0.0
        %3906 = vmatprep.subr.mxu0 0.0
        %3907 = vmatpush2.msra.mxu0 0.0
        %3908 = vmatprep.mubr.f32.mxu0 0.0
        %v3909 = vand.u32 %v3515, 4294901760
        %3910 = vmatmul.mubr.f32.gmra.mxu0 %v3909
        %v3911 = vpop.f32.mrf.mxu0
        %v3912 = vadd.f32 %v3832, %v3911
        %v3913 = vpop.f32.mrf.mxu0
        %3914 = vdwg.mxu0
        %3915 = vmatprep.subr.mxu0 0.0
        %3916 = vmatpush1.msra.mxu0 0.0
        %3917 = vmatprep.subr.mxu0 0.0
        %3918 = vmatpush1.msra.mxu0 0.0
        %3919 = vmatprep.subr.mxu0 0.0
        %3920 = vmatpush1.msra.mxu0 0.0
        %3921 = vmatprep.subr.mxu0 0.0
        %3922 = vmatpush1.msra.mxu0 0.0
        %3923 = vmatprep.subr.mxu0 0.0
        %3924 = vmatpush1.msra.mxu0 0.0
        %3925 = vmatprep.subr.mxu0 0.0
        %3926 = vmatpush1.msra.mxu0 0.0
        %3927 = vmatprep.subr.mxu0 0.0
        %3928 = vmatpush1.msra.mxu0 0.0
        %3929 = vmatprep.subr.mxu0 0.0
        %3930 = vmatpush1.msra.mxu0 0.0
        %3931 = vmatprep.subr.mxu0 0.0
        %3932 = vmatpush1.msra.mxu0 0.0
        %3933 = vmatprep.subr.mxu0 0.0
        %3934 = vmatpush1.msra.mxu0 0.0
        %3935 = vmatprep.subr.mxu0 0.0
        %3936 = vmatpush1.msra.mxu0 0.0
        %3937 = vmatprep.subr.mxu0 0.0
        %3938 = vmatpush1.msra.mxu0 0.0
        %3939 = vmatprep.subr.mxu0 0.0
        %3940 = vmatpush1.msra.mxu0 0.0
        %3941 = vmatprep.subr.mxu0 0.0
        %v3942 = vand.u32 %v3506, 4294901760
        %3943 = vmatpush1.msra.mxu0 %v3942
        %3944 = vmatprep.subr.mxu0 0.0
        %v3945 = vand.u32 %v3505, 4294901760
        %3946 = vmatpush1.msra.mxu0 %v3945
        %3947 = vmatprep.subr.mxu0 0.0
        %v3948 = vand.u32 %v3504, 4294901760
        %3949 = vmatpush1.msra.mxu0 %v3948
        %3950 = vmatprep.subr.mxu0 0.0
        %3951 = vmatpush2.msra.mxu0 0.0
        %3952 = vmatprep.subr.mxu0 0.0
        %3953 = vmatpush2.msra.mxu0 0.0
        %3954 = vmatprep.subr.mxu0 0.0
        %3955 = vmatpush2.msra.mxu0 0.0
        %3956 = vmatprep.subr.mxu0 0.0
        %3957 = vmatpush2.msra.mxu0 0.0
        %3958 = vmatprep.subr.mxu0 0.0
        %3959 = vmatpush2.msra.mxu0 0.0
        %3960 = vmatprep.subr.mxu0 0.0
        %3961 = vmatpush2.msra.mxu0 0.0
        %3962 = vmatprep.subr.mxu0 0.0
        %3963 = vmatpush2.msra.mxu0 0.0
        %3964 = vmatprep.subr.mxu0 0.0
        %3965 = vmatpush2.msra.mxu0 0.0
        %3966 = vmatprep.subr.mxu0 0.0
        %3967 = vmatpush2.msra.mxu0 0.0
        %3968 = vmatprep.subr.mxu0 0.0
        %3969 = vmatpush2.msra.mxu0 0.0
        %3970 = vmatprep.subr.mxu0 0.0
        %3971 = vmatpush2.msra.mxu0 0.0
        %3972 = vmatprep.subr.mxu0 0.0
        %3973 = vmatpush2.msra.mxu0 0.0
        %3974 = vmatprep.subr.mxu0 0.0
        %3975 = vmatpush2.msra.mxu0 0.0
        %3976 = vmatprep.subr.mxu0 0.0
        %3977 = vmatpush2.msra.mxu0 0.0
        %3978 = vmatprep.subr.mxu0 0.0
        %3979 = vmatpush2.msra.mxu0 0.0
        %3980 = vmatprep.subr.mxu0 0.0
        %3981 = vmatpush2.msra.mxu0 0.0
        %3982 = vmatprep.mubr.f32.mxu0 0.0
        %v3983 = vand.u32 %v3515, 4294901760
        %3984 = vmatmul.mubr.f32.gmra.mxu0 %v3983
        %v3985 = vpop.f32.mrf.mxu0
        %v3986 = vadd.f32 %v3912, %v3985
        %v3987 = vpop.f32.mrf.mxu0
        %3988 = vdwg.mxu0
        %v3989 = vmax.f32 %v3986, 0.0
        %3990 = vst [vmem:[%s312] sm:$0xff] %v3989
        %s3991 = sand.u32 %s193, 1
        %s3992 = scalar_lea.sflag [#allocation4], %s3991
        %s3993 = sand.u32 %s193, 1
        %s3994 = smul.addr %s3993, 8
        %s3995 = scalar_lea.vmem [#allocation3], %s3994
        // Predicated region
        $region45: #{tpu_custom_call.1} parent=43 // pred_check
          %p3996 = pneg %p203
        $region46: #{tpu_custom_call.1} parent=43 // pred_check_branch
          %3998 = sbr.rel (%p3996) target = $region48
        $region47: #{tpu_custom_call.1} parent=43 // pred_region
          %s4000 = ssub.s32 128, 128
          %4001 = vsyncadd %s3992, %s4000
          %s4002 = smul.addr %s24, 2
          %s4003 = sadd.s32 %s25, %s4002
          %s4004 = smul.addr %s4003, 128
          %s4005 = scalar_lea.hbm %s6, %s4004
          %s4007 = sshll.u32 %s3995, 4
          %s4008 = int_to_ptr.vmem [resolvable:$true] %s4007
          %4010 = dma.vmem_to_hbm [thread:$0]  %s4008, 128, %s4005, %s3992
        $region48: #{tpu_custom_call.1} parent=43 // pred_fallthru
          _
      $region44: #{tpu_custom_call.1} parent=5 // pred_fallthru
        _
      %p4011 = scmp.le.s32.totalorder 2, %s15
      // Predicated region
      $region49: #{tpu_custom_call.1} parent=5 // pred_check
        %p4012 = pneg %p4011
      $region50: #{tpu_custom_call.1} parent=5 // pred_check_branch
        %4014 = sbr.rel (%p4012) target = $region52
      $region51: #{tpu_custom_call.1} parent=5 // pred_region
        %s4015 = ssub.s32 %s15, 2
        // Predicated region
        $region53: #{tpu_custom_call.1} parent=51 // pred_check
          %p4016 = pneg %p209
        $region54: #{tpu_custom_call.1} parent=51 // pred_check_branch
          %4018 = sbr.rel (%p4016) target = $region56
        $region55: #{tpu_custom_call.1} parent=51 // pred_region
          %s4019 = sand.u32 %s194, 1
          %s4020 = scalar_lea.sflag [#allocation4], %s4019
          %s4021 = sand.u32 %s194, 1
          %s4022 = smul.addr %s4021, 8
          %s4023 = scalar_lea.vmem [#allocation3], %s4022
          %4024 = dma.done %s4020, 128
        $region56: #{tpu_custom_call.1} parent=51 // pred_fallthru
          _
      $region52: #{tpu_custom_call.1} parent=5 // pred_fallthru
        _
    $region6: #{tpu_custom_call.1} parent=1 // loop_footer
      %s19 = sadd.s32 1, %s15
    $region7: #{tpu_custom_call.1} parent=1 // loop_footer_branch
      %14 = sbr.rel target = $region3
    $region8: #{tpu_custom_call.1} parent=1 // loop_exit
      _
    %4025 = vsyncpa [#allocation4], 1
    %s4026 = scalar_lea.sflag [#allocation4], 1
    %4027 = vsyncpa %s4026, 1

</llo_original>
